<compile_context>
chip_gen: v6e
topology: v6e:2x2x1
jax: 0.10.0
libtpu: 0.0.40
codegen_flags: <defaults>
</compile_context>

<pallas_src>
import functools

import jax
import jax.numpy as jnp
from jax import lax
from jax.experimental import pallas as pl
from jax.experimental.pallas import tpu as pltpu


# -----------------------------------------------------------------------------
# Fused bidirectional LSTM layer kernel (one pallas_call per layer).
# -----------------------------------------------------------------------------
def _bilstm_block_kernel(gin_ref, whh_ref, len_ref, out_f_ref, out_b_ref,
                         hf_sc, cf_sc, hb_sc, cb_sc,
                         *, block_t: int, seq_len: int, hidden: int,
                         batch_pad: int, out_dtype):
    H, Bp = hidden, batch_pad
    i = pl.program_id(0)

    @pl.when(i == 0)
    def _():
        hf_sc[...] = jnp.zeros_like(hf_sc)
        cf_sc[...] = jnp.zeros_like(cf_sc)
        hb_sc[...] = jnp.zeros_like(hb_sc)
        cb_sc[...] = jnp.zeros_like(cb_sc)

    # Hoisted per-block loads (constant across the inner time loop).
    whh_f = whh_ref[0]                     # (H, 4H) bf16
    whh_b = whh_ref[1]                     # (H, 4H) bf16
    lengths = len_ref[...]                 # (2Bp, 1) int32
    len_f = lengths[:Bp]                   # sublane-tile-aligned slices (Bp % 8 == 0)
    len_b = lengths[Bp:]
    t0 = i * block_t

    def dir_step(g_in, h, c, whh, valid):
        # Single-direction LSTM cell on (Bp, .) tiles: no discarded MXU columns and no
        # row-select on the critical path.  bf16 MXU operands, f32 accumulation/state.
        gates = g_in.astype(jnp.float32) + jnp.dot(
            h.astype(jnp.bfloat16), whh, preferred_element_type=jnp.float32)
        # PyTorch gate order [i, f, g, o].
        i_g = jax.nn.sigmoid(gates[:, 0 * H:1 * H])
        f_g = jax.nn.sigmoid(gates[:, 1 * H:2 * H])
        g_g = jnp.tanh(gates[:, 2 * H:3 * H])
        o_g = jax.nn.sigmoid(gates[:, 3 * H:4 * H])
        c_new = f_g * c + i_g * g_g
        h_new = o_g * jnp.tanh(c_new)
        h = jnp.where(valid, h_new, h)
        c = jnp.where(valid, c_new, c)
        return h, c, jnp.where(valid, h_new, 0.0).astype(out_dtype)

    def step(s, carry):
        h_f, c_f, h_b, c_b = carry
        g = gin_ref[s]                     # (2Bp, 4H) bf16, pre-stacked -> no per-step concat
        t_f = t0 + s                       # forward time index
        t_b = seq_len - 1 - t_f            # backward time index (input already time-mirrored)
        h_f, c_f, o_f = dir_step(g[:Bp], h_f, c_f, whh_f, t_f < len_f)
        h_b, c_b, o_b = dir_step(g[Bp:], h_b, c_b, whh_b, t_b < len_b)
        out_f_ref[s] = o_f                 # natural time order
        out_b_ref[s] = o_b                 # mirrored time order; flipped outside the kernel
        return h_f, c_f, h_b, c_b

    h_f, c_f, h_b, c_b = lax.fori_loop(
        0, block_t, step,
        (hf_sc[...], cf_sc[...], hb_sc[...], cb_sc[...]),
        unroll=min(8, block_t))            # partial unroll: LLO visibility without vreg spills
    hf_sc[...] = h_f
    cf_sc[...] = c_f
    hb_sc[...] = h_b
    cb_sc[...] = c_b


def bilstm_layer(gin_stack, whh_all, lengths_2bp, *, block_t: int, hidden: int,
                 vmem_limit: int):
    """gin_stack: (T_pad, 2Bp, 4H) bf16 pre-stacked input gates (bwd half time-mirrored);
    whh_all: (2, H, 4H) bf16; lengths_2bp: (2Bp, 1) int32 (padded rows have length 0).
    Returns (out_fwd, out_bwd_mirrored), each (T_pad, Bp, H) bf16."""
    T_pad, two_bp, _ = gin_stack.shape
    Bp = two_bp // 2
    H = hidden
    nb = T_pad // block_t

    grid_spec = pltpu.PrefetchScalarGridSpec(
        num_scalar_prefetch=0,
        grid=(nb,),
        in_specs=[
            # single stacked input stream (time block i)
            pl.BlockSpec((block_t, 2 * Bp, 4 * H), lambda i: (i, 0, 0)),
            # constants: block index never changes, so Pallas skips re-DMA after step 0.
            pl.BlockSpec((2, H, 4 * H), lambda i: (0, 0, 0)),
            pl.BlockSpec((2 * Bp, 1), lambda i: (0, 0)),
        ],
        out_specs=[
            pl.BlockSpec((block_t, Bp, H), lambda i: (i, 0, 0)),
            pl.BlockSpec((block_t, Bp, H), lambda i: (i, 0, 0)),
        ],
        scratch_shapes=[pltpu.VMEM((Bp, H), jnp.float32)] * 4,   # h_f, c_f, h_b, c_b
    )
    kernel = functools.partial(_bilstm_block_kernel, block_t=block_t, seq_len=T_pad,
                               hidden=H, batch_pad=Bp, out_dtype=jnp.bfloat16)
    return pl.pallas_call(
        kernel,
        out_shape=(jax.ShapeDtypeStruct((T_pad, Bp, H), jnp.bfloat16),
                   jax.ShapeDtypeStruct((T_pad, Bp, H), jnp.bfloat16)),
        grid_spec=grid_spec,
        compiler_params=pltpu.CompilerParams(
            dimension_semantics=("arbitrary",),       # time recurrence
            vmem_limit_bytes=vmem_limit),
    )(gin_stack, whh_all, lengths_2bp)


# -----------------------------------------------------------------------------
# Hoisted input projection: one big MXU matmul per layer (both directions at once).
# -----------------------------------------------------------------------------
def _input_gates(feats, wih_all, bias_all):
    """feats: list of (T, B, Ci) arrays whose channel concat is the LSTM input (the concat
    itself is never materialized).  Returns (T, B, 8H) bf16 = x @ W_ih + (b_ih + b_hh)."""
    T, B = feats[0].shape[:2]
    acc = jnp.zeros((T * B, wih_all.shape[1]), jnp.float32)
    r0 = 0
    for f_ in feats:
        c = f_.shape[-1]
        acc = acc + jnp.dot(f_.reshape(T * B, c).astype(jnp.bfloat16),
                            wih_all[r0:r0 + c],
                            preferred_element_type=jnp.float32)
        r0 += c
    return (acc + bias_all[None, :]).astype(jnp.bfloat16).reshape(T, B, -1)


# -----------------------------------------------------------------------------
# RangePredictor forward
# -----------------------------------------------------------------------------
def range_predictor_forward(x, durations, input_lengths, params, *, block_t=64):
    """x: (B, T, E); durations: (B, T, 1); input_lengths: (B,) int.  Returns (B, T, 1)."""
    B, T, _ = x.shape
    H = params["hidden"]

    x_tb = jnp.transpose(x, (1, 0, 2)).astype(jnp.float32)            # time-major
    d_tb = jnp.transpose(durations, (1, 0, 2)).astype(jnp.float32)

    tt = max(1, min(block_t, T))
    T_pad = pl.cdiv(T, tt) * tt
    if T_pad != T:
        pad = ((0, T_pad - T), (0, 0), (0, 0))
        x_tb = jnp.pad(x_tb, pad)
        d_tb = jnp.pad(d_tb, pad)

    # Pad batch rows to a multiple of 8 (f32 sublane tile); padded rows get length 0 so
    # they remain masked (state 0, output 0) inside the kernel.
    Bp = ((B + 7) // 8) * 8
    pad_rows = Bp - B
    len_real = input_lengths.astype(jnp.int32)
    len_pad = jnp.zeros((Bp,), jnp.int32).at[:B].set(len_real)
    lengths_2bp = jnp.concatenate([len_pad, len_pad]).reshape(2 * Bp, 1)

    # Per-generation VMEM budget: ~100 MiB on 128-MiB parts (v5e/v6e), ~48 MiB on v7x (64 MiB).
    try:
        vmem_cap = pltpu.get_tpu_info().vmem_capacity_bytes
    except Exception:
        vmem_cap = 64 * 1024 * 1024
    vmem_limit = int(min(max(vmem_cap - 16 * 1024 * 1024, 32 * 1024 * 1024),
                         100 * 1024 * 1024))

    feats = [x_tb, d_tb]                  # == torch.cat((x, durations), -1), unmaterialized
    for layer in params["layers"]:
        gin = _input_gates(feats, layer["wih_all"], layer["bias_all"])   # (T_pad, B, 8H) bf16
        # Pre-stack both directions on the (padded) batch axis; the bwd half is time-mirrored
        # so the kernel walks a single monotone time index with no per-step concat / reverse.
        g_f = gin[:, :, :4 * H]
        g_b = gin[::-1, :, 4 * H:]
        bpad = ((0, 0), (0, pad_rows), (0, 0))
        gin_stack = jnp.concatenate([jnp.pad(g_f, bpad), jnp.pad(g_b, bpad)], axis=1)
        out_f, out_b_mir = bilstm_layer(gin_stack, layer["whh_all"], lengths_2bp,
                                        block_t=tt, hidden=H, vmem_limit=vmem_limit)
        # Un-pad batch; un-mirror the backward output back to natural time order.
        feats = [out_f[:, :B, :], out_b_mir[::-1, :B, :]]

    # f.dropout(outputs, p, self.training): identity in eval mode.
    of2 = feats[0][:T].reshape(T * B, H).astype(jnp.float32)
    ob2 = feats[1][:T].reshape(T * B, H).astype(jnp.float32)
    pw, pb = params["proj_w"], params["proj_b"]
    y = jax.nn.softplus(of2 @ pw[:H] + ob2 @ pw[H:] + pb)              # Linear(2H->1)+Softplus
    return jnp.transpose(y.reshape(T, B, 1), (1, 0, 2))                # (B, T, 1)


# -----------------------------------------------------------------------------
# Deterministic parameter construction (PyTorch LSTM weight shapes, bf16 MXU operands)
# -----------------------------------------------------------------------------
def make_params(key, embedding_dim, hidden, num_layers):
    in0 = embedding_dim + 1                   # LSTM input = cat(x, durations)
    layers = []
    for l in range(num_layers):
        d_in = in0 if l == 0 else 2 * hidden
        dir_w = []
        for _ in range(2):                    # fwd, bwd
            key, k1, k2, k3, k4 = jax.random.split(key, 5)
            w_ih = 0.1 * jax.random.normal(k1, (4 * hidden, d_in), jnp.float32)
            w_hh = 0.1 * jax.random.normal(k2, (4 * hidden, hidden), jnp.float32)
            b_ih = 0.1 * jax.random.normal(k3, (4 * hidden,), jnp.float32)
            b_hh = 0.1 * jax.random.normal(k4, (4 * hidden,), jnp.float32)
            dir_w.append((w_ih.T, w_hh.T, b_ih + b_hh))   # pre-transposed, biases folded
        (wif, whf, bf_), (wib, whb, bb_) = dir_w
        layers.append({
            "wih_all": jnp.concatenate([wif, wib], axis=1).astype(jnp.bfloat16),  # (d_in, 8H)
            "whh_all": jnp.stack([whf, whb], axis=0).astype(jnp.bfloat16),        # (2, H, 4H)
            "bias_all": jnp.concatenate([bf_, bb_], axis=0).astype(jnp.float32),  # (8H,)
        })
    key, kp, kb = jax.random.split(key, 3)
    proj_w = 0.1 * jax.random.normal(kp, (1, 2 * hidden), jnp.float32)   # torch (out, in)
    proj_b = 0.1 * jax.random.normal(kb, (1,), jnp.float32)
    return {"hidden": hidden, "layers": layers,
            "proj_w": proj_w.T, "proj_b": proj_b}


# -----------------------------------------------------------------------------
# Pure-JAX reference (packed-sequence semantics, same bf16 operand/output choices)
# -----------------------------------------------------------------------------
def _lstm_dir_ref(gin_dir, whh_dir, lengths_col, reverse):
    T, B, G = gin_dir.shape
    H = G // 4
    h = jnp.zeros((B, H), jnp.float32)
    c = jnp.zeros((B, H), jnp.float32)
    out = jnp.zeros((T, B, H), jnp.bfloat16)
    order = range(T - 1, -1, -1) if reverse else range(T)
    for t in order:
        gates = gin_dir[t].astype(jnp.float32) + jnp.dot(
            h.astype(jnp.bfloat16), whh_dir, preferred_element_type=jnp.float32)
        i_ = jax.nn.sigmoid(gates[:, :H])
        f_ = jax.nn.sigmoid(gates[:, H:2 * H])
        g_ = jnp.tanh(gates[:, 2 * H:3 * H])
        o_ = jax.nn.sigmoid(gates[:, 3 * H:])
        c_new = f_ * c + i_ * g_
        h_new = o_ * jnp.tanh(c_new)
        valid = t < lengths_col
        h = jnp.where(valid, h_new, h)
        c = jnp.where(valid, c_new, c)
        out = out.at[t].set(jnp.where(valid, h_new, 0.0).astype(jnp.bfloat16))
    return out


def range_predictor_ref(x, durations, input_lengths, params):
    B, T, _ = x.shape
    H = params["hidden"]
    x_tb = jnp.transpose(x, (1, 0, 2)).astype(jnp.float32)
    d_tb = jnp.transpose(durations, (1, 0, 2)).astype(jnp.float32)
    lengths_col = input_lengths.astype(jnp.int32).reshape(B, 1)
    feats = [x_tb, d_tb]
    for layer in params["layers"]:
        gin = _input_gates(feats, layer["wih_all"], layer["bias_all"])
        out_f = _lstm_dir_ref(gin[..., :4 * H], layer["whh_all"][0],
                              lengths_col, reverse=False)
        out_b = _lstm_dir_ref(gin[..., 4 * H:], layer["whh_all"][1],
                              lengths_col, reverse=True)
        feats = [out_f, out_b]
    of2 = feats[0].reshape(T * B, H).astype(jnp.float32)
    ob2 = feats[1].reshape(T * B, H).astype(jnp.float32)
    pw, pb = params["proj_w"], params["proj_b"]
    y = jax.nn.softplus(of2 @ pw[:H] + ob2 @ pw[H:] + pb).reshape(T, B, 1)
    return jnp.transpose(y, (1, 0, 2))


if __name__ == "__main__":
    B, T, E, H, L = 2, 8, 32, 32, 2     # batch, seq, embedding_dim, lstm_hidden, lstm_layers

    key = jax.random.PRNGKey(0)
    kx, kd, kp = jax.random.split(key, 3)
    x = jax.random.normal(kx, (B, T, E), jnp.float32)
    durations = jax.random.uniform(kd, (B, T, 1), jnp.float32)
    input_lengths = jnp.array([T, 5], dtype=jnp.int32)
    params = make_params(kp, E, H, L)

    out = jax.block_until_ready(
        range_predictor_forward(x, durations, input_lengths, params))
    assert out.shape == (B, T, 1), out.shape

    ref = jax.block_until_ready(
        range_predictor_ref(x, durations, input_lengths, params))
    err = float(jnp.max(jnp.abs(out - ref)))
    assert jnp.allclose(out, ref, atol=1e-3, rtol=1e-3), err

    print("KERNEL_OK")
</pallas_src>

<mosaic_0001>
module attributes {stable_mosaic.version = 11 : i64} {
  func.func @_bilstm_block_kernel(%arg0: i32, %arg1: memref<8x16x128xbf16, #tpu.memory_space<vmem>>, %arg2: memref<2x32x128xbf16, #tpu.memory_space<vmem>>, %arg3: memref<16x1xi32, #tpu.memory_space<vmem>>, %arg4: memref<8x8x32xbf16, #tpu.memory_space<vmem>>, %arg5: memref<8x8x32xbf16, #tpu.memory_space<vmem>>, %arg6: memref<8x32xf32, #tpu.memory_space<vmem>>, %arg7: memref<8x32xf32, #tpu.memory_space<vmem>>, %arg8: memref<8x32xf32, #tpu.memory_space<vmem>>, %arg9: memref<8x32xf32, #tpu.memory_space<vmem>>) attributes {dimension_semantics = [#tpu.dimension_semantics<arbitrary>], iteration_bounds = array<i64: 1>, scalar_prefetch = 0 : i64, scratch_operands = 4 : i64, tpu.core_type = #tpu.core_type<tc>, window_params = [{transform_indices = @transform_0, window_bounds = array<i64: 8, 16, 128>}, {pipeline_mode = #tpu.pipeline_mode<synchronous>, transform_indices = @transform_1, window_bounds = array<i64: 2, 32, 128>}, {pipeline_mode = #tpu.pipeline_mode<synchronous>, transform_indices = @transform_2, window_bounds = array<i64: 16, 1>}, {transform_indices = @transform_3, window_bounds = array<i64: 8, 8, 32>}, {transform_indices = @transform_4, window_bounds = array<i64: 8, 8, 32>}]} {
    %c0_i32 = arith.constant 0 : i32
    %0 = arith.cmpi eq, %arg0, %c0_i32 : i32
    %1 = arith.extui %0 : i1 to i32
    %c0_i32_0 = arith.constant 0 : i32
    %2 = arith.cmpi ne, %1, %c0_i32_0 : i32
    scf.if %2 {
      %cst_160 = arith.constant 0.000000e+00 : f32
      %811 = vector.broadcast %cst_160 : f32 to vector<8x32xf32>
      %c0_161 = arith.constant 0 : index
      %c0_162 = arith.constant 0 : index
      %812 = vector.load %arg6[%c0_161, %c0_162] : memref<8x32xf32, #tpu.memory_space<vmem>>, vector<8x32xf32>
      tpu.vector_store %arg6[%c0_161, %c0_162], %811 {strides = array<i32>} : memref<8x32xf32, #tpu.memory_space<vmem>>, vector<8x32xf32>,
      %cst_163 = arith.constant 0.000000e+00 : f32
      %813 = vector.broadcast %cst_163 : f32 to vector<8x32xf32>
      %c0_164 = arith.constant 0 : index
      %c0_165 = arith.constant 0 : index
      %814 = vector.load %arg7[%c0_164, %c0_165] : memref<8x32xf32, #tpu.memory_space<vmem>>, vector<8x32xf32>
      tpu.vector_store %arg7[%c0_164, %c0_165], %813 {strides = array<i32>} : memref<8x32xf32, #tpu.memory_space<vmem>>, vector<8x32xf32>,
      %cst_166 = arith.constant 0.000000e+00 : f32
      %815 = vector.broadcast %cst_166 : f32 to vector<8x32xf32>
      %c0_167 = arith.constant 0 : index
      %c0_168 = arith.constant 0 : index
      %816 = vector.load %arg8[%c0_167, %c0_168] : memref<8x32xf32, #tpu.memory_space<vmem>>, vector<8x32xf32>
      tpu.vector_store %arg8[%c0_167, %c0_168], %815 {strides = array<i32>} : memref<8x32xf32, #tpu.memory_space<vmem>>, vector<8x32xf32>,
      %cst_169 = arith.constant 0.000000e+00 : f32
      %817 = vector.broadcast %cst_169 : f32 to vector<8x32xf32>
      %c0_170 = arith.constant 0 : index
      %c0_171 = arith.constant 0 : index
      %818 = vector.load %arg9[%c0_170, %c0_171] : memref<8x32xf32, #tpu.memory_space<vmem>>, vector<8x32xf32>
      tpu.vector_store %arg9[%c0_170, %c0_171], %817 {strides = array<i32>} : memref<8x32xf32, #tpu.memory_space<vmem>>, vector<8x32xf32>,
    } else {
    }
    %c0 = arith.constant 0 : index
    %c0_1 = arith.constant 0 : index
    %c0_2 = arith.constant 0 : index
    %3 = vector.load %arg2[%c0, %c0_1, %c0_2] : memref<2x32x128xbf16, #tpu.memory_space<vmem>>, vector<1x32x128xbf16>
    %4 = vector.shape_cast %3 : vector<1x32x128xbf16> to vector<32x128xbf16>
    %c1 = arith.constant 1 : index
    %c0_3 = arith.constant 0 : index
    %c0_4 = arith.constant 0 : index
    %5 = vector.load %arg2[%c1, %c0_3, %c0_4] : memref<2x32x128xbf16, #tpu.memory_space<vmem>>, vector<1x32x128xbf16>
    %6 = vector.shape_cast %5 : vector<1x32x128xbf16> to vector<32x128xbf16>
    %c0_5 = arith.constant 0 : index
    %c0_6 = arith.constant 0 : index
    %7 = vector.load %arg3[%c0_5, %c0_6] : memref<16x1xi32, #tpu.memory_space<vmem>>, vector<16x1xi32>
    %8 = vector.extract_strided_slice %7 {offsets = [0, 0], sizes = [8, 1], strides = [1, 1]} : vector<16x1xi32> to vector<8x1xi32>
    %9 = vector.extract_strided_slice %7 {offsets = [8, 0], sizes = [8, 1], strides = [1, 1]} : vector<16x1xi32> to vector<8x1xi32>
    %c8_i32 = arith.constant 8 : i32
    %10 = arith.muli %arg0, %c8_i32 : i32
    %c0_7 = arith.constant 0 : index
    %c0_8 = arith.constant 0 : index
    %11 = vector.load %arg6[%c0_7, %c0_8] : memref<8x32xf32, #tpu.memory_space<vmem>>, vector<8x32xf32>
    %c0_9 = arith.constant 0 : index
    %c0_10 = arith.constant 0 : index
    %12 = vector.load %arg7[%c0_9, %c0_10] : memref<8x32xf32, #tpu.memory_space<vmem>>, vector<8x32xf32>
    %c0_11 = arith.constant 0 : index
    %c0_12 = arith.constant 0 : index
    %13 = vector.load %arg8[%c0_11, %c0_12] : memref<8x32xf32, #tpu.memory_space<vmem>>, vector<8x32xf32>
    %c0_13 = arith.constant 0 : index
    %c0_14 = arith.constant 0 : index
    %14 = vector.load %arg9[%c0_13, %c0_14] : memref<8x32xf32, #tpu.memory_space<vmem>>, vector<8x32xf32>
    %c0_i32_15 = arith.constant 0 : i32
    %15 = arith.index_cast %c0_i32_15 : i32 to index
    %c0_16 = arith.constant 0 : index
    %c0_17 = arith.constant 0 : index
    %16 = vector.load %arg1[%15, %c0_16, %c0_17] : memref<8x16x128xbf16, #tpu.memory_space<vmem>>, vector<1x16x128xbf16>
    %17 = vector.shape_cast %16 : vector<1x16x128xbf16> to vector<16x128xbf16>
    %18 = arith.addi %10, %c0_i32_15 : i32
    %c7_i32 = arith.constant 7 : i32
    %19 = arith.subi %c7_i32, %18 : i32
    %20 = vector.extract_strided_slice %17 {offsets = [0, 0], sizes = [8, 128], strides = [1, 1]} : vector<16x128xbf16> to vector<8x128xbf16>
    %21 = vector.broadcast %18 : i32 to vector<8x1xi32>
    %22 = arith.cmpi slt, %21, %8 : vector<8x1xi32>
    %23 = arith.extf %20 : vector<8x128xbf16> to vector<8x128xf32>
    %24 = arith.truncf %11 : vector<8x32xf32> to vector<8x32xbf16>
    %cst = arith.constant dense<0.000000e+00> : vector<8x128xf32>
    %25 = tpu.matmul %24, %4, %cst {dimension_numbers = #tpu.dot_dimension_numbers<[1], [0], [0], [1], [0, 0, 1, 1], [], []>} : vector<8x32xbf16>, vector<32x128xbf16>, vector<8x128xf32> -> vector<8x128xf32>
    %26 = arith.addf %23, %25 : vector<8x128xf32>
    %27 = vector.extract_strided_slice %26 {offsets = [0, 0], sizes = [8, 32], strides = [1, 1]} : vector<8x128xf32> to vector<8x32xf32>
    %28 = arith.negf %27 : vector<8x32xf32>
    %29 = math.exp %28 : vector<8x32xf32>
    %cst_18 = arith.constant 1.000000e+00 : f32
    %30 = vector.broadcast %cst_18 : f32 to vector<8x32xf32>
    %31 = arith.addf %30, %29 : vector<8x32xf32>
    %32 = arith.divf %30, %31 : vector<8x32xf32>
    %33 = vector.extract_strided_slice %26 {offsets = [0, 32], sizes = [8, 32], strides = [1, 1]} : vector<8x128xf32> to vector<8x32xf32>
    %34 = arith.negf %33 : vector<8x32xf32>
    %35 = math.exp %34 : vector<8x32xf32>
    %cst_19 = arith.constant 1.000000e+00 : f32
    %36 = vector.broadcast %cst_19 : f32 to vector<8x32xf32>
    %37 = arith.addf %36, %35 : vector<8x32xf32>
    %38 = arith.divf %36, %37 : vector<8x32xf32>
    %39 = vector.extract_strided_slice %26 {offsets = [0, 64], sizes = [8, 32], strides = [1, 1]} : vector<8x128xf32> to vector<8x32xf32>
    %40 = math.tanh %39 : vector<8x32xf32>
    %41 = vector.extract_strided_slice %26 {offsets = [0, 96], sizes = [8, 32], strides = [1, 1]} : vector<8x128xf32> to vector<8x32xf32>
    %42 = arith.negf %41 : vector<8x32xf32>
    %43 = math.exp %42 : vector<8x32xf32>
    %cst_20 = arith.constant 1.000000e+00 : f32
    %44 = vector.broadcast %cst_20 : f32 to vector<8x32xf32>
    %45 = arith.addf %44, %43 : vector<8x32xf32>
    %46 = arith.divf %44, %45 : vector<8x32xf32>
    %47 = arith.mulf %38, %12 : vector<8x32xf32>
    %48 = arith.mulf %32, %40 : vector<8x32xf32>
    %49 = arith.addf %47, %48 : vector<8x32xf32>
    %50 = math.tanh %49 : vector<8x32xf32>
    %51 = arith.mulf %46, %50 : vector<8x32xf32>
    %52 = vector.shape_cast %22 : vector<8x1xi1> to vector<8x1xi1>
    %53 = vector.broadcast %52 : vector<8x1xi1> to vector<8x32xi1>
    %54 = arith.select %53, %51, %11 : vector<8x32xi1>, vector<8x32xf32>
    %55 = vector.shape_cast %22 : vector<8x1xi1> to vector<8x1xi1>
    %56 = vector.broadcast %55 : vector<8x1xi1> to vector<8x32xi1>
    %57 = arith.select %56, %49, %12 : vector<8x32xi1>, vector<8x32xf32>
    %cst_21 = arith.constant 0.000000e+00 : f32
    %58 = vector.shape_cast %22 : vector<8x1xi1> to vector<8x1xi1>
    %59 = vector.broadcast %58 : vector<8x1xi1> to vector<8x32xi1>
    %60 = vector.broadcast %cst_21 : f32 to vector<8x32xf32>
    %61 = arith.select %59, %51, %60 : vector<8x32xi1>, vector<8x32xf32>
    %62 = arith.truncf %61 : vector<8x32xf32> to vector<8x32xbf16>
    %63 = vector.extract_strided_slice %17 {offsets = [8, 0], sizes = [8, 128], strides = [1, 1]} : vector<16x128xbf16> to vector<8x128xbf16>
    %64 = vector.broadcast %19 : i32 to vector<8x1xi32>
    %65 = arith.cmpi slt, %64, %9 : vector<8x1xi32>
    %66 = arith.extf %63 : vector<8x128xbf16> to vector<8x128xf32>
    %67 = arith.truncf %13 : vector<8x32xf32> to vector<8x32xbf16>
    %cst_22 = arith.constant dense<0.000000e+00> : vector<8x128xf32>
    %68 = tpu.matmul %67, %6, %cst_22 {dimension_numbers = #tpu.dot_dimension_numbers<[1], [0], [0], [1], [0, 0, 1, 1], [], []>} : vector<8x32xbf16>, vector<32x128xbf16>, vector<8x128xf32> -> vector<8x128xf32>
    %69 = arith.addf %66, %68 : vector<8x128xf32>
    %70 = vector.extract_strided_slice %69 {offsets = [0, 0], sizes = [8, 32], strides = [1, 1]} : vector<8x128xf32> to vector<8x32xf32>
    %71 = arith.negf %70 : vector<8x32xf32>
    %72 = math.exp %71 : vector<8x32xf32>
    %cst_23 = arith.constant 1.000000e+00 : f32
    %73 = vector.broadcast %cst_23 : f32 to vector<8x32xf32>
    %74 = arith.addf %73, %72 : vector<8x32xf32>
    %75 = arith.divf %73, %74 : vector<8x32xf32>
    %76 = vector.extract_strided_slice %69 {offsets = [0, 32], sizes = [8, 32], strides = [1, 1]} : vector<8x128xf32> to vector<8x32xf32>
    %77 = arith.negf %76 : vector<8x32xf32>
    %78 = math.exp %77 : vector<8x32xf32>
    %cst_24 = arith.constant 1.000000e+00 : f32
    %79 = vector.broadcast %cst_24 : f32 to vector<8x32xf32>
    %80 = arith.addf %79, %78 : vector<8x32xf32>
    %81 = arith.divf %79, %80 : vector<8x32xf32>
    %82 = vector.extract_strided_slice %69 {offsets = [0, 64], sizes = [8, 32], strides = [1, 1]} : vector<8x128xf32> to vector<8x32xf32>
    %83 = math.tanh %82 : vector<8x32xf32>
    %84 = vector.extract_strided_slice %69 {offsets = [0, 96], sizes = [8, 32], strides = [1, 1]} : vector<8x128xf32> to vector<8x32xf32>
    %85 = arith.negf %84 : vector<8x32xf32>
    %86 = math.exp %85 : vector<8x32xf32>
    %cst_25 = arith.constant 1.000000e+00 : f32
    %87 = vector.broadcast %cst_25 : f32 to vector<8x32xf32>
    %88 = arith.addf %87, %86 : vector<8x32xf32>
    %89 = arith.divf %87, %88 : vector<8x32xf32>
    %90 = arith.mulf %81, %14 : vector<8x32xf32>
    %91 = arith.mulf %75, %83 : vector<8x32xf32>
    %92 = arith.addf %90, %91 : vector<8x32xf32>
    %93 = math.tanh %92 : vector<8x32xf32>
    %94 = arith.mulf %89, %93 : vector<8x32xf32>
    %95 = vector.shape_cast %65 : vector<8x1xi1> to vector<8x1xi1>
    %96 = vector.broadcast %95 : vector<8x1xi1> to vector<8x32xi1>
    %97 = arith.select %96, %94, %13 : vector<8x32xi1>, vector<8x32xf32>
    %98 = vector.shape_cast %65 : vector<8x1xi1> to vector<8x1xi1>
    %99 = vector.broadcast %98 : vector<8x1xi1> to vector<8x32xi1>
    %100 = arith.select %99, %92, %14 : vector<8x32xi1>, vector<8x32xf32>
    %cst_26 = arith.constant 0.000000e+00 : f32
    %101 = vector.shape_cast %65 : vector<8x1xi1> to vector<8x1xi1>
    %102 = vector.broadcast %101 : vector<8x1xi1> to vector<8x32xi1>
    %103 = vector.broadcast %cst_26 : f32 to vector<8x32xf32>
    %104 = arith.select %102, %94, %103 : vector<8x32xi1>, vector<8x32xf32>
    %105 = arith.truncf %104 : vector<8x32xf32> to vector<8x32xbf16>
    %106 = arith.index_cast %c0_i32_15 : i32 to index
    %c0_27 = arith.constant 0 : index
    %c0_28 = arith.constant 0 : index
    %107 = vector.load %arg4[%106, %c0_27, %c0_28] : memref<8x8x32xbf16, #tpu.memory_space<vmem>>, vector<1x8x32xbf16>
    %108 = vector.shape_cast %107 : vector<1x8x32xbf16> to vector<8x32xbf16>
    %109 = vector.shape_cast %62 : vector<8x32xbf16> to vector<1x8x32xbf16>
    tpu.vector_store %arg4[%106, %c0_27, %c0_28], %109 {strides = array<i32>} : memref<8x8x32xbf16, #tpu.memory_space<vmem>>, vector<1x8x32xbf16>,
    %110 = arith.index_cast %c0_i32_15 : i32 to index
    %c0_29 = arith.constant 0 : index
    %c0_30 = arith.constant 0 : index
    %111 = vector.load %arg5[%110, %c0_29, %c0_30] : memref<8x8x32xbf16, #tpu.memory_space<vmem>>, vector<1x8x32xbf16>
    %112 = vector.shape_cast %111 : vector<1x8x32xbf16> to vector<8x32xbf16>
    %113 = vector.shape_cast %105 : vector<8x32xbf16> to vector<1x8x32xbf16>
    tpu.vector_store %arg5[%110, %c0_29, %c0_30], %113 {strides = array<i32>} : memref<8x8x32xbf16, #tpu.memory_space<vmem>>, vector<1x8x32xbf16>,
    %c1_i32 = arith.constant 1 : i32
    %114 = arith.index_cast %c1_i32 : i32 to index
    %c0_31 = arith.constant 0 : index
    %c0_32 = arith.constant 0 : index
    %115 = vector.load %arg1[%114, %c0_31, %c0_32] : memref<8x16x128xbf16, #tpu.memory_space<vmem>>, vector<1x16x128xbf16>
    %116 = vector.shape_cast %115 : vector<1x16x128xbf16> to vector<16x128xbf16>
    %117 = arith.addi %10, %c1_i32 : i32
    %c7_i32_33 = arith.constant 7 : i32
    %118 = arith.subi %c7_i32_33, %117 : i32
    %119 = vector.extract_strided_slice %116 {offsets = [0, 0], sizes = [8, 128], strides = [1, 1]} : vector<16x128xbf16> to vector<8x128xbf16>
    %120 = vector.broadcast %117 : i32 to vector<8x1xi32>
    %121 = arith.cmpi slt, %120, %8 : vector<8x1xi32>
    %122 = arith.extf %119 : vector<8x128xbf16> to vector<8x128xf32>
    %123 = arith.truncf %54 : vector<8x32xf32> to vector<8x32xbf16>
    %cst_34 = arith.constant dense<0.000000e+00> : vector<8x128xf32>
    %124 = tpu.matmul %123, %4, %cst_34 {dimension_numbers = #tpu.dot_dimension_numbers<[1], [0], [0], [1], [0, 0, 1, 1], [], []>} : vector<8x32xbf16>, vector<32x128xbf16>, vector<8x128xf32> -> vector<8x128xf32>
    %125 = arith.addf %122, %124 : vector<8x128xf32>
    %126 = vector.extract_strided_slice %125 {offsets = [0, 0], sizes = [8, 32], strides = [1, 1]} : vector<8x128xf32> to vector<8x32xf32>
    %127 = arith.negf %126 : vector<8x32xf32>
    %128 = math.exp %127 : vector<8x32xf32>
    %cst_35 = arith.constant 1.000000e+00 : f32
    %129 = vector.broadcast %cst_35 : f32 to vector<8x32xf32>
    %130 = arith.addf %129, %128 : vector<8x32xf32>
    %131 = arith.divf %129, %130 : vector<8x32xf32>
    %132 = vector.extract_strided_slice %125 {offsets = [0, 32], sizes = [8, 32], strides = [1, 1]} : vector<8x128xf32> to vector<8x32xf32>
    %133 = arith.negf %132 : vector<8x32xf32>
    %134 = math.exp %133 : vector<8x32xf32>
    %cst_36 = arith.constant 1.000000e+00 : f32
    %135 = vector.broadcast %cst_36 : f32 to vector<8x32xf32>
    %136 = arith.addf %135, %134 : vector<8x32xf32>
    %137 = arith.divf %135, %136 : vector<8x32xf32>
    %138 = vector.extract_strided_slice %125 {offsets = [0, 64], sizes = [8, 32], strides = [1, 1]} : vector<8x128xf32> to vector<8x32xf32>
    %139 = math.tanh %138 : vector<8x32xf32>
    %140 = vector.extract_strided_slice %125 {offsets = [0, 96], sizes = [8, 32], strides = [1, 1]} : vector<8x128xf32> to vector<8x32xf32>
    %141 = arith.negf %140 : vector<8x32xf32>
    %142 = math.exp %141 : vector<8x32xf32>
    %cst_37 = arith.constant 1.000000e+00 : f32
    %143 = vector.broadcast %cst_37 : f32 to vector<8x32xf32>
    %144 = arith.addf %143, %142 : vector<8x32xf32>
    %145 = arith.divf %143, %144 : vector<8x32xf32>
    %146 = arith.mulf %137, %57 : vector<8x32xf32>
    %147 = arith.mulf %131, %139 : vector<8x32xf32>
    %148 = arith.addf %146, %147 : vector<8x32xf32>
    %149 = math.tanh %148 : vector<8x32xf32>
    %150 = arith.mulf %145, %149 : vector<8x32xf32>
    %151 = vector.shape_cast %121 : vector<8x1xi1> to vector<8x1xi1>
    %152 = vector.broadcast %151 : vector<8x1xi1> to vector<8x32xi1>
    %153 = arith.select %152, %150, %54 : vector<8x32xi1>, vector<8x32xf32>
    %154 = vector.shape_cast %121 : vector<8x1xi1> to vector<8x1xi1>
    %155 = vector.broadcast %154 : vector<8x1xi1> to vector<8x32xi1>
    %156 = arith.select %155, %148, %57 : vector<8x32xi1>, vector<8x32xf32>
    %cst_38 = arith.constant 0.000000e+00 : f32
    %157 = vector.shape_cast %121 : vector<8x1xi1> to vector<8x1xi1>
    %158 = vector.broadcast %157 : vector<8x1xi1> to vector<8x32xi1>
    %159 = vector.broadcast %cst_38 : f32 to vector<8x32xf32>
    %160 = arith.select %158, %150, %159 : vector<8x32xi1>, vector<8x32xf32>
    %161 = arith.truncf %160 : vector<8x32xf32> to vector<8x32xbf16>
    %162 = vector.extract_strided_slice %116 {offsets = [8, 0], sizes = [8, 128], strides = [1, 1]} : vector<16x128xbf16> to vector<8x128xbf16>
    %163 = vector.broadcast %118 : i32 to vector<8x1xi32>
    %164 = arith.cmpi slt, %163, %9 : vector<8x1xi32>
    %165 = arith.extf %162 : vector<8x128xbf16> to vector<8x128xf32>
    %166 = arith.truncf %97 : vector<8x32xf32> to vector<8x32xbf16>
    %cst_39 = arith.constant dense<0.000000e+00> : vector<8x128xf32>
    %167 = tpu.matmul %166, %6, %cst_39 {dimension_numbers = #tpu.dot_dimension_numbers<[1], [0], [0], [1], [0, 0, 1, 1], [], []>} : vector<8x32xbf16>, vector<32x128xbf16>, vector<8x128xf32> -> vector<8x128xf32>
    %168 = arith.addf %165, %167 : vector<8x128xf32>
    %169 = vector.extract_strided_slice %168 {offsets = [0, 0], sizes = [8, 32], strides = [1, 1]} : vector<8x128xf32> to vector<8x32xf32>
    %170 = arith.negf %169 : vector<8x32xf32>
    %171 = math.exp %170 : vector<8x32xf32>
    %cst_40 = arith.constant 1.000000e+00 : f32
    %172 = vector.broadcast %cst_40 : f32 to vector<8x32xf32>
    %173 = arith.addf %172, %171 : vector<8x32xf32>
    %174 = arith.divf %172, %173 : vector<8x32xf32>
    %175 = vector.extract_strided_slice %168 {offsets = [0, 32], sizes = [8, 32], strides = [1, 1]} : vector<8x128xf32> to vector<8x32xf32>
    %176 = arith.negf %175 : vector<8x32xf32>
    %177 = math.exp %176 : vector<8x32xf32>
    %cst_41 = arith.constant 1.000000e+00 : f32
    %178 = vector.broadcast %cst_41 : f32 to vector<8x32xf32>
    %179 = arith.addf %178, %177 : vector<8x32xf32>
    %180 = arith.divf %178, %179 : vector<8x32xf32>
    %181 = vector.extract_strided_slice %168 {offsets = [0, 64], sizes = [8, 32], strides = [1, 1]} : vector<8x128xf32> to vector<8x32xf32>
    %182 = math.tanh %181 : vector<8x32xf32>
    %183 = vector.extract_strided_slice %168 {offsets = [0, 96], sizes = [8, 32], strides = [1, 1]} : vector<8x128xf32> to vector<8x32xf32>
    %184 = arith.negf %183 : vector<8x32xf32>
    %185 = math.exp %184 : vector<8x32xf32>
    %cst_42 = arith.constant 1.000000e+00 : f32
    %186 = vector.broadcast %cst_42 : f32 to vector<8x32xf32>
    %187 = arith.addf %186, %185 : vector<8x32xf32>
    %188 = arith.divf %186, %187 : vector<8x32xf32>
    %189 = arith.mulf %180, %100 : vector<8x32xf32>
    %190 = arith.mulf %174, %182 : vector<8x32xf32>
    %191 = arith.addf %189, %190 : vector<8x32xf32>
    %192 = math.tanh %191 : vector<8x32xf32>
    %193 = arith.mulf %188, %192 : vector<8x32xf32>
    %194 = vector.shape_cast %164 : vector<8x1xi1> to vector<8x1xi1>
    %195 = vector.broadcast %194 : vector<8x1xi1> to vector<8x32xi1>
    %196 = arith.select %195, %193, %97 : vector<8x32xi1>, vector<8x32xf32>
    %197 = vector.shape_cast %164 : vector<8x1xi1> to vector<8x1xi1>
    %198 = vector.broadcast %197 : vector<8x1xi1> to vector<8x32xi1>
    %199 = arith.select %198, %191, %100 : vector<8x32xi1>, vector<8x32xf32>
    %cst_43 = arith.constant 0.000000e+00 : f32
    %200 = vector.shape_cast %164 : vector<8x1xi1> to vector<8x1xi1>
    %201 = vector.broadcast %200 : vector<8x1xi1> to vector<8x32xi1>
    %202 = vector.broadcast %cst_43 : f32 to vector<8x32xf32>
    %203 = arith.select %201, %193, %202 : vector<8x32xi1>, vector<8x32xf32>
    %204 = arith.truncf %203 : vector<8x32xf32> to vector<8x32xbf16>
    %205 = arith.index_cast %c1_i32 : i32 to index
    %c0_44 = arith.constant 0 : index
    %c0_45 = arith.constant 0 : index
    %206 = vector.load %arg4[%205, %c0_44, %c0_45] : memref<8x8x32xbf16, #tpu.memory_space<vmem>>, vector<1x8x32xbf16>
    %207 = vector.shape_cast %206 : vector<1x8x32xbf16> to vector<8x32xbf16>
    %208 = vector.shape_cast %161 : vector<8x32xbf16> to vector<1x8x32xbf16>
    tpu.vector_store %arg4[%205, %c0_44, %c0_45], %208 {strides = array<i32>} : memref<8x8x32xbf16, #tpu.memory_space<vmem>>, vector<1x8x32xbf16>,
    %209 = arith.index_cast %c1_i32 : i32 to index
    %c0_46 = arith.constant 0 : index
    %c0_47 = arith.constant 0 : index
    %210 = vector.load %arg5[%209, %c0_46, %c0_47] : memref<8x8x32xbf16, #tpu.memory_space<vmem>>, vector<1x8x32xbf16>
    %211 = vector.shape_cast %210 : vector<1x8x32xbf16> to vector<8x32xbf16>
    %212 = vector.shape_cast %204 : vector<8x32xbf16> to vector<1x8x32xbf16>
    tpu.vector_store %arg5[%209, %c0_46, %c0_47], %212 {strides = array<i32>} : memref<8x8x32xbf16, #tpu.memory_space<vmem>>, vector<1x8x32xbf16>,
    %c2_i32 = arith.constant 2 : i32
    %213 = arith.index_cast %c2_i32 : i32 to index
    %c0_48 = arith.constant 0 : index
    %c0_49 = arith.constant 0 : index
    %214 = vector.load %arg1[%213, %c0_48, %c0_49] : memref<8x16x128xbf16, #tpu.memory_space<vmem>>, vector<1x16x128xbf16>
    %215 = vector.shape_cast %214 : vector<1x16x128xbf16> to vector<16x128xbf16>
    %216 = arith.addi %10, %c2_i32 : i32
    %c7_i32_50 = arith.constant 7 : i32
    %217 = arith.subi %c7_i32_50, %216 : i32
    %218 = vector.extract_strided_slice %215 {offsets = [0, 0], sizes = [8, 128], strides = [1, 1]} : vector<16x128xbf16> to vector<8x128xbf16>
    %219 = vector.broadcast %216 : i32 to vector<8x1xi32>
    %220 = arith.cmpi slt, %219, %8 : vector<8x1xi32>
    %221 = arith.extf %218 : vector<8x128xbf16> to vector<8x128xf32>
    %222 = arith.truncf %153 : vector<8x32xf32> to vector<8x32xbf16>
    %cst_51 = arith.constant dense<0.000000e+00> : vector<8x128xf32>
    %223 = tpu.matmul %222, %4, %cst_51 {dimension_numbers = #tpu.dot_dimension_numbers<[1], [0], [0], [1], [0, 0, 1, 1], [], []>} : vector<8x32xbf16>, vector<32x128xbf16>, vector<8x128xf32> -> vector<8x128xf32>
    %224 = arith.addf %221, %223 : vector<8x128xf32>
    %225 = vector.extract_strided_slice %224 {offsets = [0, 0], sizes = [8, 32], strides = [1, 1]} : vector<8x128xf32> to vector<8x32xf32>
    %226 = arith.negf %225 : vector<8x32xf32>
    %227 = math.exp %226 : vector<8x32xf32>
    %cst_52 = arith.constant 1.000000e+00 : f32
    %228 = vector.broadcast %cst_52 : f32 to vector<8x32xf32>
    %229 = arith.addf %228, %227 : vector<8x32xf32>
    %230 = arith.divf %228, %229 : vector<8x32xf32>
    %231 = vector.extract_strided_slice %224 {offsets = [0, 32], sizes = [8, 32], strides = [1, 1]} : vector<8x128xf32> to vector<8x32xf32>
    %232 = arith.negf %231 : vector<8x32xf32>
    %233 = math.exp %232 : vector<8x32xf32>
    %cst_53 = arith.constant 1.000000e+00 : f32
    %234 = vector.broadcast %cst_53 : f32 to vector<8x32xf32>
    %235 = arith.addf %234, %233 : vector<8x32xf32>
    %236 = arith.divf %234, %235 : vector<8x32xf32>
    %237 = vector.extract_strided_slice %224 {offsets = [0, 64], sizes = [8, 32], strides = [1, 1]} : vector<8x128xf32> to vector<8x32xf32>
    %238 = math.tanh %237 : vector<8x32xf32>
    %239 = vector.extract_strided_slice %224 {offsets = [0, 96], sizes = [8, 32], strides = [1, 1]} : vector<8x128xf32> to vector<8x32xf32>
    %240 = arith.negf %239 : vector<8x32xf32>
    %241 = math.exp %240 : vector<8x32xf32>
    %cst_54 = arith.constant 1.000000e+00 : f32
    %242 = vector.broadcast %cst_54 : f32 to vector<8x32xf32>
    %243 = arith.addf %242, %241 : vector<8x32xf32>
    %244 = arith.divf %242, %243 : vector<8x32xf32>
    %245 = arith.mulf %236, %156 : vector<8x32xf32>
    %246 = arith.mulf %230, %238 : vector<8x32xf32>
    %247 = arith.addf %245, %246 : vector<8x32xf32>
    %248 = math.tanh %247 : vector<8x32xf32>
    %249 = arith.mulf %244, %248 : vector<8x32xf32>
    %250 = vector.shape_cast %220 : vector<8x1xi1> to vector<8x1xi1>
    %251 = vector.broadcast %250 : vector<8x1xi1> to vector<8x32xi1>
    %252 = arith.select %251, %249, %153 : vector<8x32xi1>, vector<8x32xf32>
    %253 = vector.shape_cast %220 : vector<8x1xi1> to vector<8x1xi1>
    %254 = vector.broadcast %253 : vector<8x1xi1> to vector<8x32xi1>
    %255 = arith.select %254, %247, %156 : vector<8x32xi1>, vector<8x32xf32>
    %cst_55 = arith.constant 0.000000e+00 : f32
    %256 = vector.shape_cast %220 : vector<8x1xi1> to vector<8x1xi1>
    %257 = vector.broadcast %256 : vector<8x1xi1> to vector<8x32xi1>
    %258 = vector.broadcast %cst_55 : f32 to vector<8x32xf32>
    %259 = arith.select %257, %249, %258 : vector<8x32xi1>, vector<8x32xf32>
    %260 = arith.truncf %259 : vector<8x32xf32> to vector<8x32xbf16>
    %261 = vector.extract_strided_slice %215 {offsets = [8, 0], sizes = [8, 128], strides = [1, 1]} : vector<16x128xbf16> to vector<8x128xbf16>
    %262 = vector.broadcast %217 : i32 to vector<8x1xi32>
    %263 = arith.cmpi slt, %262, %9 : vector<8x1xi32>
    %264 = arith.extf %261 : vector<8x128xbf16> to vector<8x128xf32>
    %265 = arith.truncf %196 : vector<8x32xf32> to vector<8x32xbf16>
    %cst_56 = arith.constant dense<0.000000e+00> : vector<8x128xf32>
    %266 = tpu.matmul %265, %6, %cst_56 {dimension_numbers = #tpu.dot_dimension_numbers<[1], [0], [0], [1], [0, 0, 1, 1], [], []>} : vector<8x32xbf16>, vector<32x128xbf16>, vector<8x128xf32> -> vector<8x128xf32>
    %267 = arith.addf %264, %266 : vector<8x128xf32>
    %268 = vector.extract_strided_slice %267 {offsets = [0, 0], sizes = [8, 32], strides = [1, 1]} : vector<8x128xf32> to vector<8x32xf32>
    %269 = arith.negf %268 : vector<8x32xf32>
    %270 = math.exp %269 : vector<8x32xf32>
    %cst_57 = arith.constant 1.000000e+00 : f32
    %271 = vector.broadcast %cst_57 : f32 to vector<8x32xf32>
    %272 = arith.addf %271, %270 : vector<8x32xf32>
    %273 = arith.divf %271, %272 : vector<8x32xf32>
    %274 = vector.extract_strided_slice %267 {offsets = [0, 32], sizes = [8, 32], strides = [1, 1]} : vector<8x128xf32> to vector<8x32xf32>
    %275 = arith.negf %274 : vector<8x32xf32>
    %276 = math.exp %275 : vector<8x32xf32>
    %cst_58 = arith.constant 1.000000e+00 : f32
    %277 = vector.broadcast %cst_58 : f32 to vector<8x32xf32>
    %278 = arith.addf %277, %276 : vector<8x32xf32>
    %279 = arith.divf %277, %278 : vector<8x32xf32>
    %280 = vector.extract_strided_slice %267 {offsets = [0, 64], sizes = [8, 32], strides = [1, 1]} : vector<8x128xf32> to vector<8x32xf32>
    %281 = math.tanh %280 : vector<8x32xf32>
    %282 = vector.extract_strided_slice %267 {offsets = [0, 96], sizes = [8, 32], strides = [1, 1]} : vector<8x128xf32> to vector<8x32xf32>
    %283 = arith.negf %282 : vector<8x32xf32>
    %284 = math.exp %283 : vector<8x32xf32>
    %cst_59 = arith.constant 1.000000e+00 : f32
    %285 = vector.broadcast %cst_59 : f32 to vector<8x32xf32>
    %286 = arith.addf %285, %284 : vector<8x32xf32>
    %287 = arith.divf %285, %286 : vector<8x32xf32>
    %288 = arith.mulf %279, %199 : vector<8x32xf32>
    %289 = arith.mulf %273, %281 : vector<8x32xf32>
    %290 = arith.addf %288, %289 : vector<8x32xf32>
    %291 = math.tanh %290 : vector<8x32xf32>
    %292 = arith.mulf %287, %291 : vector<8x32xf32>
    %293 = vector.shape_cast %263 : vector<8x1xi1> to vector<8x1xi1>
    %294 = vector.broadcast %293 : vector<8x1xi1> to vector<8x32xi1>
    %295 = arith.select %294, %292, %196 : vector<8x32xi1>, vector<8x32xf32>
    %296 = vector.shape_cast %263 : vector<8x1xi1> to vector<8x1xi1>
    %297 = vector.broadcast %296 : vector<8x1xi1> to vector<8x32xi1>
    %298 = arith.select %297, %290, %199 : vector<8x32xi1>, vector<8x32xf32>
    %cst_60 = arith.constant 0.000000e+00 : f32
    %299 = vector.shape_cast %263 : vector<8x1xi1> to vector<8x1xi1>
    %300 = vector.broadcast %299 : vector<8x1xi1> to vector<8x32xi1>
    %301 = vector.broadcast %cst_60 : f32 to vector<8x32xf32>
    %302 = arith.select %300, %292, %301 : vector<8x32xi1>, vector<8x32xf32>
    %303 = arith.truncf %302 : vector<8x32xf32> to vector<8x32xbf16>
    %304 = arith.index_cast %c2_i32 : i32 to index
    %c0_61 = arith.constant 0 : index
    %c0_62 = arith.constant 0 : index
    %305 = vector.load %arg4[%304, %c0_61, %c0_62] : memref<8x8x32xbf16, #tpu.memory_space<vmem>>, vector<1x8x32xbf16>
    %306 = vector.shape_cast %305 : vector<1x8x32xbf16> to vector<8x32xbf16>
    %307 = vector.shape_cast %260 : vector<8x32xbf16> to vector<1x8x32xbf16>
    tpu.vector_store %arg4[%304, %c0_61, %c0_62], %307 {strides = array<i32>} : memref<8x8x32xbf16, #tpu.memory_space<vmem>>, vector<1x8x32xbf16>,
    %308 = arith.index_cast %c2_i32 : i32 to index
    %c0_63 = arith.constant 0 : index
    %c0_64 = arith.constant 0 : index
    %309 = vector.load %arg5[%308, %c0_63, %c0_64] : memref<8x8x32xbf16, #tpu.memory_space<vmem>>, vector<1x8x32xbf16>
    %310 = vector.shape_cast %309 : vector<1x8x32xbf16> to vector<8x32xbf16>
    %311 = vector.shape_cast %303 : vector<8x32xbf16> to vector<1x8x32xbf16>
    tpu.vector_store %arg5[%308, %c0_63, %c0_64], %311 {strides = array<i32>} : memref<8x8x32xbf16, #tpu.memory_space<vmem>>, vector<1x8x32xbf16>,
    %c3_i32 = arith.constant 3 : i32
    %312 = arith.index_cast %c3_i32 : i32 to index
    %c0_65 = arith.constant 0 : index
    %c0_66 = arith.constant 0 : index
    %313 = vector.load %arg1[%312, %c0_65, %c0_66] : memref<8x16x128xbf16, #tpu.memory_space<vmem>>, vector<1x16x128xbf16>
    %314 = vector.shape_cast %313 : vector<1x16x128xbf16> to vector<16x128xbf16>
    %315 = arith.addi %10, %c3_i32 : i32
    %c7_i32_67 = arith.constant 7 : i32
    %316 = arith.subi %c7_i32_67, %315 : i32
    %317 = vector.extract_strided_slice %314 {offsets = [0, 0], sizes = [8, 128], strides = [1, 1]} : vector<16x128xbf16> to vector<8x128xbf16>
    %318 = vector.broadcast %315 : i32 to vector<8x1xi32>
    %319 = arith.cmpi slt, %318, %8 : vector<8x1xi32>
    %320 = arith.extf %317 : vector<8x128xbf16> to vector<8x128xf32>
    %321 = arith.truncf %252 : vector<8x32xf32> to vector<8x32xbf16>
    %cst_68 = arith.constant dense<0.000000e+00> : vector<8x128xf32>
    %322 = tpu.matmul %321, %4, %cst_68 {dimension_numbers = #tpu.dot_dimension_numbers<[1], [0], [0], [1], [0, 0, 1, 1], [], []>} : vector<8x32xbf16>, vector<32x128xbf16>, vector<8x128xf32> -> vector<8x128xf32>
    %323 = arith.addf %320, %322 : vector<8x128xf32>
    %324 = vector.extract_strided_slice %323 {offsets = [0, 0], sizes = [8, 32], strides = [1, 1]} : vector<8x128xf32> to vector<8x32xf32>
    %325 = arith.negf %324 : vector<8x32xf32>
    %326 = math.exp %325 : vector<8x32xf32>
    %cst_69 = arith.constant 1.000000e+00 : f32
    %327 = vector.broadcast %cst_69 : f32 to vector<8x32xf32>
    %328 = arith.addf %327, %326 : vector<8x32xf32>
    %329 = arith.divf %327, %328 : vector<8x32xf32>
    %330 = vector.extract_strided_slice %323 {offsets = [0, 32], sizes = [8, 32], strides = [1, 1]} : vector<8x128xf32> to vector<8x32xf32>
    %331 = arith.negf %330 : vector<8x32xf32>
    %332 = math.exp %331 : vector<8x32xf32>
    %cst_70 = arith.constant 1.000000e+00 : f32
    %333 = vector.broadcast %cst_70 : f32 to vector<8x32xf32>
    %334 = arith.addf %333, %332 : vector<8x32xf32>
    %335 = arith.divf %333, %334 : vector<8x32xf32>
    %336 = vector.extract_strided_slice %323 {offsets = [0, 64], sizes = [8, 32], strides = [1, 1]} : vector<8x128xf32> to vector<8x32xf32>
    %337 = math.tanh %336 : vector<8x32xf32>
    %338 = vector.extract_strided_slice %323 {offsets = [0, 96], sizes = [8, 32], strides = [1, 1]} : vector<8x128xf32> to vector<8x32xf32>
    %339 = arith.negf %338 : vector<8x32xf32>
    %340 = math.exp %339 : vector<8x32xf32>
    %cst_71 = arith.constant 1.000000e+00 : f32
    %341 = vector.broadcast %cst_71 : f32 to vector<8x32xf32>
    %342 = arith.addf %341, %340 : vector<8x32xf32>
    %343 = arith.divf %341, %342 : vector<8x32xf32>
    %344 = arith.mulf %335, %255 : vector<8x32xf32>
    %345 = arith.mulf %329, %337 : vector<8x32xf32>
    %346 = arith.addf %344, %345 : vector<8x32xf32>
    %347 = math.tanh %346 : vector<8x32xf32>
    %348 = arith.mulf %343, %347 : vector<8x32xf32>
    %349 = vector.shape_cast %319 : vector<8x1xi1> to vector<8x1xi1>
    %350 = vector.broadcast %349 : vector<8x1xi1> to vector<8x32xi1>
    %351 = arith.select %350, %348, %252 : vector<8x32xi1>, vector<8x32xf32>
    %352 = vector.shape_cast %319 : vector<8x1xi1> to vector<8x1xi1>
    %353 = vector.broadcast %352 : vector<8x1xi1> to vector<8x32xi1>
    %354 = arith.select %353, %346, %255 : vector<8x32xi1>, vector<8x32xf32>
    %cst_72 = arith.constant 0.000000e+00 : f32
    %355 = vector.shape_cast %319 : vector<8x1xi1> to vector<8x1xi1>
    %356 = vector.broadcast %355 : vector<8x1xi1> to vector<8x32xi1>
    %357 = vector.broadcast %cst_72 : f32 to vector<8x32xf32>
    %358 = arith.select %356, %348, %357 : vector<8x32xi1>, vector<8x32xf32>
    %359 = arith.truncf %358 : vector<8x32xf32> to vector<8x32xbf16>
    %360 = vector.extract_strided_slice %314 {offsets = [8, 0], sizes = [8, 128], strides = [1, 1]} : vector<16x128xbf16> to vector<8x128xbf16>
    %361 = vector.broadcast %316 : i32 to vector<8x1xi32>
    %362 = arith.cmpi slt, %361, %9 : vector<8x1xi32>
    %363 = arith.extf %360 : vector<8x128xbf16> to vector<8x128xf32>
    %364 = arith.truncf %295 : vector<8x32xf32> to vector<8x32xbf16>
    %cst_73 = arith.constant dense<0.000000e+00> : vector<8x128xf32>
    %365 = tpu.matmul %364, %6, %cst_73 {dimension_numbers = #tpu.dot_dimension_numbers<[1], [0], [0], [1], [0, 0, 1, 1], [], []>} : vector<8x32xbf16>, vector<32x128xbf16>, vector<8x128xf32> -> vector<8x128xf32>
    %366 = arith.addf %363, %365 : vector<8x128xf32>
    %367 = vector.extract_strided_slice %366 {offsets = [0, 0], sizes = [8, 32], strides = [1, 1]} : vector<8x128xf32> to vector<8x32xf32>
    %368 = arith.negf %367 : vector<8x32xf32>
    %369 = math.exp %368 : vector<8x32xf32>
    %cst_74 = arith.constant 1.000000e+00 : f32
    %370 = vector.broadcast %cst_74 : f32 to vector<8x32xf32>
    %371 = arith.addf %370, %369 : vector<8x32xf32>
    %372 = arith.divf %370, %371 : vector<8x32xf32>
    %373 = vector.extract_strided_slice %366 {offsets = [0, 32], sizes = [8, 32], strides = [1, 1]} : vector<8x128xf32> to vector<8x32xf32>
    %374 = arith.negf %373 : vector<8x32xf32>
    %375 = math.exp %374 : vector<8x32xf32>
    %cst_75 = arith.constant 1.000000e+00 : f32
    %376 = vector.broadcast %cst_75 : f32 to vector<8x32xf32>
    %377 = arith.addf %376, %375 : vector<8x32xf32>
    %378 = arith.divf %376, %377 : vector<8x32xf32>
    %379 = vector.extract_strided_slice %366 {offsets = [0, 64], sizes = [8, 32], strides = [1, 1]} : vector<8x128xf32> to vector<8x32xf32>
    %380 = math.tanh %379 : vector<8x32xf32>
    %381 = vector.extract_strided_slice %366 {offsets = [0, 96], sizes = [8, 32], strides = [1, 1]} : vector<8x128xf32> to vector<8x32xf32>
    %382 = arith.negf %381 : vector<8x32xf32>
    %383 = math.exp %382 : vector<8x32xf32>
    %cst_76 = arith.constant 1.000000e+00 : f32
    %384 = vector.broadcast %cst_76 : f32 to vector<8x32xf32>
    %385 = arith.addf %384, %383 : vector<8x32xf32>
    %386 = arith.divf %384, %385 : vector<8x32xf32>
    %387 = arith.mulf %378, %298 : vector<8x32xf32>
    %388 = arith.mulf %372, %380 : vector<8x32xf32>
    %389 = arith.addf %387, %388 : vector<8x32xf32>
    %390 = math.tanh %389 : vector<8x32xf32>
    %391 = arith.mulf %386, %390 : vector<8x32xf32>
    %392 = vector.shape_cast %362 : vector<8x1xi1> to vector<8x1xi1>
    %393 = vector.broadcast %392 : vector<8x1xi1> to vector<8x32xi1>
    %394 = arith.select %393, %391, %295 : vector<8x32xi1>, vector<8x32xf32>
    %395 = vector.shape_cast %362 : vector<8x1xi1> to vector<8x1xi1>
    %396 = vector.broadcast %395 : vector<8x1xi1> to vector<8x32xi1>
    %397 = arith.select %396, %389, %298 : vector<8x32xi1>, vector<8x32xf32>
    %cst_77 = arith.constant 0.000000e+00 : f32
    %398 = vector.shape_cast %362 : vector<8x1xi1> to vector<8x1xi1>
    %399 = vector.broadcast %398 : vector<8x1xi1> to vector<8x32xi1>
    %400 = vector.broadcast %cst_77 : f32 to vector<8x32xf32>
    %401 = arith.select %399, %391, %400 : vector<8x32xi1>, vector<8x32xf32>
    %402 = arith.truncf %401 : vector<8x32xf32> to vector<8x32xbf16>
    %403 = arith.index_cast %c3_i32 : i32 to index
    %c0_78 = arith.constant 0 : index
    %c0_79 = arith.constant 0 : index
    %404 = vector.load %arg4[%403, %c0_78, %c0_79] : memref<8x8x32xbf16, #tpu.memory_space<vmem>>, vector<1x8x32xbf16>
    %405 = vector.shape_cast %404 : vector<1x8x32xbf16> to vector<8x32xbf16>
    %406 = vector.shape_cast %359 : vector<8x32xbf16> to vector<1x8x32xbf16>
    tpu.vector_store %arg4[%403, %c0_78, %c0_79], %406 {strides = array<i32>} : memref<8x8x32xbf16, #tpu.memory_space<vmem>>, vector<1x8x32xbf16>,
    %407 = arith.index_cast %c3_i32 : i32 to index
    %c0_80 = arith.constant 0 : index
    %c0_81 = arith.constant 0 : index
    %408 = vector.load %arg5[%407, %c0_80, %c0_81] : memref<8x8x32xbf16, #tpu.memory_space<vmem>>, vector<1x8x32xbf16>
    %409 = vector.shape_cast %408 : vector<1x8x32xbf16> to vector<8x32xbf16>
    %410 = vector.shape_cast %402 : vector<8x32xbf16> to vector<1x8x32xbf16>
    tpu.vector_store %arg5[%407, %c0_80, %c0_81], %410 {strides = array<i32>} : memref<8x8x32xbf16, #tpu.memory_space<vmem>>, vector<1x8x32xbf16>,
    %c4_i32 = arith.constant 4 : i32
    %411 = arith.index_cast %c4_i32 : i32 to index
    %c0_82 = arith.constant 0 : index
    %c0_83 = arith.constant 0 : index
    %412 = vector.load %arg1[%411, %c0_82, %c0_83] : memref<8x16x128xbf16, #tpu.memory_space<vmem>>, vector<1x16x128xbf16>
    %413 = vector.shape_cast %412 : vector<1x16x128xbf16> to vector<16x128xbf16>
    %414 = arith.addi %10, %c4_i32 : i32
    %c7_i32_84 = arith.constant 7 : i32
    %415 = arith.subi %c7_i32_84, %414 : i32
    %416 = vector.extract_strided_slice %413 {offsets = [0, 0], sizes = [8, 128], strides = [1, 1]} : vector<16x128xbf16> to vector<8x128xbf16>
    %417 = vector.broadcast %414 : i32 to vector<8x1xi32>
    %418 = arith.cmpi slt, %417, %8 : vector<8x1xi32>
    %419 = arith.extf %416 : vector<8x128xbf16> to vector<8x128xf32>
    %420 = arith.truncf %351 : vector<8x32xf32> to vector<8x32xbf16>
    %cst_85 = arith.constant dense<0.000000e+00> : vector<8x128xf32>
    %421 = tpu.matmul %420, %4, %cst_85 {dimension_numbers = #tpu.dot_dimension_numbers<[1], [0], [0], [1], [0, 0, 1, 1], [], []>} : vector<8x32xbf16>, vector<32x128xbf16>, vector<8x128xf32> -> vector<8x128xf32>
    %422 = arith.addf %419, %421 : vector<8x128xf32>
    %423 = vector.extract_strided_slice %422 {offsets = [0, 0], sizes = [8, 32], strides = [1, 1]} : vector<8x128xf32> to vector<8x32xf32>
    %424 = arith.negf %423 : vector<8x32xf32>
    %425 = math.exp %424 : vector<8x32xf32>
    %cst_86 = arith.constant 1.000000e+00 : f32
    %426 = vector.broadcast %cst_86 : f32 to vector<8x32xf32>
    %427 = arith.addf %426, %425 : vector<8x32xf32>
    %428 = arith.divf %426, %427 : vector<8x32xf32>
    %429 = vector.extract_strided_slice %422 {offsets = [0, 32], sizes = [8, 32], strides = [1, 1]} : vector<8x128xf32> to vector<8x32xf32>
    %430 = arith.negf %429 : vector<8x32xf32>
    %431 = math.exp %430 : vector<8x32xf32>
    %cst_87 = arith.constant 1.000000e+00 : f32
    %432 = vector.broadcast %cst_87 : f32 to vector<8x32xf32>
    %433 = arith.addf %432, %431 : vector<8x32xf32>
    %434 = arith.divf %432, %433 : vector<8x32xf32>
    %435 = vector.extract_strided_slice %422 {offsets = [0, 64], sizes = [8, 32], strides = [1, 1]} : vector<8x128xf32> to vector<8x32xf32>
    %436 = math.tanh %435 : vector<8x32xf32>
    %437 = vector.extract_strided_slice %422 {offsets = [0, 96], sizes = [8, 32], strides = [1, 1]} : vector<8x128xf32> to vector<8x32xf32>
    %438 = arith.negf %437 : vector<8x32xf32>
    %439 = math.exp %438 : vector<8x32xf32>
    %cst_88 = arith.constant 1.000000e+00 : f32
    %440 = vector.broadcast %cst_88 : f32 to vector<8x32xf32>
    %441 = arith.addf %440, %439 : vector<8x32xf32>
    %442 = arith.divf %440, %441 : vector<8x32xf32>
    %443 = arith.mulf %434, %354 : vector<8x32xf32>
    %444 = arith.mulf %428, %436 : vector<8x32xf32>
    %445 = arith.addf %443, %444 : vector<8x32xf32>
    %446 = math.tanh %445 : vector<8x32xf32>
    %447 = arith.mulf %442, %446 : vector<8x32xf32>
    %448 = vector.shape_cast %418 : vector<8x1xi1> to vector<8x1xi1>
    %449 = vector.broadcast %448 : vector<8x1xi1> to vector<8x32xi1>
    %450 = arith.select %449, %447, %351 : vector<8x32xi1>, vector<8x32xf32>
    %451 = vector.shape_cast %418 : vector<8x1xi1> to vector<8x1xi1>
    %452 = vector.broadcast %451 : vector<8x1xi1> to vector<8x32xi1>
    %453 = arith.select %452, %445, %354 : vector<8x32xi1>, vector<8x32xf32>
    %cst_89 = arith.constant 0.000000e+00 : f32
    %454 = vector.shape_cast %418 : vector<8x1xi1> to vector<8x1xi1>
    %455 = vector.broadcast %454 : vector<8x1xi1> to vector<8x32xi1>
    %456 = vector.broadcast %cst_89 : f32 to vector<8x32xf32>
    %457 = arith.select %455, %447, %456 : vector<8x32xi1>, vector<8x32xf32>
    %458 = arith.truncf %457 : vector<8x32xf32> to vector<8x32xbf16>
    %459 = vector.extract_strided_slice %413 {offsets = [8, 0], sizes = [8, 128], strides = [1, 1]} : vector<16x128xbf16> to vector<8x128xbf16>
    %460 = vector.broadcast %415 : i32 to vector<8x1xi32>
    %461 = arith.cmpi slt, %460, %9 : vector<8x1xi32>
    %462 = arith.extf %459 : vector<8x128xbf16> to vector<8x128xf32>
    %463 = arith.truncf %394 : vector<8x32xf32> to vector<8x32xbf16>
    %cst_90 = arith.constant dense<0.000000e+00> : vector<8x128xf32>
    %464 = tpu.matmul %463, %6, %cst_90 {dimension_numbers = #tpu.dot_dimension_numbers<[1], [0], [0], [1], [0, 0, 1, 1], [], []>} : vector<8x32xbf16>, vector<32x128xbf16>, vector<8x128xf32> -> vector<8x128xf32>
    %465 = arith.addf %462, %464 : vector<8x128xf32>
    %466 = vector.extract_strided_slice %465 {offsets = [0, 0], sizes = [8, 32], strides = [1, 1]} : vector<8x128xf32> to vector<8x32xf32>
    %467 = arith.negf %466 : vector<8x32xf32>
    %468 = math.exp %467 : vector<8x32xf32>
    %cst_91 = arith.constant 1.000000e+00 : f32
    %469 = vector.broadcast %cst_91 : f32 to vector<8x32xf32>
    %470 = arith.addf %469, %468 : vector<8x32xf32>
    %471 = arith.divf %469, %470 : vector<8x32xf32>
    %472 = vector.extract_strided_slice %465 {offsets = [0, 32], sizes = [8, 32], strides = [1, 1]} : vector<8x128xf32> to vector<8x32xf32>
    %473 = arith.negf %472 : vector<8x32xf32>
    %474 = math.exp %473 : vector<8x32xf32>
    %cst_92 = arith.constant 1.000000e+00 : f32
    %475 = vector.broadcast %cst_92 : f32 to vector<8x32xf32>
    %476 = arith.addf %475, %474 : vector<8x32xf32>
    %477 = arith.divf %475, %476 : vector<8x32xf32>
    %478 = vector.extract_strided_slice %465 {offsets = [0, 64], sizes = [8, 32], strides = [1, 1]} : vector<8x128xf32> to vector<8x32xf32>
    %479 = math.tanh %478 : vector<8x32xf32>
    %480 = vector.extract_strided_slice %465 {offsets = [0, 96], sizes = [8, 32], strides = [1, 1]} : vector<8x128xf32> to vector<8x32xf32>
    %481 = arith.negf %480 : vector<8x32xf32>
    %482 = math.exp %481 : vector<8x32xf32>
    %cst_93 = arith.constant 1.000000e+00 : f32
    %483 = vector.broadcast %cst_93 : f32 to vector<8x32xf32>
    %484 = arith.addf %483, %482 : vector<8x32xf32>
    %485 = arith.divf %483, %484 : vector<8x32xf32>
    %486 = arith.mulf %477, %397 : vector<8x32xf32>
    %487 = arith.mulf %471, %479 : vector<8x32xf32>
    %488 = arith.addf %486, %487 : vector<8x32xf32>
    %489 = math.tanh %488 : vector<8x32xf32>
    %490 = arith.mulf %485, %489 : vector<8x32xf32>
    %491 = vector.shape_cast %461 : vector<8x1xi1> to vector<8x1xi1>
    %492 = vector.broadcast %491 : vector<8x1xi1> to vector<8x32xi1>
    %493 = arith.select %492, %490, %394 : vector<8x32xi1>, vector<8x32xf32>
    %494 = vector.shape_cast %461 : vector<8x1xi1> to vector<8x1xi1>
    %495 = vector.broadcast %494 : vector<8x1xi1> to vector<8x32xi1>
    %496 = arith.select %495, %488, %397 : vector<8x32xi1>, vector<8x32xf32>
    %cst_94 = arith.constant 0.000000e+00 : f32
    %497 = vector.shape_cast %461 : vector<8x1xi1> to vector<8x1xi1>
    %498 = vector.broadcast %497 : vector<8x1xi1> to vector<8x32xi1>
    %499 = vector.broadcast %cst_94 : f32 to vector<8x32xf32>
    %500 = arith.select %498, %490, %499 : vector<8x32xi1>, vector<8x32xf32>
    %501 = arith.truncf %500 : vector<8x32xf32> to vector<8x32xbf16>
    %502 = arith.index_cast %c4_i32 : i32 to index
    %c0_95 = arith.constant 0 : index
    %c0_96 = arith.constant 0 : index
    %503 = vector.load %arg4[%502, %c0_95, %c0_96] : memref<8x8x32xbf16, #tpu.memory_space<vmem>>, vector<1x8x32xbf16>
    %504 = vector.shape_cast %503 : vector<1x8x32xbf16> to vector<8x32xbf16>
    %505 = vector.shape_cast %458 : vector<8x32xbf16> to vector<1x8x32xbf16>
    tpu.vector_store %arg4[%502, %c0_95, %c0_96], %505 {strides = array<i32>} : memref<8x8x32xbf16, #tpu.memory_space<vmem>>, vector<1x8x32xbf16>,
    %506 = arith.index_cast %c4_i32 : i32 to index
    %c0_97 = arith.constant 0 : index
    %c0_98 = arith.constant 0 : index
    %507 = vector.load %arg5[%506, %c0_97, %c0_98] : memref<8x8x32xbf16, #tpu.memory_space<vmem>>, vector<1x8x32xbf16>
    %508 = vector.shape_cast %507 : vector<1x8x32xbf16> to vector<8x32xbf16>
    %509 = vector.shape_cast %501 : vector<8x32xbf16> to vector<1x8x32xbf16>
    tpu.vector_store %arg5[%506, %c0_97, %c0_98], %509 {strides = array<i32>} : memref<8x8x32xbf16, #tpu.memory_space<vmem>>, vector<1x8x32xbf16>,
    %c5_i32 = arith.constant 5 : i32
    %510 = arith.index_cast %c5_i32 : i32 to index
    %c0_99 = arith.constant 0 : index
    %c0_100 = arith.constant 0 : index
    %511 = vector.load %arg1[%510, %c0_99, %c0_100] : memref<8x16x128xbf16, #tpu.memory_space<vmem>>, vector<1x16x128xbf16>
    %512 = vector.shape_cast %511 : vector<1x16x128xbf16> to vector<16x128xbf16>
    %513 = arith.addi %10, %c5_i32 : i32
    %c7_i32_101 = arith.constant 7 : i32
    %514 = arith.subi %c7_i32_101, %513 : i32
    %515 = vector.extract_strided_slice %512 {offsets = [0, 0], sizes = [8, 128], strides = [1, 1]} : vector<16x128xbf16> to vector<8x128xbf16>
    %516 = vector.broadcast %513 : i32 to vector<8x1xi32>
    %517 = arith.cmpi slt, %516, %8 : vector<8x1xi32>
    %518 = arith.extf %515 : vector<8x128xbf16> to vector<8x128xf32>
    %519 = arith.truncf %450 : vector<8x32xf32> to vector<8x32xbf16>
    %cst_102 = arith.constant dense<0.000000e+00> : vector<8x128xf32>
    %520 = tpu.matmul %519, %4, %cst_102 {dimension_numbers = #tpu.dot_dimension_numbers<[1], [0], [0], [1], [0, 0, 1, 1], [], []>} : vector<8x32xbf16>, vector<32x128xbf16>, vector<8x128xf32> -> vector<8x128xf32>
    %521 = arith.addf %518, %520 : vector<8x128xf32>
    %522 = vector.extract_strided_slice %521 {offsets = [0, 0], sizes = [8, 32], strides = [1, 1]} : vector<8x128xf32> to vector<8x32xf32>
    %523 = arith.negf %522 : vector<8x32xf32>
    %524 = math.exp %523 : vector<8x32xf32>
    %cst_103 = arith.constant 1.000000e+00 : f32
    %525 = vector.broadcast %cst_103 : f32 to vector<8x32xf32>
    %526 = arith.addf %525, %524 : vector<8x32xf32>
    %527 = arith.divf %525, %526 : vector<8x32xf32>
    %528 = vector.extract_strided_slice %521 {offsets = [0, 32], sizes = [8, 32], strides = [1, 1]} : vector<8x128xf32> to vector<8x32xf32>
    %529 = arith.negf %528 : vector<8x32xf32>
    %530 = math.exp %529 : vector<8x32xf32>
    %cst_104 = arith.constant 1.000000e+00 : f32
    %531 = vector.broadcast %cst_104 : f32 to vector<8x32xf32>
    %532 = arith.addf %531, %530 : vector<8x32xf32>
    %533 = arith.divf %531, %532 : vector<8x32xf32>
    %534 = vector.extract_strided_slice %521 {offsets = [0, 64], sizes = [8, 32], strides = [1, 1]} : vector<8x128xf32> to vector<8x32xf32>
    %535 = math.tanh %534 : vector<8x32xf32>
    %536 = vector.extract_strided_slice %521 {offsets = [0, 96], sizes = [8, 32], strides = [1, 1]} : vector<8x128xf32> to vector<8x32xf32>
    %537 = arith.negf %536 : vector<8x32xf32>
    %538 = math.exp %537 : vector<8x32xf32>
    %cst_105 = arith.constant 1.000000e+00 : f32
    %539 = vector.broadcast %cst_105 : f32 to vector<8x32xf32>
    %540 = arith.addf %539, %538 : vector<8x32xf32>
    %541 = arith.divf %539, %540 : vector<8x32xf32>
    %542 = arith.mulf %533, %453 : vector<8x32xf32>
    %543 = arith.mulf %527, %535 : vector<8x32xf32>
    %544 = arith.addf %542, %543 : vector<8x32xf32>
    %545 = math.tanh %544 : vector<8x32xf32>
    %546 = arith.mulf %541, %545 : vector<8x32xf32>
    %547 = vector.shape_cast %517 : vector<8x1xi1> to vector<8x1xi1>
    %548 = vector.broadcast %547 : vector<8x1xi1> to vector<8x32xi1>
    %549 = arith.select %548, %546, %450 : vector<8x32xi1>, vector<8x32xf32>
    %550 = vector.shape_cast %517 : vector<8x1xi1> to vector<8x1xi1>
    %551 = vector.broadcast %550 : vector<8x1xi1> to vector<8x32xi1>
    %552 = arith.select %551, %544, %453 : vector<8x32xi1>, vector<8x32xf32>
    %cst_106 = arith.constant 0.000000e+00 : f32
    %553 = vector.shape_cast %517 : vector<8x1xi1> to vector<8x1xi1>
    %554 = vector.broadcast %553 : vector<8x1xi1> to vector<8x32xi1>
    %555 = vector.broadcast %cst_106 : f32 to vector<8x32xf32>
    %556 = arith.select %554, %546, %555 : vector<8x32xi1>, vector<8x32xf32>
    %557 = arith.truncf %556 : vector<8x32xf32> to vector<8x32xbf16>
    %558 = vector.extract_strided_slice %512 {offsets = [8, 0], sizes = [8, 128], strides = [1, 1]} : vector<16x128xbf16> to vector<8x128xbf16>
    %559 = vector.broadcast %514 : i32 to vector<8x1xi32>
    %560 = arith.cmpi slt, %559, %9 : vector<8x1xi32>
    %561 = arith.extf %558 : vector<8x128xbf16> to vector<8x128xf32>
    %562 = arith.truncf %493 : vector<8x32xf32> to vector<8x32xbf16>
    %cst_107 = arith.constant dense<0.000000e+00> : vector<8x128xf32>
    %563 = tpu.matmul %562, %6, %cst_107 {dimension_numbers = #tpu.dot_dimension_numbers<[1], [0], [0], [1], [0, 0, 1, 1], [], []>} : vector<8x32xbf16>, vector<32x128xbf16>, vector<8x128xf32> -> vector<8x128xf32>
    %564 = arith.addf %561, %563 : vector<8x128xf32>
    %565 = vector.extract_strided_slice %564 {offsets = [0, 0], sizes = [8, 32], strides = [1, 1]} : vector<8x128xf32> to vector<8x32xf32>
    %566 = arith.negf %565 : vector<8x32xf32>
    %567 = math.exp %566 : vector<8x32xf32>
    %cst_108 = arith.constant 1.000000e+00 : f32
    %568 = vector.broadcast %cst_108 : f32 to vector<8x32xf32>
    %569 = arith.addf %568, %567 : vector<8x32xf32>
    %570 = arith.divf %568, %569 : vector<8x32xf32>
    %571 = vector.extract_strided_slice %564 {offsets = [0, 32], sizes = [8, 32], strides = [1, 1]} : vector<8x128xf32> to vector<8x32xf32>
    %572 = arith.negf %571 : vector<8x32xf32>
    %573 = math.exp %572 : vector<8x32xf32>
    %cst_109 = arith.constant 1.000000e+00 : f32
    %574 = vector.broadcast %cst_109 : f32 to vector<8x32xf32>
    %575 = arith.addf %574, %573 : vector<8x32xf32>
    %576 = arith.divf %574, %575 : vector<8x32xf32>
    %577 = vector.extract_strided_slice %564 {offsets = [0, 64], sizes = [8, 32], strides = [1, 1]} : vector<8x128xf32> to vector<8x32xf32>
    %578 = math.tanh %577 : vector<8x32xf32>
    %579 = vector.extract_strided_slice %564 {offsets = [0, 96], sizes = [8, 32], strides = [1, 1]} : vector<8x128xf32> to vector<8x32xf32>
    %580 = arith.negf %579 : vector<8x32xf32>
    %581 = math.exp %580 : vector<8x32xf32>
    %cst_110 = arith.constant 1.000000e+00 : f32
    %582 = vector.broadcast %cst_110 : f32 to vector<8x32xf32>
    %583 = arith.addf %582, %581 : vector<8x32xf32>
    %584 = arith.divf %582, %583 : vector<8x32xf32>
    %585 = arith.mulf %576, %496 : vector<8x32xf32>
    %586 = arith.mulf %570, %578 : vector<8x32xf32>
    %587 = arith.addf %585, %586 : vector<8x32xf32>
    %588 = math.tanh %587 : vector<8x32xf32>
    %589 = arith.mulf %584, %588 : vector<8x32xf32>
    %590 = vector.shape_cast %560 : vector<8x1xi1> to vector<8x1xi1>
    %591 = vector.broadcast %590 : vector<8x1xi1> to vector<8x32xi1>
    %592 = arith.select %591, %589, %493 : vector<8x32xi1>, vector<8x32xf32>
    %593 = vector.shape_cast %560 : vector<8x1xi1> to vector<8x1xi1>
    %594 = vector.broadcast %593 : vector<8x1xi1> to vector<8x32xi1>
    %595 = arith.select %594, %587, %496 : vector<8x32xi1>, vector<8x32xf32>
    %cst_111 = arith.constant 0.000000e+00 : f32
    %596 = vector.shape_cast %560 : vector<8x1xi1> to vector<8x1xi1>
    %597 = vector.broadcast %596 : vector<8x1xi1> to vector<8x32xi1>
    %598 = vector.broadcast %cst_111 : f32 to vector<8x32xf32>
    %599 = arith.select %597, %589, %598 : vector<8x32xi1>, vector<8x32xf32>
    %600 = arith.truncf %599 : vector<8x32xf32> to vector<8x32xbf16>
    %601 = arith.index_cast %c5_i32 : i32 to index
    %c0_112 = arith.constant 0 : index
    %c0_113 = arith.constant 0 : index
    %602 = vector.load %arg4[%601, %c0_112, %c0_113] : memref<8x8x32xbf16, #tpu.memory_space<vmem>>, vector<1x8x32xbf16>
    %603 = vector.shape_cast %602 : vector<1x8x32xbf16> to vector<8x32xbf16>
    %604 = vector.shape_cast %557 : vector<8x32xbf16> to vector<1x8x32xbf16>
    tpu.vector_store %arg4[%601, %c0_112, %c0_113], %604 {strides = array<i32>} : memref<8x8x32xbf16, #tpu.memory_space<vmem>>, vector<1x8x32xbf16>,
    %605 = arith.index_cast %c5_i32 : i32 to index
    %c0_114 = arith.constant 0 : index
    %c0_115 = arith.constant 0 : index
    %606 = vector.load %arg5[%605, %c0_114, %c0_115] : memref<8x8x32xbf16, #tpu.memory_space<vmem>>, vector<1x8x32xbf16>
    %607 = vector.shape_cast %606 : vector<1x8x32xbf16> to vector<8x32xbf16>
    %608 = vector.shape_cast %600 : vector<8x32xbf16> to vector<1x8x32xbf16>
    tpu.vector_store %arg5[%605, %c0_114, %c0_115], %608 {strides = array<i32>} : memref<8x8x32xbf16, #tpu.memory_space<vmem>>, vector<1x8x32xbf16>,
    %c6_i32 = arith.constant 6 : i32
    %609 = arith.index_cast %c6_i32 : i32 to index
    %c0_116 = arith.constant 0 : index
    %c0_117 = arith.constant 0 : index
    %610 = vector.load %arg1[%609, %c0_116, %c0_117] : memref<8x16x128xbf16, #tpu.memory_space<vmem>>, vector<1x16x128xbf16>
    %611 = vector.shape_cast %610 : vector<1x16x128xbf16> to vector<16x128xbf16>
    %612 = arith.addi %10, %c6_i32 : i32
    %c7_i32_118 = arith.constant 7 : i32
    %613 = arith.subi %c7_i32_118, %612 : i32
    %614 = vector.extract_strided_slice %611 {offsets = [0, 0], sizes = [8, 128], strides = [1, 1]} : vector<16x128xbf16> to vector<8x128xbf16>
    %615 = vector.broadcast %612 : i32 to vector<8x1xi32>
    %616 = arith.cmpi slt, %615, %8 : vector<8x1xi32>
    %617 = arith.extf %614 : vector<8x128xbf16> to vector<8x128xf32>
    %618 = arith.truncf %549 : vector<8x32xf32> to vector<8x32xbf16>
    %cst_119 = arith.constant dense<0.000000e+00> : vector<8x128xf32>
    %619 = tpu.matmul %618, %4, %cst_119 {dimension_numbers = #tpu.dot_dimension_numbers<[1], [0], [0], [1], [0, 0, 1, 1], [], []>} : vector<8x32xbf16>, vector<32x128xbf16>, vector<8x128xf32> -> vector<8x128xf32>
    %620 = arith.addf %617, %619 : vector<8x128xf32>
    %621 = vector.extract_strided_slice %620 {offsets = [0, 0], sizes = [8, 32], strides = [1, 1]} : vector<8x128xf32> to vector<8x32xf32>
    %622 = arith.negf %621 : vector<8x32xf32>
    %623 = math.exp %622 : vector<8x32xf32>
    %cst_120 = arith.constant 1.000000e+00 : f32
    %624 = vector.broadcast %cst_120 : f32 to vector<8x32xf32>
    %625 = arith.addf %624, %623 : vector<8x32xf32>
    %626 = arith.divf %624, %625 : vector<8x32xf32>
    %627 = vector.extract_strided_slice %620 {offsets = [0, 32], sizes = [8, 32], strides = [1, 1]} : vector<8x128xf32> to vector<8x32xf32>
    %628 = arith.negf %627 : vector<8x32xf32>
    %629 = math.exp %628 : vector<8x32xf32>
    %cst_121 = arith.constant 1.000000e+00 : f32
    %630 = vector.broadcast %cst_121 : f32 to vector<8x32xf32>
    %631 = arith.addf %630, %629 : vector<8x32xf32>
    %632 = arith.divf %630, %631 : vector<8x32xf32>
    %633 = vector.extract_strided_slice %620 {offsets = [0, 64], sizes = [8, 32], strides = [1, 1]} : vector<8x128xf32> to vector<8x32xf32>
    %634 = math.tanh %633 : vector<8x32xf32>
    %635 = vector.extract_strided_slice %620 {offsets = [0, 96], sizes = [8, 32], strides = [1, 1]} : vector<8x128xf32> to vector<8x32xf32>
    %636 = arith.negf %635 : vector<8x32xf32>
    %637 = math.exp %636 : vector<8x32xf32>
    %cst_122 = arith.constant 1.000000e+00 : f32
    %638 = vector.broadcast %cst_122 : f32 to vector<8x32xf32>
    %639 = arith.addf %638, %637 : vector<8x32xf32>
    %640 = arith.divf %638, %639 : vector<8x32xf32>
    %641 = arith.mulf %632, %552 : vector<8x32xf32>
    %642 = arith.mulf %626, %634 : vector<8x32xf32>
    %643 = arith.addf %641, %642 : vector<8x32xf32>
    %644 = math.tanh %643 : vector<8x32xf32>
    %645 = arith.mulf %640, %644 : vector<8x32xf32>
    %646 = vector.shape_cast %616 : vector<8x1xi1> to vector<8x1xi1>
    %647 = vector.broadcast %646 : vector<8x1xi1> to vector<8x32xi1>
    %648 = arith.select %647, %645, %549 : vector<8x32xi1>, vector<8x32xf32>
    %649 = vector.shape_cast %616 : vector<8x1xi1> to vector<8x1xi1>
    %650 = vector.broadcast %649 : vector<8x1xi1> to vector<8x32xi1>
    %651 = arith.select %650, %643, %552 : vector<8x32xi1>, vector<8x32xf32>
    %cst_123 = arith.constant 0.000000e+00 : f32
    %652 = vector.shape_cast %616 : vector<8x1xi1> to vector<8x1xi1>
    %653 = vector.broadcast %652 : vector<8x1xi1> to vector<8x32xi1>
    %654 = vector.broadcast %cst_123 : f32 to vector<8x32xf32>
    %655 = arith.select %653, %645, %654 : vector<8x32xi1>, vector<8x32xf32>
    %656 = arith.truncf %655 : vector<8x32xf32> to vector<8x32xbf16>
    %657 = vector.extract_strided_slice %611 {offsets = [8, 0], sizes = [8, 128], strides = [1, 1]} : vector<16x128xbf16> to vector<8x128xbf16>
    %658 = vector.broadcast %613 : i32 to vector<8x1xi32>
    %659 = arith.cmpi slt, %658, %9 : vector<8x1xi32>
    %660 = arith.extf %657 : vector<8x128xbf16> to vector<8x128xf32>
    %661 = arith.truncf %592 : vector<8x32xf32> to vector<8x32xbf16>
    %cst_124 = arith.constant dense<0.000000e+00> : vector<8x128xf32>
    %662 = tpu.matmul %661, %6, %cst_124 {dimension_numbers = #tpu.dot_dimension_numbers<[1], [0], [0], [1], [0, 0, 1, 1], [], []>} : vector<8x32xbf16>, vector<32x128xbf16>, vector<8x128xf32> -> vector<8x128xf32>
    %663 = arith.addf %660, %662 : vector<8x128xf32>
    %664 = vector.extract_strided_slice %663 {offsets = [0, 0], sizes = [8, 32], strides = [1, 1]} : vector<8x128xf32> to vector<8x32xf32>
    %665 = arith.negf %664 : vector<8x32xf32>
    %666 = math.exp %665 : vector<8x32xf32>
    %cst_125 = arith.constant 1.000000e+00 : f32
    %667 = vector.broadcast %cst_125 : f32 to vector<8x32xf32>
    %668 = arith.addf %667, %666 : vector<8x32xf32>
    %669 = arith.divf %667, %668 : vector<8x32xf32>
    %670 = vector.extract_strided_slice %663 {offsets = [0, 32], sizes = [8, 32], strides = [1, 1]} : vector<8x128xf32> to vector<8x32xf32>
    %671 = arith.negf %670 : vector<8x32xf32>
    %672 = math.exp %671 : vector<8x32xf32>
    %cst_126 = arith.constant 1.000000e+00 : f32
    %673 = vector.broadcast %cst_126 : f32 to vector<8x32xf32>
    %674 = arith.addf %673, %672 : vector<8x32xf32>
    %675 = arith.divf %673, %674 : vector<8x32xf32>
    %676 = vector.extract_strided_slice %663 {offsets = [0, 64], sizes = [8, 32], strides = [1, 1]} : vector<8x128xf32> to vector<8x32xf32>
    %677 = math.tanh %676 : vector<8x32xf32>
    %678 = vector.extract_strided_slice %663 {offsets = [0, 96], sizes = [8, 32], strides = [1, 1]} : vector<8x128xf32> to vector<8x32xf32>
    %679 = arith.negf %678 : vector<8x32xf32>
    %680 = math.exp %679 : vector<8x32xf32>
    %cst_127 = arith.constant 1.000000e+00 : f32
    %681 = vector.broadcast %cst_127 : f32 to vector<8x32xf32>
    %682 = arith.addf %681, %680 : vector<8x32xf32>
    %683 = arith.divf %681, %682 : vector<8x32xf32>
    %684 = arith.mulf %675, %595 : vector<8x32xf32>
    %685 = arith.mulf %669, %677 : vector<8x32xf32>
    %686 = arith.addf %684, %685 : vector<8x32xf32>
    %687 = math.tanh %686 : vector<8x32xf32>
    %688 = arith.mulf %683, %687 : vector<8x32xf32>
    %689 = vector.shape_cast %659 : vector<8x1xi1> to vector<8x1xi1>
    %690 = vector.broadcast %689 : vector<8x1xi1> to vector<8x32xi1>
    %691 = arith.select %690, %688, %592 : vector<8x32xi1>, vector<8x32xf32>
    %692 = vector.shape_cast %659 : vector<8x1xi1> to vector<8x1xi1>
    %693 = vector.broadcast %692 : vector<8x1xi1> to vector<8x32xi1>
    %694 = arith.select %693, %686, %595 : vector<8x32xi1>, vector<8x32xf32>
    %cst_128 = arith.constant 0.000000e+00 : f32
    %695 = vector.shape_cast %659 : vector<8x1xi1> to vector<8x1xi1>
    %696 = vector.broadcast %695 : vector<8x1xi1> to vector<8x32xi1>
    %697 = vector.broadcast %cst_128 : f32 to vector<8x32xf32>
    %698 = arith.select %696, %688, %697 : vector<8x32xi1>, vector<8x32xf32>
    %699 = arith.truncf %698 : vector<8x32xf32> to vector<8x32xbf16>
    %700 = arith.index_cast %c6_i32 : i32 to index
    %c0_129 = arith.constant 0 : index
    %c0_130 = arith.constant 0 : index
    %701 = vector.load %arg4[%700, %c0_129, %c0_130] : memref<8x8x32xbf16, #tpu.memory_space<vmem>>, vector<1x8x32xbf16>
    %702 = vector.shape_cast %701 : vector<1x8x32xbf16> to vector<8x32xbf16>
    %703 = vector.shape_cast %656 : vector<8x32xbf16> to vector<1x8x32xbf16>
    tpu.vector_store %arg4[%700, %c0_129, %c0_130], %703 {strides = array<i32>} : memref<8x8x32xbf16, #tpu.memory_space<vmem>>, vector<1x8x32xbf16>,
    %704 = arith.index_cast %c6_i32 : i32 to index
    %c0_131 = arith.constant 0 : index
    %c0_132 = arith.constant 0 : index
    %705 = vector.load %arg5[%704, %c0_131, %c0_132] : memref<8x8x32xbf16, #tpu.memory_space<vmem>>, vector<1x8x32xbf16>
    %706 = vector.shape_cast %705 : vector<1x8x32xbf16> to vector<8x32xbf16>
    %707 = vector.shape_cast %699 : vector<8x32xbf16> to vector<1x8x32xbf16>
    tpu.vector_store %arg5[%704, %c0_131, %c0_132], %707 {strides = array<i32>} : memref<8x8x32xbf16, #tpu.memory_space<vmem>>, vector<1x8x32xbf16>,
    %c7_i32_133 = arith.constant 7 : i32
    %708 = arith.index_cast %c7_i32_133 : i32 to index
    %c0_134 = arith.constant 0 : index
    %c0_135 = arith.constant 0 : index
    %709 = vector.load %arg1[%708, %c0_134, %c0_135] : memref<8x16x128xbf16, #tpu.memory_space<vmem>>, vector<1x16x128xbf16>
    %710 = vector.shape_cast %709 : vector<1x16x128xbf16> to vector<16x128xbf16>
    %711 = arith.addi %10, %c7_i32_133 : i32
    %c7_i32_136 = arith.constant 7 : i32
    %712 = arith.subi %c7_i32_136, %711 : i32
    %713 = vector.extract_strided_slice %710 {offsets = [0, 0], sizes = [8, 128], strides = [1, 1]} : vector<16x128xbf16> to vector<8x128xbf16>
    %714 = vector.broadcast %711 : i32 to vector<8x1xi32>
    %715 = arith.cmpi slt, %714, %8 : vector<8x1xi32>
    %716 = arith.extf %713 : vector<8x128xbf16> to vector<8x128xf32>
    %717 = arith.truncf %648 : vector<8x32xf32> to vector<8x32xbf16>
    %cst_137 = arith.constant dense<0.000000e+00> : vector<8x128xf32>
    %718 = tpu.matmul %717, %4, %cst_137 {dimension_numbers = #tpu.dot_dimension_numbers<[1], [0], [0], [1], [0, 0, 1, 1], [], []>} : vector<8x32xbf16>, vector<32x128xbf16>, vector<8x128xf32> -> vector<8x128xf32>
    %719 = arith.addf %716, %718 : vector<8x128xf32>
    %720 = vector.extract_strided_slice %719 {offsets = [0, 0], sizes = [8, 32], strides = [1, 1]} : vector<8x128xf32> to vector<8x32xf32>
    %721 = arith.negf %720 : vector<8x32xf32>
    %722 = math.exp %721 : vector<8x32xf32>
    %cst_138 = arith.constant 1.000000e+00 : f32
    %723 = vector.broadcast %cst_138 : f32 to vector<8x32xf32>
    %724 = arith.addf %723, %722 : vector<8x32xf32>
    %725 = arith.divf %723, %724 : vector<8x32xf32>
    %726 = vector.extract_strided_slice %719 {offsets = [0, 32], sizes = [8, 32], strides = [1, 1]} : vector<8x128xf32> to vector<8x32xf32>
    %727 = arith.negf %726 : vector<8x32xf32>
    %728 = math.exp %727 : vector<8x32xf32>
    %cst_139 = arith.constant 1.000000e+00 : f32
    %729 = vector.broadcast %cst_139 : f32 to vector<8x32xf32>
    %730 = arith.addf %729, %728 : vector<8x32xf32>
    %731 = arith.divf %729, %730 : vector<8x32xf32>
    %732 = vector.extract_strided_slice %719 {offsets = [0, 64], sizes = [8, 32], strides = [1, 1]} : vector<8x128xf32> to vector<8x32xf32>
    %733 = math.tanh %732 : vector<8x32xf32>
    %734 = vector.extract_strided_slice %719 {offsets = [0, 96], sizes = [8, 32], strides = [1, 1]} : vector<8x128xf32> to vector<8x32xf32>
    %735 = arith.negf %734 : vector<8x32xf32>
    %736 = math.exp %735 : vector<8x32xf32>
    %cst_140 = arith.constant 1.000000e+00 : f32
    %737 = vector.broadcast %cst_140 : f32 to vector<8x32xf32>
    %738 = arith.addf %737, %736 : vector<8x32xf32>
    %739 = arith.divf %737, %738 : vector<8x32xf32>
    %740 = arith.mulf %731, %651 : vector<8x32xf32>
    %741 = arith.mulf %725, %733 : vector<8x32xf32>
    %742 = arith.addf %740, %741 : vector<8x32xf32>
    %743 = math.tanh %742 : vector<8x32xf32>
    %744 = arith.mulf %739, %743 : vector<8x32xf32>
    %745 = vector.shape_cast %715 : vector<8x1xi1> to vector<8x1xi1>
    %746 = vector.broadcast %745 : vector<8x1xi1> to vector<8x32xi1>
    %747 = arith.select %746, %744, %648 : vector<8x32xi1>, vector<8x32xf32>
    %748 = vector.shape_cast %715 : vector<8x1xi1> to vector<8x1xi1>
    %749 = vector.broadcast %748 : vector<8x1xi1> to vector<8x32xi1>
    %750 = arith.select %749, %742, %651 : vector<8x32xi1>, vector<8x32xf32>
    %cst_141 = arith.constant 0.000000e+00 : f32
    %751 = vector.shape_cast %715 : vector<8x1xi1> to vector<8x1xi1>
    %752 = vector.broadcast %751 : vector<8x1xi1> to vector<8x32xi1>
    %753 = vector.broadcast %cst_141 : f32 to vector<8x32xf32>
    %754 = arith.select %752, %744, %753 : vector<8x32xi1>, vector<8x32xf32>
    %755 = arith.truncf %754 : vector<8x32xf32> to vector<8x32xbf16>
    %756 = vector.extract_strided_slice %710 {offsets = [8, 0], sizes = [8, 128], strides = [1, 1]} : vector<16x128xbf16> to vector<8x128xbf16>
    %757 = vector.broadcast %712 : i32 to vector<8x1xi32>
    %758 = arith.cmpi slt, %757, %9 : vector<8x1xi32>
    %759 = arith.extf %756 : vector<8x128xbf16> to vector<8x128xf32>
    %760 = arith.truncf %691 : vector<8x32xf32> to vector<8x32xbf16>
    %cst_142 = arith.constant dense<0.000000e+00> : vector<8x128xf32>
    %761 = tpu.matmul %760, %6, %cst_142 {dimension_numbers = #tpu.dot_dimension_numbers<[1], [0], [0], [1], [0, 0, 1, 1], [], []>} : vector<8x32xbf16>, vector<32x128xbf16>, vector<8x128xf32> -> vector<8x128xf32>
    %762 = arith.addf %759, %761 : vector<8x128xf32>
    %763 = vector.extract_strided_slice %762 {offsets = [0, 0], sizes = [8, 32], strides = [1, 1]} : vector<8x128xf32> to vector<8x32xf32>
    %764 = arith.negf %763 : vector<8x32xf32>
    %765 = math.exp %764 : vector<8x32xf32>
    %cst_143 = arith.constant 1.000000e+00 : f32
    %766 = vector.broadcast %cst_143 : f32 to vector<8x32xf32>
    %767 = arith.addf %766, %765 : vector<8x32xf32>
    %768 = arith.divf %766, %767 : vector<8x32xf32>
    %769 = vector.extract_strided_slice %762 {offsets = [0, 32], sizes = [8, 32], strides = [1, 1]} : vector<8x128xf32> to vector<8x32xf32>
    %770 = arith.negf %769 : vector<8x32xf32>
    %771 = math.exp %770 : vector<8x32xf32>
    %cst_144 = arith.constant 1.000000e+00 : f32
    %772 = vector.broadcast %cst_144 : f32 to vector<8x32xf32>
    %773 = arith.addf %772, %771 : vector<8x32xf32>
    %774 = arith.divf %772, %773 : vector<8x32xf32>
    %775 = vector.extract_strided_slice %762 {offsets = [0, 64], sizes = [8, 32], strides = [1, 1]} : vector<8x128xf32> to vector<8x32xf32>
    %776 = math.tanh %775 : vector<8x32xf32>
    %777 = vector.extract_strided_slice %762 {offsets = [0, 96], sizes = [8, 32], strides = [1, 1]} : vector<8x128xf32> to vector<8x32xf32>
    %778 = arith.negf %777 : vector<8x32xf32>
    %779 = math.exp %778 : vector<8x32xf32>
    %cst_145 = arith.constant 1.000000e+00 : f32
    %780 = vector.broadcast %cst_145 : f32 to vector<8x32xf32>
    %781 = arith.addf %780, %779 : vector<8x32xf32>
    %782 = arith.divf %780, %781 : vector<8x32xf32>
    %783 = arith.mulf %774, %694 : vector<8x32xf32>
    %784 = arith.mulf %768, %776 : vector<8x32xf32>
    %785 = arith.addf %783, %784 : vector<8x32xf32>
    %786 = math.tanh %785 : vector<8x32xf32>
    %787 = arith.mulf %782, %786 : vector<8x32xf32>
    %788 = vector.shape_cast %758 : vector<8x1xi1> to vector<8x1xi1>
    %789 = vector.broadcast %788 : vector<8x1xi1> to vector<8x32xi1>
    %790 = arith.select %789, %787, %691 : vector<8x32xi1>, vector<8x32xf32>
    %791 = vector.shape_cast %758 : vector<8x1xi1> to vector<8x1xi1>
    %792 = vector.broadcast %791 : vector<8x1xi1> to vector<8x32xi1>
    %793 = arith.select %792, %785, %694 : vector<8x32xi1>, vector<8x32xf32>
    %cst_146 = arith.constant 0.000000e+00 : f32
    %794 = vector.shape_cast %758 : vector<8x1xi1> to vector<8x1xi1>
    %795 = vector.broadcast %794 : vector<8x1xi1> to vector<8x32xi1>
    %796 = vector.broadcast %cst_146 : f32 to vector<8x32xf32>
    %797 = arith.select %795, %787, %796 : vector<8x32xi1>, vector<8x32xf32>
    %798 = arith.truncf %797 : vector<8x32xf32> to vector<8x32xbf16>
    %799 = arith.index_cast %c7_i32_133 : i32 to index
    %c0_147 = arith.constant 0 : index
    %c0_148 = arith.constant 0 : index
    %800 = vector.load %arg4[%799, %c0_147, %c0_148] : memref<8x8x32xbf16, #tpu.memory_space<vmem>>, vector<1x8x32xbf16>
    %801 = vector.shape_cast %800 : vector<1x8x32xbf16> to vector<8x32xbf16>
    %802 = vector.shape_cast %755 : vector<8x32xbf16> to vector<1x8x32xbf16>
    tpu.vector_store %arg4[%799, %c0_147, %c0_148], %802 {strides = array<i32>} : memref<8x8x32xbf16, #tpu.memory_space<vmem>>, vector<1x8x32xbf16>,
    %803 = arith.index_cast %c7_i32_133 : i32 to index
    %c0_149 = arith.constant 0 : index
    %c0_150 = arith.constant 0 : index
    %804 = vector.load %arg5[%803, %c0_149, %c0_150] : memref<8x8x32xbf16, #tpu.memory_space<vmem>>, vector<1x8x32xbf16>
    %805 = vector.shape_cast %804 : vector<1x8x32xbf16> to vector<8x32xbf16>
    %806 = vector.shape_cast %798 : vector<8x32xbf16> to vector<1x8x32xbf16>
    tpu.vector_store %arg5[%803, %c0_149, %c0_150], %806 {strides = array<i32>} : memref<8x8x32xbf16, #tpu.memory_space<vmem>>, vector<1x8x32xbf16>,
    %c8_i32_151 = arith.constant 8 : i32
    %c0_152 = arith.constant 0 : index
    %c0_153 = arith.constant 0 : index
    %807 = vector.load %arg6[%c0_152, %c0_153] : memref<8x32xf32, #tpu.memory_space<vmem>>, vector<8x32xf32>
    tpu.vector_store %arg6[%c0_152, %c0_153], %747 {strides = array<i32>} : memref<8x32xf32, #tpu.memory_space<vmem>>, vector<8x32xf32>,
    %c0_154 = arith.constant 0 : index
    %c0_155 = arith.constant 0 : index
    %808 = vector.load %arg7[%c0_154, %c0_155] : memref<8x32xf32, #tpu.memory_space<vmem>>, vector<8x32xf32>
    tpu.vector_store %arg7[%c0_154, %c0_155], %750 {strides = array<i32>} : memref<8x32xf32, #tpu.memory_space<vmem>>, vector<8x32xf32>,
    %c0_156 = arith.constant 0 : index
    %c0_157 = arith.constant 0 : index
    %809 = vector.load %arg8[%c0_156, %c0_157] : memref<8x32xf32, #tpu.memory_space<vmem>>, vector<8x32xf32>
    tpu.vector_store %arg8[%c0_156, %c0_157], %790 {strides = array<i32>} : memref<8x32xf32, #tpu.memory_space<vmem>>, vector<8x32xf32>,
    %c0_158 = arith.constant 0 : index
    %c0_159 = arith.constant 0 : index
    %810 = vector.load %arg9[%c0_158, %c0_159] : memref<8x32xf32, #tpu.memory_space<vmem>>, vector<8x32xf32>
    tpu.vector_store %arg9[%c0_158, %c0_159], %793 {strides = array<i32>} : memref<8x32xf32, #tpu.memory_space<vmem>>, vector<8x32xf32>,
    return
  }
  func.func @transform_0(%arg0: i32) -> (i32, i32, i32) {
    %c0_i32 = arith.constant 0 : i32
    %c0_i32_0 = arith.constant 0 : i32
    %c0_i32_1 = arith.constant 0 : i32
    return %arg0, %c0_i32, %c0_i32_0 : i32, i32, i32
  }
  func.func @transform_1(%arg0: i32) -> (i32, i32, i32) {
    %c0_i32 = arith.constant 0 : i32
    %c0_i32_0 = arith.constant 0 : i32
    %c0_i32_1 = arith.constant 0 : i32
    %c0_i32_2 = arith.constant 0 : i32
    return %c0_i32, %c0_i32_0, %c0_i32_1 : i32, i32, i32
  }
  func.func @transform_2(%arg0: i32) -> (i32, i32) {
    %c0_i32 = arith.constant 0 : i32
    %c0_i32_0 = arith.constant 0 : i32
    %c0_i32_1 = arith.constant 0 : i32
    return %c0_i32, %c0_i32_0 : i32, i32
  }
  func.func @transform_3(%arg0: i32) -> (i32, i32, i32) {
    %c0_i32 = arith.constant 0 : i32
    %c0_i32_0 = arith.constant 0 : i32
    %c0_i32_1 = arith.constant 0 : i32
    return %arg0, %c0_i32, %c0_i32_0 : i32, i32, i32
  }
  func.func @transform_4(%arg0: i32) -> (i32, i32, i32) {
    %c0_i32 = arith.constant 0 : i32
    %c0_i32_0 = arith.constant 0 : i32
    %c0_i32_1 = arith.constant 0 : i32
    return %arg0, %c0_i32, %c0_i32_0 : i32, i32, i32
  }
}

</mosaic_0001>

<llo_original>
// kernel: tpu_custom_call.1
$region0: #{tpu_custom_call.1}
  #allocation0 [shape = 'u32[]', space=smem, size = 0x4, offset = 0x4, fixed_abs, tag = 'smem constant byte address 0x4 - core index']
  #allocation1 [shape = 'u32[144,128]{1,0:T(1,128)}', space=vmem, size = 0x12000, scoped, tag = 'internal scratch']
  #allocation2 [shape = 'f32[8,32]{1,0:T(8,128)}', space=vmem, size = 0x1000, scoped, tag = 'scratch operand']
  #allocation3 [shape = 'f32[8,32]{1,0:T(8,128)}', space=vmem, size = 0x1000, scoped, tag = 'scratch operand']
  #allocation4 [shape = 'f32[8,32]{1,0:T(8,128)}', space=vmem, size = 0x1000, scoped, tag = 'scratch operand']
  #allocation5 [shape = 'f32[8,32]{1,0:T(8,128)}', space=vmem, size = 0x1000, scoped, tag = 'scratch operand']
  %s0 = inlined_call_operand.hbm [shape: bf16[8,16,128], index: 0, kind: input, shape index: {}]
  %s1 = inlined_call_operand.hbm [shape: bf16[2,32,128], index: 1, kind: input, shape index: {}]
  %s2 = inlined_call_operand.vmem [shape: s32[16,1], index: 2, kind: input, shape index: {}]
  %s3 = inlined_call_operand.hbm [shape: bf16[8,8,32], index: 3, kind: output, shape index: {0}]
  %s4 = inlined_call_operand.hbm [shape: bf16[8,8,32], index: 4, kind: output, shape index: {1}]
  %5 = xla_tuple %s3, %s4
  %s6 = sld [smem:[#allocation0]]
  $region42: #{tpu_custom_call.1} parent=0
    _
  %s8 = ssub.s32 1, %s6
  %s9 = scalar_select 0, %s8, %s6
  $region1: #{tpu_custom_call.1} parent=0
    #allocation6 [shape = 'u8[32768]{0}', space=vmem, size = 0x8000, scoped, tag = 'input window, operand 0, single buffered']
    #allocation7 [shape = 's32[1]{0}', space=sflag, size = 0x4, scoped, tag = 'scoped memory for tpu_custom_call.1']
    #allocation8 [shape = 's32[1]{0}', space=sflag, size = 0x4, scoped, tag = 'scoped memory for tpu_custom_call.1']
    #allocation9 [shape = 'u8[16384]{0}', space=vmem, size = 0x4000, scoped, tag = 'input window, operand 1, single buffered']
    #allocation10 [shape = 's32[1]{0}', space=sflag, size = 0x4, scoped, tag = 'scoped memory for tpu_custom_call.1']
    #allocation11 [shape = 'u8[16384]{0}', space=vmem, size = 0x4000, scoped, tag = 'output window, operand 0, single buffered']
    #allocation12 [shape = 'u8[16384]{0}', space=vmem, size = 0x4000, scoped, tag = 'output window, operand 1, single buffered']
    #allocation13 [shape = 's32[1]{0}', space=sflag, size = 0x4, scoped, tag = 'scoped memory for tpu_custom_call.1']
    %10 = vsyncpa [#allocation7], 0
    %11 = vsyncpa [#allocation10], 0
    %12 = vsyncpa [#allocation8], 0
    %13 = vsyncpa [#allocation13], 0
    // Predicated region
    $region2: #{tpu_custom_call.1} parent=1 // pred_check
      _
    $region3: #{tpu_custom_call.1} parent=1 // pred_check_branch
      %15 = sbr.rel (0) target = $region5
    $region4: #{tpu_custom_call.1} parent=1 // pred_region
      %s17 = ssub.s32 1024, 1024
      %18 = vsyncadd [#allocation7], %s17
      %s19 = sshll.u32 [#allocation6], 4
      %s20 = int_to_ptr.vmem [resolvable:$true] %s19
      %25 = dma.hbm_to_vmem [thread:$0]  %s0, 1024, %s20, [#allocation7], 64, 64, 4
    $region5: #{tpu_custom_call.1} parent=1 // pred_fallthru
      _
    // Predicated region
    $region6: #{tpu_custom_call.1} parent=1 // pred_check
      _
    $region7: #{tpu_custom_call.1} parent=1 // pred_check_branch
      %27 = sbr.rel (0) target = $region9
    $region8: #{tpu_custom_call.1} parent=1 // pred_region
      %s29 = ssub.s32 512, 512
      %30 = vsyncadd [#allocation10], %s29
      %s31 = sshll.u32 [#allocation9], 4
      %s32 = int_to_ptr.vmem [resolvable:$true] %s31
      %37 = dma.hbm_to_vmem [thread:$0]  %s1, 512, %s32, [#allocation10], 64, 64, 4
    $region9: #{tpu_custom_call.1} parent=1 // pred_fallthru
      _
    // Predicated region
    $region10: #{tpu_custom_call.1} parent=1 // pred_check
      _
    $region11: #{tpu_custom_call.1} parent=1 // pred_check_branch
      %39 = sbr.rel (0) target = $region13
    $region12: #{tpu_custom_call.1} parent=1 // pred_region
      _
    $region13: #{tpu_custom_call.1} parent=1 // pred_fallthru
      _
    // Predicated region
    $region14: #{tpu_custom_call.1} parent=1 // pred_check
      _
    $region15: #{tpu_custom_call.1} parent=1 // pred_check_branch
      %41 = sbr.rel (0) target = $region17
    $region16: #{tpu_custom_call.1} parent=1 // pred_region
      %42 = dma.done [#allocation7], 1024
    $region17: #{tpu_custom_call.1} parent=1 // pred_fallthru
      _
    // Predicated region
    $region18: #{tpu_custom_call.1} parent=1 // pred_check
      _
    $region19: #{tpu_custom_call.1} parent=1 // pred_check_branch
      %44 = sbr.rel (0) target = $region21
    $region20: #{tpu_custom_call.1} parent=1 // pred_region
      %45 = dma.done [#allocation10], 512
    $region21: #{tpu_custom_call.1} parent=1 // pred_fallthru
      _
    %p47 = scmp.eq.s32.totalorder 0, 0
    // Predicated region
    $region22: #{tpu_custom_call.1} parent=1 // pred_check
      %p48 = pneg %p47
    $region23: #{tpu_custom_call.1} parent=1 // pred_check_branch
      %50 = sbr.rel (%p48) target = $region25
    $region24: #{tpu_custom_call.1} parent=1 // pred_region
      %vm51 = vcmask 261120
      %52 = vst.msk [vmem:[#allocation2] sm:$0xff] %vm51, 0.0
      %53 = vst.msk [vmem:[#allocation3] sm:$0xff] %vm51, 0.0
      %54 = vst.msk [vmem:[#allocation4] sm:$0xff] %vm51, 0.0
      %55 = vst.msk [vmem:[#allocation5] sm:$0xff] %vm51, 0.0
    $region25: #{tpu_custom_call.1} parent=1 // pred_fallthru
      _
    %v56 = vld [vmem:[#allocation9] sm:$0xf]
    %v57 = vld [vmem:[#allocation9 + $0x4] sm:$0xf]
    %v58 = vld [vmem:[#allocation9 + $0x8] sm:$0xf]
    %v59 = vld [vmem:[#allocation9 + $0xc] sm:$0xf]
    %s60 = scalar_lea.vmem [#allocation9], 16
    %v61 = vld [vmem:[%s60] sm:$0xf]
    %v62 = vld [vmem:[%s60 + $0x4] sm:$0xf]
    %v63 = vld [vmem:[%s60 + $0x8] sm:$0xf]
    %v64 = vld [vmem:[%s60 + $0xc] sm:$0xf]
    %v65 = vld [vmem:[%s2] sm:$0xff]
    %v66 = vld [vmem:[%s2 + $0x8] sm:$0xff]
    %s67 = smul.u32 0, 8
    %v68 = vld [vmem:[#allocation2] sm:$0xff]
    %v69 = vld [vmem:[#allocation3] sm:$0xff]
    %v70 = vld [vmem:[#allocation4] sm:$0xff]
    %v71 = vld [vmem:[#allocation5] sm:$0xff]
    %v72 = vld [vmem:[#allocation6] sm:$0xf]
    %v73 = vld [vmem:[#allocation6 + $0x4] sm:$0xf]
    %s74 = ssub.s32 7, %s67
    %v75 = vstv %s67
    %vm76 = vcmp.lt.s32.totalorder %v75, %v65
    %v77 = vunpack.c.l.bf16 %v72
    %v78 = vpack.c.bf16 %v68, %v68
    %v83 = vunpack.c.l.b16 %v56
    %v84 = vunpack.c.l.b16 %v57
    %v85 = vunpack.c.l.b16 %v58
    %v86 = vunpack.c.l.b16 %v59
    %v87 = vpack.c.b16 %v84, %v83
    %v88 = vpack.c.b16 %v86, %v85
    %vm91 = vcmask 261120
    %v93 = vsel %vm91, %v78, 0
    %95 = vmatprep.subr.bf16.mxu0 0
    %96 = vmatpush1.bf16.msra.mxu0 0
    %97 = vmatprep.subr.bf16.mxu0 0
    %98 = vmatpush1.bf16.msra.mxu0 0
    %99 = vmatprep.subr.bf16.mxu0 0
    %100 = vmatpush1.bf16.msra.mxu0 0
    %101 = vmatprep.subr.bf16.mxu0 0
    %102 = vmatpush1.bf16.msra.mxu0 0
    %103 = vmatprep.subr.bf16.mxu0 0
    %104 = vmatpush1.bf16.msra.mxu0 0
    %105 = vmatprep.subr.bf16.mxu0 0
    %106 = vmatpush1.bf16.msra.mxu0 0
    %107 = vmatprep.subr.bf16.mxu0 0
    %108 = vmatpush1.bf16.msra.mxu0 %v88
    %109 = vmatprep.subr.bf16.mxu0 0
    %110 = vmatpush1.bf16.msra.mxu0 %v87
    %111 = vmatprep.subr.bf16.mxu0 0
    %112 = vmatpush2.bf16.msra.mxu0 0
    %113 = vmatprep.subr.bf16.mxu0 0
    %114 = vmatpush2.bf16.msra.mxu0 0
    %115 = vmatprep.subr.bf16.mxu0 0
    %116 = vmatpush2.bf16.msra.mxu0 0
    %117 = vmatprep.subr.bf16.mxu0 0
    %118 = vmatpush2.bf16.msra.mxu0 0
    %119 = vmatprep.subr.bf16.mxu0 0
    %120 = vmatpush2.bf16.msra.mxu0 0
    %121 = vmatprep.subr.bf16.mxu0 0
    %122 = vmatpush2.bf16.msra.mxu0 0
    %123 = vmatprep.subr.bf16.mxu0 0
    %124 = vmatpush2.bf16.msra.mxu0 0
    %125 = vmatprep.subr.bf16.mxu0 0
    %126 = vmatpush2.bf16.msra.mxu0 0
    %127 = vmatprep.mubr.bf16.mxu0 0
    %128 = vmatmul.mubr.bf16.gmra.mxu0 %v93
    %v129 = vpop.f32.mrf.mxu0
    %v130 = vadd.f32 0.0, %v129
    %v131 = vpop.f32.mrf.mxu0
    %v132 = vpop.f32.mrf.mxu0
    %v133 = vpop.f32.mrf.mxu0
    %134 = vdwg.mxu0
    %v135 = vadd.f32 %v77, %v130
    %v136 = vxor.u32 %v135, 2147483648
    %v137 = vmul.f32 %v136, 1.442695
    %v138 = vpow.pop %v137
    %v139 = vadd.f32 %v138, 1.0
    %v140 = vrcp.pop %v139
    %v141 = vmul.f32 1.0, %v140
    %v142 = vtanh.pop %v135
    %144 = vrot.lane.b32.xlu0 %v69, 32
    %v145 = vpop.permute.xlu0 %144
    %v147 = vmul.f32 %v141, %v145
    %149 = vrot.lane.b32.xlu0 %v142, 64
    %v150 = vpop.permute.xlu0 %149
    %v152 = vmul.f32 %v141, %v150
    %154 = vrot.lane.b32.xlu0 %v152, 32
    %v155 = vpop.permute.xlu0 %154
    %v157 = vadd.f32 %v147, %v155
    %v158 = vtanh.pop %v157
    %160 = vrot.lane.b32.xlu0 %v158, 64
    %v161 = vpop.permute.xlu0 %160
    %v163 = vmul.f32 %v141, %v161
    %v164 = vsel %vm76, 1, 0
    %165 = vset.pattern.permute.xlu0 0
    %166 = vperm.xlu0 %165, %v164
    %v167 = vpop.permute.xlu0 %166
    %vm168 = vcmp.eq.s32.totalorder %v167, 1
    %170 = vrot.lane.b32.xlu0 %v68, 96
    %v171 = vpop.permute.xlu0 %170
    %v173 = vsel %vm168, %v163, %v171
    %v174 = vsel %vm168, %v157, %v145
    %v175 = vsel %vm168, %v163, 0.0
    %v176 = vpack.c.bf16 %v175, %v175
    %v177 = vstv %s74
    %vm178 = vcmp.lt.s32.totalorder %v177, %v66
    %v179 = vunpack.c.l.bf16 %v73
    %v180 = vpack.c.bf16 %v70, %v70
    %v185 = vunpack.c.l.b16 %v61
    %v186 = vunpack.c.l.b16 %v62
    %v187 = vunpack.c.l.b16 %v63
    %v188 = vunpack.c.l.b16 %v64
    %v189 = vpack.c.b16 %v186, %v185
    %v190 = vpack.c.b16 %v188, %v187
    %v194 = vsel %vm91, %v180, 0
    %196 = vmatprep.subr.bf16.mxu0 0
    %197 = vmatpush1.bf16.msra.mxu0 0
    %198 = vmatprep.subr.bf16.mxu0 0
    %199 = vmatpush1.bf16.msra.mxu0 0
    %200 = vmatprep.subr.bf16.mxu0 0
    %201 = vmatpush1.bf16.msra.mxu0 0
    %202 = vmatprep.subr.bf16.mxu0 0
    %203 = vmatpush1.bf16.msra.mxu0 0
    %204 = vmatprep.subr.bf16.mxu0 0
    %205 = vmatpush1.bf16.msra.mxu0 0
    %206 = vmatprep.subr.bf16.mxu0 0
    %207 = vmatpush1.bf16.msra.mxu0 0
    %208 = vmatprep.subr.bf16.mxu0 0
    %209 = vmatpush1.bf16.msra.mxu0 %v190
    %210 = vmatprep.subr.bf16.mxu0 0
    %211 = vmatpush1.bf16.msra.mxu0 %v189
    %212 = vmatprep.subr.bf16.mxu0 0
    %213 = vmatpush2.bf16.msra.mxu0 0
    %214 = vmatprep.subr.bf16.mxu0 0
    %215 = vmatpush2.bf16.msra.mxu0 0
    %216 = vmatprep.subr.bf16.mxu0 0
    %217 = vmatpush2.bf16.msra.mxu0 0
    %218 = vmatprep.subr.bf16.mxu0 0
    %219 = vmatpush2.bf16.msra.mxu0 0
    %220 = vmatprep.subr.bf16.mxu0 0
    %221 = vmatpush2.bf16.msra.mxu0 0
    %222 = vmatprep.subr.bf16.mxu0 0
    %223 = vmatpush2.bf16.msra.mxu0 0
    %224 = vmatprep.subr.bf16.mxu0 0
    %225 = vmatpush2.bf16.msra.mxu0 0
    %226 = vmatprep.subr.bf16.mxu0 0
    %227 = vmatpush2.bf16.msra.mxu0 0
    %228 = vmatprep.mubr.bf16.mxu0 0
    %229 = vmatmul.mubr.bf16.gmra.mxu0 %v194
    %v230 = vpop.f32.mrf.mxu0
    %v231 = vadd.f32 0.0, %v230
    %v232 = vpop.f32.mrf.mxu0
    %v233 = vpop.f32.mrf.mxu0
    %v234 = vpop.f32.mrf.mxu0
    %235 = vdwg.mxu0
    %v236 = vadd.f32 %v179, %v231
    %v237 = vxor.u32 %v236, 2147483648
    %v238 = vmul.f32 %v237, 1.442695
    %v239 = vpow.pop %v238
    %v240 = vadd.f32 %v239, 1.0
    %v241 = vrcp.pop %v240
    %v242 = vmul.f32 1.0, %v241
    %v243 = vtanh.pop %v236
    %245 = vrot.lane.b32.xlu0 %v71, 32
    %v246 = vpop.permute.xlu0 %245
    %v248 = vmul.f32 %v242, %v246
    %250 = vrot.lane.b32.xlu0 %v243, 64
    %v251 = vpop.permute.xlu0 %250
    %v253 = vmul.f32 %v242, %v251
    %255 = vrot.lane.b32.xlu0 %v253, 32
    %v256 = vpop.permute.xlu0 %255
    %v258 = vadd.f32 %v248, %v256
    %v259 = vtanh.pop %v258
    %261 = vrot.lane.b32.xlu0 %v259, 64
    %v262 = vpop.permute.xlu0 %261
    %v264 = vmul.f32 %v242, %v262
    %v265 = vsel %vm178, 1, 0
    %266 = vset.pattern.permute.xlu0 0
    %267 = vperm.xlu0 %266, %v265
    %v268 = vpop.permute.xlu0 %267
    %vm269 = vcmp.eq.s32.totalorder %v268, 1
    %271 = vrot.lane.b32.xlu0 %v70, 96
    %v272 = vpop.permute.xlu0 %271
    %v274 = vsel %vm269, %v264, %v272
    %v275 = vsel %vm269, %v258, %v246
    %v276 = vsel %vm269, %v264, 0.0
    %v277 = vpack.c.bf16 %v276, %v276
    %v279 = vunpack.c.l.b16 %v176
    %v280 = vpack.c.b16 %v279, %v279
    %281 = vrot.lane.b32.xlu0 %v280, 32
    %v282 = vpop.permute.xlu0 %281
    %vm284 = vcmask 257024
    %285 = vst.msk [vmem:[#allocation11] sm:$0xf] %vm284, %v282
    %v287 = vunpack.c.l.b16 %v277
    %v288 = vpack.c.b16 %v287, %v287
    %289 = vrot.lane.b32.xlu0 %v288, 32
    %v290 = vpop.permute.xlu0 %289
    %292 = vst.msk [vmem:[#allocation12] sm:$0xf] %vm284, %v290
    %s293 = scalar_lea.vmem [#allocation6], 8
    %v294 = vld [vmem:[%s293] sm:$0xf]
    %v295 = vld [vmem:[%s293 + $0x4] sm:$0xf]
    %s296 = sadd.s32 %s67, 1
    %s297 = ssub.s32 6, %s67
    %v298 = vstv %s296
    %vm299 = vcmp.lt.s32.totalorder %v298, %v65
    %v300 = vunpack.c.l.bf16 %v294
    %v301 = vpack.c.bf16 %v173, %v173
    %303 = vrot.lane.b32.xlu0 %v301, 32
    %v304 = vpop.permute.xlu0 %303
    %v306 = vsel %vm91, %v304, 0
    %308 = vmatprep.subr.bf16.mxu0 0
    %309 = vmatpush1.bf16.msra.mxu0 0
    %310 = vmatprep.subr.bf16.mxu0 0
    %311 = vmatpush1.bf16.msra.mxu0 0
    %312 = vmatprep.subr.bf16.mxu0 0
    %313 = vmatpush1.bf16.msra.mxu0 0
    %314 = vmatprep.subr.bf16.mxu0 0
    %315 = vmatpush1.bf16.msra.mxu0 0
    %316 = vmatprep.subr.bf16.mxu0 0
    %317 = vmatpush1.bf16.msra.mxu0 0
    %318 = vmatprep.subr.bf16.mxu0 0
    %319 = vmatpush1.bf16.msra.mxu0 0
    %320 = vmatprep.subr.bf16.mxu0 0
    %321 = vmatpush1.bf16.msra.mxu0 %v88
    %322 = vmatprep.subr.bf16.mxu0 0
    %323 = vmatpush1.bf16.msra.mxu0 %v87
    %324 = vmatprep.subr.bf16.mxu0 0
    %325 = vmatpush2.bf16.msra.mxu0 0
    %326 = vmatprep.subr.bf16.mxu0 0
    %327 = vmatpush2.bf16.msra.mxu0 0
    %328 = vmatprep.subr.bf16.mxu0 0
    %329 = vmatpush2.bf16.msra.mxu0 0
    %330 = vmatprep.subr.bf16.mxu0 0
    %331 = vmatpush2.bf16.msra.mxu0 0
    %332 = vmatprep.subr.bf16.mxu0 0
    %333 = vmatpush2.bf16.msra.mxu0 0
    %334 = vmatprep.subr.bf16.mxu0 0
    %335 = vmatpush2.bf16.msra.mxu0 0
    %336 = vmatprep.subr.bf16.mxu0 0
    %337 = vmatpush2.bf16.msra.mxu0 0
    %338 = vmatprep.subr.bf16.mxu0 0
    %339 = vmatpush2.bf16.msra.mxu0 0
    %340 = vmatprep.mubr.bf16.mxu0 0
    %341 = vmatmul.mubr.bf16.gmra.mxu0 %v306
    %v342 = vpop.f32.mrf.mxu0
    %v343 = vadd.f32 0.0, %v342
    %v344 = vpop.f32.mrf.mxu0
    %v345 = vpop.f32.mrf.mxu0
    %v346 = vpop.f32.mrf.mxu0
    %347 = vdwg.mxu0
    %v348 = vadd.f32 %v300, %v343
    %v349 = vxor.u32 %v348, 2147483648
    %v350 = vmul.f32 %v349, 1.442695
    %v351 = vpow.pop %v350
    %v352 = vadd.f32 %v351, 1.0
    %v353 = vrcp.pop %v352
    %v354 = vmul.f32 1.0, %v353
    %v355 = vtanh.pop %v348
    %v356 = vmul.f32 %v354, %v174
    %358 = vrot.lane.b32.xlu0 %v355, 64
    %v359 = vpop.permute.xlu0 %358
    %v361 = vmul.f32 %v354, %v359
    %363 = vrot.lane.b32.xlu0 %v361, 32
    %v364 = vpop.permute.xlu0 %363
    %v366 = vadd.f32 %v356, %v364
    %v367 = vtanh.pop %v366
    %369 = vrot.lane.b32.xlu0 %v367, 64
    %v370 = vpop.permute.xlu0 %369
    %v372 = vmul.f32 %v354, %v370
    %v373 = vsel %vm299, 1, 0
    %374 = vset.pattern.permute.xlu0 0
    %375 = vperm.xlu0 %374, %v373
    %v376 = vpop.permute.xlu0 %375
    %vm377 = vcmp.eq.s32.totalorder %v376, 1
    %v378 = vsel %vm377, %v372, %v173
    %v379 = vsel %vm377, %v366, %v174
    %v380 = vsel %vm377, %v372, 0.0
    %v381 = vpack.c.bf16 %v380, %v380
    %v382 = vstv %s297
    %vm383 = vcmp.lt.s32.totalorder %v382, %v66
    %v384 = vunpack.c.l.bf16 %v295
    %v385 = vpack.c.bf16 %v274, %v274
    %387 = vrot.lane.b32.xlu0 %v385, 32
    %v388 = vpop.permute.xlu0 %387
    %v390 = vsel %vm91, %v388, 0
    %392 = vmatprep.subr.bf16.mxu0 0
    %393 = vmatpush1.bf16.msra.mxu0 0
    %394 = vmatprep.subr.bf16.mxu0 0
    %395 = vmatpush1.bf16.msra.mxu0 0
    %396 = vmatprep.subr.bf16.mxu0 0
    %397 = vmatpush1.bf16.msra.mxu0 0
    %398 = vmatprep.subr.bf16.mxu0 0
    %399 = vmatpush1.bf16.msra.mxu0 0
    %400 = vmatprep.subr.bf16.mxu0 0
    %401 = vmatpush1.bf16.msra.mxu0 0
    %402 = vmatprep.subr.bf16.mxu0 0
    %403 = vmatpush1.bf16.msra.mxu0 0
    %404 = vmatprep.subr.bf16.mxu0 0
    %405 = vmatpush1.bf16.msra.mxu0 %v190
    %406 = vmatprep.subr.bf16.mxu0 0
    %407 = vmatpush1.bf16.msra.mxu0 %v189
    %408 = vmatprep.subr.bf16.mxu0 0
    %409 = vmatpush2.bf16.msra.mxu0 0
    %410 = vmatprep.subr.bf16.mxu0 0
    %411 = vmatpush2.bf16.msra.mxu0 0
    %412 = vmatprep.subr.bf16.mxu0 0
    %413 = vmatpush2.bf16.msra.mxu0 0
    %414 = vmatprep.subr.bf16.mxu0 0
    %415 = vmatpush2.bf16.msra.mxu0 0
    %416 = vmatprep.subr.bf16.mxu0 0
    %417 = vmatpush2.bf16.msra.mxu0 0
    %418 = vmatprep.subr.bf16.mxu0 0
    %419 = vmatpush2.bf16.msra.mxu0 0
    %420 = vmatprep.subr.bf16.mxu0 0
    %421 = vmatpush2.bf16.msra.mxu0 0
    %422 = vmatprep.subr.bf16.mxu0 0
    %423 = vmatpush2.bf16.msra.mxu0 0
    %424 = vmatprep.mubr.bf16.mxu0 0
    %425 = vmatmul.mubr.bf16.gmra.mxu0 %v390
    %v426 = vpop.f32.mrf.mxu0
    %v427 = vadd.f32 0.0, %v426
    %v428 = vpop.f32.mrf.mxu0
    %v429 = vpop.f32.mrf.mxu0
    %v430 = vpop.f32.mrf.mxu0
    %431 = vdwg.mxu0
    %v432 = vadd.f32 %v384, %v427
    %v433 = vxor.u32 %v432, 2147483648
    %v434 = vmul.f32 %v433, 1.442695
    %v435 = vpow.pop %v434
    %v436 = vadd.f32 %v435, 1.0
    %v437 = vrcp.pop %v436
    %v438 = vmul.f32 1.0, %v437
    %v439 = vtanh.pop %v432
    %v440 = vmul.f32 %v438, %v275
    %442 = vrot.lane.b32.xlu0 %v439, 64
    %v443 = vpop.permute.xlu0 %442
    %v445 = vmul.f32 %v438, %v443
    %447 = vrot.lane.b32.xlu0 %v445, 32
    %v448 = vpop.permute.xlu0 %447
    %v450 = vadd.f32 %v440, %v448
    %v451 = vtanh.pop %v450
    %453 = vrot.lane.b32.xlu0 %v451, 64
    %v454 = vpop.permute.xlu0 %453
    %v456 = vmul.f32 %v438, %v454
    %v457 = vsel %vm383, 1, 0
    %458 = vset.pattern.permute.xlu0 0
    %459 = vperm.xlu0 %458, %v457
    %v460 = vpop.permute.xlu0 %459
    %vm461 = vcmp.eq.s32.totalorder %v460, 1
    %v462 = vsel %vm461, %v456, %v274
    %v463 = vsel %vm461, %v450, %v275
    %v464 = vsel %vm461, %v456, 0.0
    %v465 = vpack.c.bf16 %v464, %v464
    %v467 = vunpack.c.l.b16 %v381
    %v468 = vpack.c.b16 %v467, %v467
    %469 = vrot.lane.b32.xlu0 %v468, 32
    %v470 = vpop.permute.xlu0 %469
    %s472 = scalar_lea.vmem [#allocation11], 4
    %473 = vst.msk [vmem:[%s472] sm:$0xf] %vm284, %v470
    %v475 = vunpack.c.l.b16 %v465
    %v476 = vpack.c.b16 %v475, %v475
    %477 = vrot.lane.b32.xlu0 %v476, 32
    %v478 = vpop.permute.xlu0 %477
    %s480 = scalar_lea.vmem [#allocation12], 4
    %481 = vst.msk [vmem:[%s480] sm:$0xf] %vm284, %v478
    %s482 = scalar_lea.vmem [#allocation6], 16
    %v483 = vld [vmem:[%s482] sm:$0xf]
    %v484 = vld [vmem:[%s482 + $0x4] sm:$0xf]
    %s485 = sadd.s32 %s67, 2
    %s486 = ssub.s32 5, %s67
    %v487 = vstv %s485
    %vm488 = vcmp.lt.s32.totalorder %v487, %v65
    %v489 = vunpack.c.l.bf16 %v483
    %v490 = vpack.c.bf16 %v378, %v378
    %492 = vrot.lane.b32.xlu0 %v490, 32
    %v493 = vpop.permute.xlu0 %492
    %v495 = vsel %vm91, %v493, 0
    %497 = vmatprep.subr.bf16.mxu0 0
    %498 = vmatpush1.bf16.msra.mxu0 0
    %499 = vmatprep.subr.bf16.mxu0 0
    %500 = vmatpush1.bf16.msra.mxu0 0
    %501 = vmatprep.subr.bf16.mxu0 0
    %502 = vmatpush1.bf16.msra.mxu0 0
    %503 = vmatprep.subr.bf16.mxu0 0
    %504 = vmatpush1.bf16.msra.mxu0 0
    %505 = vmatprep.subr.bf16.mxu0 0
    %506 = vmatpush1.bf16.msra.mxu0 0
    %507 = vmatprep.subr.bf16.mxu0 0
    %508 = vmatpush1.bf16.msra.mxu0 0
    %509 = vmatprep.subr.bf16.mxu0 0
    %510 = vmatpush1.bf16.msra.mxu0 %v88
    %511 = vmatprep.subr.bf16.mxu0 0
    %512 = vmatpush1.bf16.msra.mxu0 %v87
    %513 = vmatprep.subr.bf16.mxu0 0
    %514 = vmatpush2.bf16.msra.mxu0 0
    %515 = vmatprep.subr.bf16.mxu0 0
    %516 = vmatpush2.bf16.msra.mxu0 0
    %517 = vmatprep.subr.bf16.mxu0 0
    %518 = vmatpush2.bf16.msra.mxu0 0
    %519 = vmatprep.subr.bf16.mxu0 0
    %520 = vmatpush2.bf16.msra.mxu0 0
    %521 = vmatprep.subr.bf16.mxu0 0
    %522 = vmatpush2.bf16.msra.mxu0 0
    %523 = vmatprep.subr.bf16.mxu0 0
    %524 = vmatpush2.bf16.msra.mxu0 0
    %525 = vmatprep.subr.bf16.mxu0 0
    %526 = vmatpush2.bf16.msra.mxu0 0
    %527 = vmatprep.subr.bf16.mxu0 0
    %528 = vmatpush2.bf16.msra.mxu0 0
    %529 = vmatprep.mubr.bf16.mxu0 0
    %530 = vmatmul.mubr.bf16.gmra.mxu0 %v495
    %v531 = vpop.f32.mrf.mxu0
    %v532 = vadd.f32 0.0, %v531
    %v533 = vpop.f32.mrf.mxu0
    %v534 = vpop.f32.mrf.mxu0
    %v535 = vpop.f32.mrf.mxu0
    %536 = vdwg.mxu0
    %v537 = vadd.f32 %v489, %v532
    %v538 = vxor.u32 %v537, 2147483648
    %v539 = vmul.f32 %v538, 1.442695
    %v540 = vpow.pop %v539
    %v541 = vadd.f32 %v540, 1.0
    %v542 = vrcp.pop %v541
    %v543 = vmul.f32 1.0, %v542
    %v544 = vtanh.pop %v537
    %v545 = vmul.f32 %v543, %v379
    %547 = vrot.lane.b32.xlu0 %v544, 64
    %v548 = vpop.permute.xlu0 %547
    %v550 = vmul.f32 %v543, %v548
    %552 = vrot.lane.b32.xlu0 %v550, 32
    %v553 = vpop.permute.xlu0 %552
    %v555 = vadd.f32 %v545, %v553
    %v556 = vtanh.pop %v555
    %558 = vrot.lane.b32.xlu0 %v556, 64
    %v559 = vpop.permute.xlu0 %558
    %v561 = vmul.f32 %v543, %v559
    %v562 = vsel %vm488, 1, 0
    %563 = vset.pattern.permute.xlu0 0
    %564 = vperm.xlu0 %563, %v562
    %v565 = vpop.permute.xlu0 %564
    %vm566 = vcmp.eq.s32.totalorder %v565, 1
    %v567 = vsel %vm566, %v561, %v378
    %v568 = vsel %vm566, %v555, %v379
    %v569 = vsel %vm566, %v561, 0.0
    %v570 = vpack.c.bf16 %v569, %v569
    %v571 = vstv %s486
    %vm572 = vcmp.lt.s32.totalorder %v571, %v66
    %v573 = vunpack.c.l.bf16 %v484
    %v574 = vpack.c.bf16 %v462, %v462
    %576 = vrot.lane.b32.xlu0 %v574, 32
    %v577 = vpop.permute.xlu0 %576
    %v579 = vsel %vm91, %v577, 0
    %581 = vmatprep.subr.bf16.mxu0 0
    %582 = vmatpush1.bf16.msra.mxu0 0
    %583 = vmatprep.subr.bf16.mxu0 0
    %584 = vmatpush1.bf16.msra.mxu0 0
    %585 = vmatprep.subr.bf16.mxu0 0
    %586 = vmatpush1.bf16.msra.mxu0 0
    %587 = vmatprep.subr.bf16.mxu0 0
    %588 = vmatpush1.bf16.msra.mxu0 0
    %589 = vmatprep.subr.bf16.mxu0 0
    %590 = vmatpush1.bf16.msra.mxu0 0
    %591 = vmatprep.subr.bf16.mxu0 0
    %592 = vmatpush1.bf16.msra.mxu0 0
    %593 = vmatprep.subr.bf16.mxu0 0
    %594 = vmatpush1.bf16.msra.mxu0 %v190
    %595 = vmatprep.subr.bf16.mxu0 0
    %596 = vmatpush1.bf16.msra.mxu0 %v189
    %597 = vmatprep.subr.bf16.mxu0 0
    %598 = vmatpush2.bf16.msra.mxu0 0
    %599 = vmatprep.subr.bf16.mxu0 0
    %600 = vmatpush2.bf16.msra.mxu0 0
    %601 = vmatprep.subr.bf16.mxu0 0
    %602 = vmatpush2.bf16.msra.mxu0 0
    %603 = vmatprep.subr.bf16.mxu0 0
    %604 = vmatpush2.bf16.msra.mxu0 0
    %605 = vmatprep.subr.bf16.mxu0 0
    %606 = vmatpush2.bf16.msra.mxu0 0
    %607 = vmatprep.subr.bf16.mxu0 0
    %608 = vmatpush2.bf16.msra.mxu0 0
    %609 = vmatprep.subr.bf16.mxu0 0
    %610 = vmatpush2.bf16.msra.mxu0 0
    %611 = vmatprep.subr.bf16.mxu0 0
    %612 = vmatpush2.bf16.msra.mxu0 0
    %613 = vmatprep.mubr.bf16.mxu0 0
    %614 = vmatmul.mubr.bf16.gmra.mxu0 %v579
    %v615 = vpop.f32.mrf.mxu0
    %v616 = vadd.f32 0.0, %v615
    %v617 = vpop.f32.mrf.mxu0
    %v618 = vpop.f32.mrf.mxu0
    %v619 = vpop.f32.mrf.mxu0
    %620 = vdwg.mxu0
    %v621 = vadd.f32 %v573, %v616
    %v622 = vxor.u32 %v621, 2147483648
    %v623 = vmul.f32 %v622, 1.442695
    %v624 = vpow.pop %v623
    %v625 = vadd.f32 %v624, 1.0
    %v626 = vrcp.pop %v625
    %v627 = vmul.f32 1.0, %v626
    %v628 = vtanh.pop %v621
    %v629 = vmul.f32 %v627, %v463
    %631 = vrot.lane.b32.xlu0 %v628, 64
    %v632 = vpop.permute.xlu0 %631
    %v634 = vmul.f32 %v627, %v632
    %636 = vrot.lane.b32.xlu0 %v634, 32
    %v637 = vpop.permute.xlu0 %636
    %v639 = vadd.f32 %v629, %v637
    %v640 = vtanh.pop %v639
    %642 = vrot.lane.b32.xlu0 %v640, 64
    %v643 = vpop.permute.xlu0 %642
    %v645 = vmul.f32 %v627, %v643
    %v646 = vsel %vm572, 1, 0
    %647 = vset.pattern.permute.xlu0 0
    %648 = vperm.xlu0 %647, %v646
    %v649 = vpop.permute.xlu0 %648
    %vm650 = vcmp.eq.s32.totalorder %v649, 1
    %v651 = vsel %vm650, %v645, %v462
    %v652 = vsel %vm650, %v639, %v463
    %v653 = vsel %vm650, %v645, 0.0
    %v654 = vpack.c.bf16 %v653, %v653
    %v656 = vunpack.c.l.b16 %v570
    %v657 = vpack.c.b16 %v656, %v656
    %658 = vrot.lane.b32.xlu0 %v657, 32
    %v659 = vpop.permute.xlu0 %658
    %s661 = scalar_lea.vmem [#allocation11], 8
    %662 = vst.msk [vmem:[%s661] sm:$0xf] %vm284, %v659
    %v664 = vunpack.c.l.b16 %v654
    %v665 = vpack.c.b16 %v664, %v664
    %666 = vrot.lane.b32.xlu0 %v665, 32
    %v667 = vpop.permute.xlu0 %666
    %s669 = scalar_lea.vmem [#allocation12], 8
    %670 = vst.msk [vmem:[%s669] sm:$0xf] %vm284, %v667
    %s671 = scalar_lea.vmem [#allocation6], 24
    %v672 = vld [vmem:[%s671] sm:$0xf]
    %v673 = vld [vmem:[%s671 + $0x4] sm:$0xf]
    %s674 = sadd.s32 %s67, 3
    %s675 = ssub.s32 4, %s67
    %v676 = vstv %s674
    %vm677 = vcmp.lt.s32.totalorder %v676, %v65
    %v678 = vunpack.c.l.bf16 %v672
    %v679 = vpack.c.bf16 %v567, %v567
    %681 = vrot.lane.b32.xlu0 %v679, 32
    %v682 = vpop.permute.xlu0 %681
    %v684 = vsel %vm91, %v682, 0
    %686 = vmatprep.subr.bf16.mxu0 0
    %687 = vmatpush1.bf16.msra.mxu0 0
    %688 = vmatprep.subr.bf16.mxu0 0
    %689 = vmatpush1.bf16.msra.mxu0 0
    %690 = vmatprep.subr.bf16.mxu0 0
    %691 = vmatpush1.bf16.msra.mxu0 0
    %692 = vmatprep.subr.bf16.mxu0 0
    %693 = vmatpush1.bf16.msra.mxu0 0
    %694 = vmatprep.subr.bf16.mxu0 0
    %695 = vmatpush1.bf16.msra.mxu0 0
    %696 = vmatprep.subr.bf16.mxu0 0
    %697 = vmatpush1.bf16.msra.mxu0 0
    %698 = vmatprep.subr.bf16.mxu0 0
    %699 = vmatpush1.bf16.msra.mxu0 %v88
    %700 = vmatprep.subr.bf16.mxu0 0
    %701 = vmatpush1.bf16.msra.mxu0 %v87
    %702 = vmatprep.subr.bf16.mxu0 0
    %703 = vmatpush2.bf16.msra.mxu0 0
    %704 = vmatprep.subr.bf16.mxu0 0
    %705 = vmatpush2.bf16.msra.mxu0 0
    %706 = vmatprep.subr.bf16.mxu0 0
    %707 = vmatpush2.bf16.msra.mxu0 0
    %708 = vmatprep.subr.bf16.mxu0 0
    %709 = vmatpush2.bf16.msra.mxu0 0
    %710 = vmatprep.subr.bf16.mxu0 0
    %711 = vmatpush2.bf16.msra.mxu0 0
    %712 = vmatprep.subr.bf16.mxu0 0
    %713 = vmatpush2.bf16.msra.mxu0 0
    %714 = vmatprep.subr.bf16.mxu0 0
    %715 = vmatpush2.bf16.msra.mxu0 0
    %716 = vmatprep.subr.bf16.mxu0 0
    %717 = vmatpush2.bf16.msra.mxu0 0
    %718 = vmatprep.mubr.bf16.mxu0 0
    %719 = vmatmul.mubr.bf16.gmra.mxu0 %v684
    %v720 = vpop.f32.mrf.mxu0
    %v721 = vadd.f32 0.0, %v720
    %v722 = vpop.f32.mrf.mxu0
    %v723 = vpop.f32.mrf.mxu0
    %v724 = vpop.f32.mrf.mxu0
    %725 = vdwg.mxu0
    %v726 = vadd.f32 %v678, %v721
    %v727 = vxor.u32 %v726, 2147483648
    %v728 = vmul.f32 %v727, 1.442695
    %v729 = vpow.pop %v728
    %v730 = vadd.f32 %v729, 1.0
    %v731 = vrcp.pop %v730
    %v732 = vmul.f32 1.0, %v731
    %v733 = vtanh.pop %v726
    %v734 = vmul.f32 %v732, %v568
    %736 = vrot.lane.b32.xlu0 %v733, 64
    %v737 = vpop.permute.xlu0 %736
    %v739 = vmul.f32 %v732, %v737
    %741 = vrot.lane.b32.xlu0 %v739, 32
    %v742 = vpop.permute.xlu0 %741
    %v744 = vadd.f32 %v734, %v742
    %v745 = vtanh.pop %v744
    %747 = vrot.lane.b32.xlu0 %v745, 64
    %v748 = vpop.permute.xlu0 %747
    %v750 = vmul.f32 %v732, %v748
    %v751 = vsel %vm677, 1, 0
    %752 = vset.pattern.permute.xlu0 0
    %753 = vperm.xlu0 %752, %v751
    %v754 = vpop.permute.xlu0 %753
    %vm755 = vcmp.eq.s32.totalorder %v754, 1
    %v756 = vsel %vm755, %v750, %v567
    %v757 = vsel %vm755, %v744, %v568
    %v758 = vsel %vm755, %v750, 0.0
    %v759 = vpack.c.bf16 %v758, %v758
    %v760 = vstv %s675
    %vm761 = vcmp.lt.s32.totalorder %v760, %v66
    %v762 = vunpack.c.l.bf16 %v673
    %v763 = vpack.c.bf16 %v651, %v651
    %765 = vrot.lane.b32.xlu0 %v763, 32
    %v766 = vpop.permute.xlu0 %765
    %v768 = vsel %vm91, %v766, 0
    %770 = vmatprep.subr.bf16.mxu0 0
    %771 = vmatpush1.bf16.msra.mxu0 0
    %772 = vmatprep.subr.bf16.mxu0 0
    %773 = vmatpush1.bf16.msra.mxu0 0
    %774 = vmatprep.subr.bf16.mxu0 0
    %775 = vmatpush1.bf16.msra.mxu0 0
    %776 = vmatprep.subr.bf16.mxu0 0
    %777 = vmatpush1.bf16.msra.mxu0 0
    %778 = vmatprep.subr.bf16.mxu0 0
    %779 = vmatpush1.bf16.msra.mxu0 0
    %780 = vmatprep.subr.bf16.mxu0 0
    %781 = vmatpush1.bf16.msra.mxu0 0
    %782 = vmatprep.subr.bf16.mxu0 0
    %783 = vmatpush1.bf16.msra.mxu0 %v190
    %784 = vmatprep.subr.bf16.mxu0 0
    %785 = vmatpush1.bf16.msra.mxu0 %v189
    %786 = vmatprep.subr.bf16.mxu0 0
    %787 = vmatpush2.bf16.msra.mxu0 0
    %788 = vmatprep.subr.bf16.mxu0 0
    %789 = vmatpush2.bf16.msra.mxu0 0
    %790 = vmatprep.subr.bf16.mxu0 0
    %791 = vmatpush2.bf16.msra.mxu0 0
    %792 = vmatprep.subr.bf16.mxu0 0
    %793 = vmatpush2.bf16.msra.mxu0 0
    %794 = vmatprep.subr.bf16.mxu0 0
    %795 = vmatpush2.bf16.msra.mxu0 0
    %796 = vmatprep.subr.bf16.mxu0 0
    %797 = vmatpush2.bf16.msra.mxu0 0
    %798 = vmatprep.subr.bf16.mxu0 0
    %799 = vmatpush2.bf16.msra.mxu0 0
    %800 = vmatprep.subr.bf16.mxu0 0
    %801 = vmatpush2.bf16.msra.mxu0 0
    %802 = vmatprep.mubr.bf16.mxu0 0
    %803 = vmatmul.mubr.bf16.gmra.mxu0 %v768
    %v804 = vpop.f32.mrf.mxu0
    %v805 = vadd.f32 0.0, %v804
    %v806 = vpop.f32.mrf.mxu0
    %v807 = vpop.f32.mrf.mxu0
    %v808 = vpop.f32.mrf.mxu0
    %809 = vdwg.mxu0
    %v810 = vadd.f32 %v762, %v805
    %v811 = vxor.u32 %v810, 2147483648
    %v812 = vmul.f32 %v811, 1.442695
    %v813 = vpow.pop %v812
    %v814 = vadd.f32 %v813, 1.0
    %v815 = vrcp.pop %v814
    %v816 = vmul.f32 1.0, %v815
    %v817 = vtanh.pop %v810
    %v818 = vmul.f32 %v816, %v652
    %820 = vrot.lane.b32.xlu0 %v817, 64
    %v821 = vpop.permute.xlu0 %820
    %v823 = vmul.f32 %v816, %v821
    %825 = vrot.lane.b32.xlu0 %v823, 32
    %v826 = vpop.permute.xlu0 %825
    %v828 = vadd.f32 %v818, %v826
    %v829 = vtanh.pop %v828
    %831 = vrot.lane.b32.xlu0 %v829, 64
    %v832 = vpop.permute.xlu0 %831
    %v834 = vmul.f32 %v816, %v832
    %v835 = vsel %vm761, 1, 0
    %836 = vset.pattern.permute.xlu0 0
    %837 = vperm.xlu0 %836, %v835
    %v838 = vpop.permute.xlu0 %837
    %vm839 = vcmp.eq.s32.totalorder %v838, 1
    %v840 = vsel %vm839, %v834, %v651
    %v841 = vsel %vm839, %v828, %v652
    %v842 = vsel %vm839, %v834, 0.0
    %v843 = vpack.c.bf16 %v842, %v842
    %v845 = vunpack.c.l.b16 %v759
    %v846 = vpack.c.b16 %v845, %v845
    %847 = vrot.lane.b32.xlu0 %v846, 32
    %v848 = vpop.permute.xlu0 %847
    %s850 = scalar_lea.vmem [#allocation11], 12
    %851 = vst.msk [vmem:[%s850] sm:$0xf] %vm284, %v848
    %v853 = vunpack.c.l.b16 %v843
    %v854 = vpack.c.b16 %v853, %v853
    %855 = vrot.lane.b32.xlu0 %v854, 32
    %v856 = vpop.permute.xlu0 %855
    %s858 = scalar_lea.vmem [#allocation12], 12
    %859 = vst.msk [vmem:[%s858] sm:$0xf] %vm284, %v856
    %s860 = scalar_lea.vmem [#allocation6], 32
    %v861 = vld [vmem:[%s860] sm:$0xf]
    %v862 = vld [vmem:[%s860 + $0x4] sm:$0xf]
    %s863 = sadd.s32 %s67, 4
    %s864 = ssub.s32 3, %s67
    %v865 = vstv %s863
    %vm866 = vcmp.lt.s32.totalorder %v865, %v65
    %v867 = vunpack.c.l.bf16 %v861
    %v868 = vpack.c.bf16 %v756, %v756
    %870 = vrot.lane.b32.xlu0 %v868, 32
    %v871 = vpop.permute.xlu0 %870
    %v873 = vsel %vm91, %v871, 0
    %875 = vmatprep.subr.bf16.mxu0 0
    %876 = vmatpush1.bf16.msra.mxu0 0
    %877 = vmatprep.subr.bf16.mxu0 0
    %878 = vmatpush1.bf16.msra.mxu0 0
    %879 = vmatprep.subr.bf16.mxu0 0
    %880 = vmatpush1.bf16.msra.mxu0 0
    %881 = vmatprep.subr.bf16.mxu0 0
    %882 = vmatpush1.bf16.msra.mxu0 0
    %883 = vmatprep.subr.bf16.mxu0 0
    %884 = vmatpush1.bf16.msra.mxu0 0
    %885 = vmatprep.subr.bf16.mxu0 0
    %886 = vmatpush1.bf16.msra.mxu0 0
    %887 = vmatprep.subr.bf16.mxu0 0
    %888 = vmatpush1.bf16.msra.mxu0 %v88
    %889 = vmatprep.subr.bf16.mxu0 0
    %890 = vmatpush1.bf16.msra.mxu0 %v87
    %891 = vmatprep.subr.bf16.mxu0 0
    %892 = vmatpush2.bf16.msra.mxu0 0
    %893 = vmatprep.subr.bf16.mxu0 0
    %894 = vmatpush2.bf16.msra.mxu0 0
    %895 = vmatprep.subr.bf16.mxu0 0
    %896 = vmatpush2.bf16.msra.mxu0 0
    %897 = vmatprep.subr.bf16.mxu0 0
    %898 = vmatpush2.bf16.msra.mxu0 0
    %899 = vmatprep.subr.bf16.mxu0 0
    %900 = vmatpush2.bf16.msra.mxu0 0
    %901 = vmatprep.subr.bf16.mxu0 0
    %902 = vmatpush2.bf16.msra.mxu0 0
    %903 = vmatprep.subr.bf16.mxu0 0
    %904 = vmatpush2.bf16.msra.mxu0 0
    %905 = vmatprep.subr.bf16.mxu0 0
    %906 = vmatpush2.bf16.msra.mxu0 0
    %907 = vmatprep.mubr.bf16.mxu0 0
    %908 = vmatmul.mubr.bf16.gmra.mxu0 %v873
    %v909 = vpop.f32.mrf.mxu0
    %v910 = vadd.f32 0.0, %v909
    %v911 = vpop.f32.mrf.mxu0
    %v912 = vpop.f32.mrf.mxu0
    %v913 = vpop.f32.mrf.mxu0
    %914 = vdwg.mxu0
    %v915 = vadd.f32 %v867, %v910
    %v916 = vxor.u32 %v915, 2147483648
    %v917 = vmul.f32 %v916, 1.442695
    %v918 = vpow.pop %v917
    %v919 = vadd.f32 %v918, 1.0
    %v920 = vrcp.pop %v919
    %v921 = vmul.f32 1.0, %v920
    %v922 = vtanh.pop %v915
    %v923 = vmul.f32 %v921, %v757
    %925 = vrot.lane.b32.xlu0 %v922, 64
    %v926 = vpop.permute.xlu0 %925
    %v928 = vmul.f32 %v921, %v926
    %930 = vrot.lane.b32.xlu0 %v928, 32
    %v931 = vpop.permute.xlu0 %930
    %v933 = vadd.f32 %v923, %v931
    %v934 = vtanh.pop %v933
    %936 = vrot.lane.b32.xlu0 %v934, 64
    %v937 = vpop.permute.xlu0 %936
    %v939 = vmul.f32 %v921, %v937
    %v940 = vsel %vm866, 1, 0
    %941 = vset.pattern.permute.xlu0 0
    %942 = vperm.xlu0 %941, %v940
    %v943 = vpop.permute.xlu0 %942
    %vm944 = vcmp.eq.s32.totalorder %v943, 1
    %v945 = vsel %vm944, %v939, %v756
    %v946 = vsel %vm944, %v933, %v757
    %v947 = vsel %vm944, %v939, 0.0
    %v948 = vpack.c.bf16 %v947, %v947
    %v949 = vstv %s864
    %vm950 = vcmp.lt.s32.totalorder %v949, %v66
    %v951 = vunpack.c.l.bf16 %v862
    %v952 = vpack.c.bf16 %v840, %v840
    %954 = vrot.lane.b32.xlu0 %v952, 32
    %v955 = vpop.permute.xlu0 %954
    %v957 = vsel %vm91, %v955, 0
    %959 = vmatprep.subr.bf16.mxu0 0
    %960 = vmatpush1.bf16.msra.mxu0 0
    %961 = vmatprep.subr.bf16.mxu0 0
    %962 = vmatpush1.bf16.msra.mxu0 0
    %963 = vmatprep.subr.bf16.mxu0 0
    %964 = vmatpush1.bf16.msra.mxu0 0
    %965 = vmatprep.subr.bf16.mxu0 0
    %966 = vmatpush1.bf16.msra.mxu0 0
    %967 = vmatprep.subr.bf16.mxu0 0
    %968 = vmatpush1.bf16.msra.mxu0 0
    %969 = vmatprep.subr.bf16.mxu0 0
    %970 = vmatpush1.bf16.msra.mxu0 0
    %971 = vmatprep.subr.bf16.mxu0 0
    %972 = vmatpush1.bf16.msra.mxu0 %v190
    %973 = vmatprep.subr.bf16.mxu0 0
    %974 = vmatpush1.bf16.msra.mxu0 %v189
    %975 = vmatprep.subr.bf16.mxu0 0
    %976 = vmatpush2.bf16.msra.mxu0 0
    %977 = vmatprep.subr.bf16.mxu0 0
    %978 = vmatpush2.bf16.msra.mxu0 0
    %979 = vmatprep.subr.bf16.mxu0 0
    %980 = vmatpush2.bf16.msra.mxu0 0
    %981 = vmatprep.subr.bf16.mxu0 0
    %982 = vmatpush2.bf16.msra.mxu0 0
    %983 = vmatprep.subr.bf16.mxu0 0
    %984 = vmatpush2.bf16.msra.mxu0 0
    %985 = vmatprep.subr.bf16.mxu0 0
    %986 = vmatpush2.bf16.msra.mxu0 0
    %987 = vmatprep.subr.bf16.mxu0 0
    %988 = vmatpush2.bf16.msra.mxu0 0
    %989 = vmatprep.subr.bf16.mxu0 0
    %990 = vmatpush2.bf16.msra.mxu0 0
    %991 = vmatprep.mubr.bf16.mxu0 0
    %992 = vmatmul.mubr.bf16.gmra.mxu0 %v957
    %v993 = vpop.f32.mrf.mxu0
    %v994 = vadd.f32 0.0, %v993
    %v995 = vpop.f32.mrf.mxu0
    %v996 = vpop.f32.mrf.mxu0
    %v997 = vpop.f32.mrf.mxu0
    %998 = vdwg.mxu0
    %v999 = vadd.f32 %v951, %v994
    %v1000 = vxor.u32 %v999, 2147483648
    %v1001 = vmul.f32 %v1000, 1.442695
    %v1002 = vpow.pop %v1001
    %v1003 = vadd.f32 %v1002, 1.0
    %v1004 = vrcp.pop %v1003
    %v1005 = vmul.f32 1.0, %v1004
    %v1006 = vtanh.pop %v999
    %v1007 = vmul.f32 %v1005, %v841
    %1009 = vrot.lane.b32.xlu0 %v1006, 64
    %v1010 = vpop.permute.xlu0 %1009
    %v1012 = vmul.f32 %v1005, %v1010
    %1014 = vrot.lane.b32.xlu0 %v1012, 32
    %v1015 = vpop.permute.xlu0 %1014
    %v1017 = vadd.f32 %v1007, %v1015
    %v1018 = vtanh.pop %v1017
    %1020 = vrot.lane.b32.xlu0 %v1018, 64
    %v1021 = vpop.permute.xlu0 %1020
    %v1023 = vmul.f32 %v1005, %v1021
    %v1024 = vsel %vm950, 1, 0
    %1025 = vset.pattern.permute.xlu0 0
    %1026 = vperm.xlu0 %1025, %v1024
    %v1027 = vpop.permute.xlu0 %1026
    %vm1028 = vcmp.eq.s32.totalorder %v1027, 1
    %v1029 = vsel %vm1028, %v1023, %v840
    %v1030 = vsel %vm1028, %v1017, %v841
    %v1031 = vsel %vm1028, %v1023, 0.0
    %v1032 = vpack.c.bf16 %v1031, %v1031
    %v1034 = vunpack.c.l.b16 %v948
    %v1035 = vpack.c.b16 %v1034, %v1034
    %1036 = vrot.lane.b32.xlu0 %v1035, 32
    %v1037 = vpop.permute.xlu0 %1036
    %s1039 = scalar_lea.vmem [#allocation11], 16
    %1040 = vst.msk [vmem:[%s1039] sm:$0xf] %vm284, %v1037
    %v1042 = vunpack.c.l.b16 %v1032
    %v1043 = vpack.c.b16 %v1042, %v1042
    %1044 = vrot.lane.b32.xlu0 %v1043, 32
    %v1045 = vpop.permute.xlu0 %1044
    %s1047 = scalar_lea.vmem [#allocation12], 16
    %1048 = vst.msk [vmem:[%s1047] sm:$0xf] %vm284, %v1045
    %s1049 = scalar_lea.vmem [#allocation6], 40
    %v1050 = vld [vmem:[%s1049] sm:$0xf]
    %v1051 = vld [vmem:[%s1049 + $0x4] sm:$0xf]
    %s1052 = sadd.s32 %s67, 5
    %s1053 = ssub.s32 2, %s67
    %v1054 = vstv %s1052
    %vm1055 = vcmp.lt.s32.totalorder %v1054, %v65
    %v1056 = vunpack.c.l.bf16 %v1050
    %v1057 = vpack.c.bf16 %v945, %v945
    %1059 = vrot.lane.b32.xlu0 %v1057, 32
    %v1060 = vpop.permute.xlu0 %1059
    %v1062 = vsel %vm91, %v1060, 0
    %1064 = vmatprep.subr.bf16.mxu0 0
    %1065 = vmatpush1.bf16.msra.mxu0 0
    %1066 = vmatprep.subr.bf16.mxu0 0
    %1067 = vmatpush1.bf16.msra.mxu0 0
    %1068 = vmatprep.subr.bf16.mxu0 0
    %1069 = vmatpush1.bf16.msra.mxu0 0
    %1070 = vmatprep.subr.bf16.mxu0 0
    %1071 = vmatpush1.bf16.msra.mxu0 0
    %1072 = vmatprep.subr.bf16.mxu0 0
    %1073 = vmatpush1.bf16.msra.mxu0 0
    %1074 = vmatprep.subr.bf16.mxu0 0
    %1075 = vmatpush1.bf16.msra.mxu0 0
    %1076 = vmatprep.subr.bf16.mxu0 0
    %1077 = vmatpush1.bf16.msra.mxu0 %v88
    %1078 = vmatprep.subr.bf16.mxu0 0
    %1079 = vmatpush1.bf16.msra.mxu0 %v87
    %1080 = vmatprep.subr.bf16.mxu0 0
    %1081 = vmatpush2.bf16.msra.mxu0 0
    %1082 = vmatprep.subr.bf16.mxu0 0
    %1083 = vmatpush2.bf16.msra.mxu0 0
    %1084 = vmatprep.subr.bf16.mxu0 0
    %1085 = vmatpush2.bf16.msra.mxu0 0
    %1086 = vmatprep.subr.bf16.mxu0 0
    %1087 = vmatpush2.bf16.msra.mxu0 0
    %1088 = vmatprep.subr.bf16.mxu0 0
    %1089 = vmatpush2.bf16.msra.mxu0 0
    %1090 = vmatprep.subr.bf16.mxu0 0
    %1091 = vmatpush2.bf16.msra.mxu0 0
    %1092 = vmatprep.subr.bf16.mxu0 0
    %1093 = vmatpush2.bf16.msra.mxu0 0
    %1094 = vmatprep.subr.bf16.mxu0 0
    %1095 = vmatpush2.bf16.msra.mxu0 0
    %1096 = vmatprep.mubr.bf16.mxu0 0
    %1097 = vmatmul.mubr.bf16.gmra.mxu0 %v1062
    %v1098 = vpop.f32.mrf.mxu0
    %v1099 = vadd.f32 0.0, %v1098
    %v1100 = vpop.f32.mrf.mxu0
    %v1101 = vpop.f32.mrf.mxu0
    %v1102 = vpop.f32.mrf.mxu0
    %1103 = vdwg.mxu0
    %v1104 = vadd.f32 %v1056, %v1099
    %v1105 = vxor.u32 %v1104, 2147483648
    %v1106 = vmul.f32 %v1105, 1.442695
    %v1107 = vpow.pop %v1106
    %v1108 = vadd.f32 %v1107, 1.0
    %v1109 = vrcp.pop %v1108
    %v1110 = vmul.f32 1.0, %v1109
    %v1111 = vtanh.pop %v1104
    %v1112 = vmul.f32 %v1110, %v946
    %1114 = vrot.lane.b32.xlu0 %v1111, 64
    %v1115 = vpop.permute.xlu0 %1114
    %v1117 = vmul.f32 %v1110, %v1115
    %1119 = vrot.lane.b32.xlu0 %v1117, 32
    %v1120 = vpop.permute.xlu0 %1119
    %v1122 = vadd.f32 %v1112, %v1120
    %v1123 = vtanh.pop %v1122
    %1125 = vrot.lane.b32.xlu0 %v1123, 64
    %v1126 = vpop.permute.xlu0 %1125
    %v1128 = vmul.f32 %v1110, %v1126
    %v1129 = vsel %vm1055, 1, 0
    %1130 = vset.pattern.permute.xlu0 0
    %1131 = vperm.xlu0 %1130, %v1129
    %v1132 = vpop.permute.xlu0 %1131
    %vm1133 = vcmp.eq.s32.totalorder %v1132, 1
    %v1134 = vsel %vm1133, %v1128, %v945
    %v1135 = vsel %vm1133, %v1122, %v946
    %v1136 = vsel %vm1133, %v1128, 0.0
    %v1137 = vpack.c.bf16 %v1136, %v1136
    %v1138 = vstv %s1053
    %vm1139 = vcmp.lt.s32.totalorder %v1138, %v66
    %v1140 = vunpack.c.l.bf16 %v1051
    %v1141 = vpack.c.bf16 %v1029, %v1029
    %1143 = vrot.lane.b32.xlu0 %v1141, 32
    %v1144 = vpop.permute.xlu0 %1143
    %v1146 = vsel %vm91, %v1144, 0
    %1148 = vmatprep.subr.bf16.mxu0 0
    %1149 = vmatpush1.bf16.msra.mxu0 0
    %1150 = vmatprep.subr.bf16.mxu0 0
    %1151 = vmatpush1.bf16.msra.mxu0 0
    %1152 = vmatprep.subr.bf16.mxu0 0
    %1153 = vmatpush1.bf16.msra.mxu0 0
    %1154 = vmatprep.subr.bf16.mxu0 0
    %1155 = vmatpush1.bf16.msra.mxu0 0
    %1156 = vmatprep.subr.bf16.mxu0 0
    %1157 = vmatpush1.bf16.msra.mxu0 0
    %1158 = vmatprep.subr.bf16.mxu0 0
    %1159 = vmatpush1.bf16.msra.mxu0 0
    %1160 = vmatprep.subr.bf16.mxu0 0
    %1161 = vmatpush1.bf16.msra.mxu0 %v190
    %1162 = vmatprep.subr.bf16.mxu0 0
    %1163 = vmatpush1.bf16.msra.mxu0 %v189
    %1164 = vmatprep.subr.bf16.mxu0 0
    %1165 = vmatpush2.bf16.msra.mxu0 0
    %1166 = vmatprep.subr.bf16.mxu0 0
    %1167 = vmatpush2.bf16.msra.mxu0 0
    %1168 = vmatprep.subr.bf16.mxu0 0
    %1169 = vmatpush2.bf16.msra.mxu0 0
    %1170 = vmatprep.subr.bf16.mxu0 0
    %1171 = vmatpush2.bf16.msra.mxu0 0
    %1172 = vmatprep.subr.bf16.mxu0 0
    %1173 = vmatpush2.bf16.msra.mxu0 0
    %1174 = vmatprep.subr.bf16.mxu0 0
    %1175 = vmatpush2.bf16.msra.mxu0 0
    %1176 = vmatprep.subr.bf16.mxu0 0
    %1177 = vmatpush2.bf16.msra.mxu0 0
    %1178 = vmatprep.subr.bf16.mxu0 0
    %1179 = vmatpush2.bf16.msra.mxu0 0
    %1180 = vmatprep.mubr.bf16.mxu0 0
    %1181 = vmatmul.mubr.bf16.gmra.mxu0 %v1146
    %v1182 = vpop.f32.mrf.mxu0
    %v1183 = vadd.f32 0.0, %v1182
    %v1184 = vpop.f32.mrf.mxu0
    %v1185 = vpop.f32.mrf.mxu0
    %v1186 = vpop.f32.mrf.mxu0
    %1187 = vdwg.mxu0
    %v1188 = vadd.f32 %v1140, %v1183
    %v1189 = vxor.u32 %v1188, 2147483648
    %v1190 = vmul.f32 %v1189, 1.442695
    %v1191 = vpow.pop %v1190
    %v1192 = vadd.f32 %v1191, 1.0
    %v1193 = vrcp.pop %v1192
    %v1194 = vmul.f32 1.0, %v1193
    %v1195 = vtanh.pop %v1188
    %v1196 = vmul.f32 %v1194, %v1030
    %1198 = vrot.lane.b32.xlu0 %v1195, 64
    %v1199 = vpop.permute.xlu0 %1198
    %v1201 = vmul.f32 %v1194, %v1199
    %1203 = vrot.lane.b32.xlu0 %v1201, 32
    %v1204 = vpop.permute.xlu0 %1203
    %v1206 = vadd.f32 %v1196, %v1204
    %v1207 = vtanh.pop %v1206
    %1209 = vrot.lane.b32.xlu0 %v1207, 64
    %v1210 = vpop.permute.xlu0 %1209
    %v1212 = vmul.f32 %v1194, %v1210
    %v1213 = vsel %vm1139, 1, 0
    %1214 = vset.pattern.permute.xlu0 0
    %1215 = vperm.xlu0 %1214, %v1213
    %v1216 = vpop.permute.xlu0 %1215
    %vm1217 = vcmp.eq.s32.totalorder %v1216, 1
    %v1218 = vsel %vm1217, %v1212, %v1029
    %v1219 = vsel %vm1217, %v1206, %v1030
    %v1220 = vsel %vm1217, %v1212, 0.0
    %v1221 = vpack.c.bf16 %v1220, %v1220
    %v1223 = vunpack.c.l.b16 %v1137
    %v1224 = vpack.c.b16 %v1223, %v1223
    %1225 = vrot.lane.b32.xlu0 %v1224, 32
    %v1226 = vpop.permute.xlu0 %1225
    %s1228 = scalar_lea.vmem [#allocation11], 20
    %1229 = vst.msk [vmem:[%s1228] sm:$0xf] %vm284, %v1226
    %v1231 = vunpack.c.l.b16 %v1221
    %v1232 = vpack.c.b16 %v1231, %v1231
    %1233 = vrot.lane.b32.xlu0 %v1232, 32
    %v1234 = vpop.permute.xlu0 %1233
    %s1236 = scalar_lea.vmem [#allocation12], 20
    %1237 = vst.msk [vmem:[%s1236] sm:$0xf] %vm284, %v1234
    %s1238 = scalar_lea.vmem [#allocation6], 48
    %v1239 = vld [vmem:[%s1238] sm:$0xf]
    %v1240 = vld [vmem:[%s1238 + $0x4] sm:$0xf]
    %s1241 = sadd.s32 %s67, 6
    %s1242 = ssub.s32 1, %s67
    %v1243 = vstv %s1241
    %vm1244 = vcmp.lt.s32.totalorder %v1243, %v65
    %v1245 = vunpack.c.l.bf16 %v1239
    %v1246 = vpack.c.bf16 %v1134, %v1134
    %1248 = vrot.lane.b32.xlu0 %v1246, 32
    %v1249 = vpop.permute.xlu0 %1248
    %v1251 = vsel %vm91, %v1249, 0
    %1253 = vmatprep.subr.bf16.mxu0 0
    %1254 = vmatpush1.bf16.msra.mxu0 0
    %1255 = vmatprep.subr.bf16.mxu0 0
    %1256 = vmatpush1.bf16.msra.mxu0 0
    %1257 = vmatprep.subr.bf16.mxu0 0
    %1258 = vmatpush1.bf16.msra.mxu0 0
    %1259 = vmatprep.subr.bf16.mxu0 0
    %1260 = vmatpush1.bf16.msra.mxu0 0
    %1261 = vmatprep.subr.bf16.mxu0 0
    %1262 = vmatpush1.bf16.msra.mxu0 0
    %1263 = vmatprep.subr.bf16.mxu0 0
    %1264 = vmatpush1.bf16.msra.mxu0 0
    %1265 = vmatprep.subr.bf16.mxu0 0
    %1266 = vmatpush1.bf16.msra.mxu0 %v88
    %1267 = vmatprep.subr.bf16.mxu0 0
    %1268 = vmatpush1.bf16.msra.mxu0 %v87
    %1269 = vmatprep.subr.bf16.mxu0 0
    %1270 = vmatpush2.bf16.msra.mxu0 0
    %1271 = vmatprep.subr.bf16.mxu0 0
    %1272 = vmatpush2.bf16.msra.mxu0 0
    %1273 = vmatprep.subr.bf16.mxu0 0
    %1274 = vmatpush2.bf16.msra.mxu0 0
    %1275 = vmatprep.subr.bf16.mxu0 0
    %1276 = vmatpush2.bf16.msra.mxu0 0
    %1277 = vmatprep.subr.bf16.mxu0 0
    %1278 = vmatpush2.bf16.msra.mxu0 0
    %1279 = vmatprep.subr.bf16.mxu0 0
    %1280 = vmatpush2.bf16.msra.mxu0 0
    %1281 = vmatprep.subr.bf16.mxu0 0
    %1282 = vmatpush2.bf16.msra.mxu0 0
    %1283 = vmatprep.subr.bf16.mxu0 0
    %1284 = vmatpush2.bf16.msra.mxu0 0
    %1285 = vmatprep.mubr.bf16.mxu0 0
    %1286 = vmatmul.mubr.bf16.gmra.mxu0 %v1251
    %v1287 = vpop.f32.mrf.mxu0
    %v1288 = vadd.f32 0.0, %v1287
    %v1289 = vpop.f32.mrf.mxu0
    %v1290 = vpop.f32.mrf.mxu0
    %v1291 = vpop.f32.mrf.mxu0
    %1292 = vdwg.mxu0
    %v1293 = vadd.f32 %v1245, %v1288
    %v1294 = vxor.u32 %v1293, 2147483648
    %v1295 = vmul.f32 %v1294, 1.442695
    %v1296 = vpow.pop %v1295
    %v1297 = vadd.f32 %v1296, 1.0
    %v1298 = vrcp.pop %v1297
    %v1299 = vmul.f32 1.0, %v1298
    %v1300 = vtanh.pop %v1293
    %v1301 = vmul.f32 %v1299, %v1135
    %1303 = vrot.lane.b32.xlu0 %v1300, 64
    %v1304 = vpop.permute.xlu0 %1303
    %v1306 = vmul.f32 %v1299, %v1304
    %1308 = vrot.lane.b32.xlu0 %v1306, 32
    %v1309 = vpop.permute.xlu0 %1308
    %v1311 = vadd.f32 %v1301, %v1309
    %v1312 = vtanh.pop %v1311
    %1314 = vrot.lane.b32.xlu0 %v1312, 64
    %v1315 = vpop.permute.xlu0 %1314
    %v1317 = vmul.f32 %v1299, %v1315
    %v1318 = vsel %vm1244, 1, 0
    %1319 = vset.pattern.permute.xlu0 0
    %1320 = vperm.xlu0 %1319, %v1318
    %v1321 = vpop.permute.xlu0 %1320
    %vm1322 = vcmp.eq.s32.totalorder %v1321, 1
    %v1323 = vsel %vm1322, %v1317, %v1134
    %v1324 = vsel %vm1322, %v1311, %v1135
    %v1325 = vsel %vm1322, %v1317, 0.0
    %v1326 = vpack.c.bf16 %v1325, %v1325
    %v1327 = vstv %s1242
    %vm1328 = vcmp.lt.s32.totalorder %v1327, %v66
    %v1329 = vunpack.c.l.bf16 %v1240
    %v1330 = vpack.c.bf16 %v1218, %v1218
    %1332 = vrot.lane.b32.xlu0 %v1330, 32
    %v1333 = vpop.permute.xlu0 %1332
    %v1335 = vsel %vm91, %v1333, 0
    %1337 = vmatprep.subr.bf16.mxu0 0
    %1338 = vmatpush1.bf16.msra.mxu0 0
    %1339 = vmatprep.subr.bf16.mxu0 0
    %1340 = vmatpush1.bf16.msra.mxu0 0
    %1341 = vmatprep.subr.bf16.mxu0 0
    %1342 = vmatpush1.bf16.msra.mxu0 0
    %1343 = vmatprep.subr.bf16.mxu0 0
    %1344 = vmatpush1.bf16.msra.mxu0 0
    %1345 = vmatprep.subr.bf16.mxu0 0
    %1346 = vmatpush1.bf16.msra.mxu0 0
    %1347 = vmatprep.subr.bf16.mxu0 0
    %1348 = vmatpush1.bf16.msra.mxu0 0
    %1349 = vmatprep.subr.bf16.mxu0 0
    %1350 = vmatpush1.bf16.msra.mxu0 %v190
    %1351 = vmatprep.subr.bf16.mxu0 0
    %1352 = vmatpush1.bf16.msra.mxu0 %v189
    %1353 = vmatprep.subr.bf16.mxu0 0
    %1354 = vmatpush2.bf16.msra.mxu0 0
    %1355 = vmatprep.subr.bf16.mxu0 0
    %1356 = vmatpush2.bf16.msra.mxu0 0
    %1357 = vmatprep.subr.bf16.mxu0 0
    %1358 = vmatpush2.bf16.msra.mxu0 0
    %1359 = vmatprep.subr.bf16.mxu0 0
    %1360 = vmatpush2.bf16.msra.mxu0 0
    %1361 = vmatprep.subr.bf16.mxu0 0
    %1362 = vmatpush2.bf16.msra.mxu0 0
    %1363 = vmatprep.subr.bf16.mxu0 0
    %1364 = vmatpush2.bf16.msra.mxu0 0
    %1365 = vmatprep.subr.bf16.mxu0 0
    %1366 = vmatpush2.bf16.msra.mxu0 0
    %1367 = vmatprep.subr.bf16.mxu0 0
    %1368 = vmatpush2.bf16.msra.mxu0 0
    %1369 = vmatprep.mubr.bf16.mxu0 0
    %1370 = vmatmul.mubr.bf16.gmra.mxu0 %v1335
    %v1371 = vpop.f32.mrf.mxu0
    %v1372 = vadd.f32 0.0, %v1371
    %v1373 = vpop.f32.mrf.mxu0
    %v1374 = vpop.f32.mrf.mxu0
    %v1375 = vpop.f32.mrf.mxu0
    %1376 = vdwg.mxu0
    %v1377 = vadd.f32 %v1329, %v1372
    %v1378 = vxor.u32 %v1377, 2147483648
    %v1379 = vmul.f32 %v1378, 1.442695
    %v1380 = vpow.pop %v1379
    %v1381 = vadd.f32 %v1380, 1.0
    %v1382 = vrcp.pop %v1381
    %v1383 = vmul.f32 1.0, %v1382
    %v1384 = vtanh.pop %v1377
    %v1385 = vmul.f32 %v1383, %v1219
    %1387 = vrot.lane.b32.xlu0 %v1384, 64
    %v1388 = vpop.permute.xlu0 %1387
    %v1390 = vmul.f32 %v1383, %v1388
    %1392 = vrot.lane.b32.xlu0 %v1390, 32
    %v1393 = vpop.permute.xlu0 %1392
    %v1395 = vadd.f32 %v1385, %v1393
    %v1396 = vtanh.pop %v1395
    %1398 = vrot.lane.b32.xlu0 %v1396, 64
    %v1399 = vpop.permute.xlu0 %1398
    %v1401 = vmul.f32 %v1383, %v1399
    %v1402 = vsel %vm1328, 1, 0
    %1403 = vset.pattern.permute.xlu0 0
    %1404 = vperm.xlu0 %1403, %v1402
    %v1405 = vpop.permute.xlu0 %1404
    %vm1406 = vcmp.eq.s32.totalorder %v1405, 1
    %v1407 = vsel %vm1406, %v1401, %v1218
    %v1408 = vsel %vm1406, %v1395, %v1219
    %v1409 = vsel %vm1406, %v1401, 0.0
    %v1410 = vpack.c.bf16 %v1409, %v1409
    %v1412 = vunpack.c.l.b16 %v1326
    %v1413 = vpack.c.b16 %v1412, %v1412
    %1414 = vrot.lane.b32.xlu0 %v1413, 32
    %v1415 = vpop.permute.xlu0 %1414
    %s1417 = scalar_lea.vmem [#allocation11], 24
    %1418 = vst.msk [vmem:[%s1417] sm:$0xf] %vm284, %v1415
    %v1420 = vunpack.c.l.b16 %v1410
    %v1421 = vpack.c.b16 %v1420, %v1420
    %1422 = vrot.lane.b32.xlu0 %v1421, 32
    %v1423 = vpop.permute.xlu0 %1422
    %s1425 = scalar_lea.vmem [#allocation12], 24
    %1426 = vst.msk [vmem:[%s1425] sm:$0xf] %vm284, %v1423
    %s1427 = scalar_lea.vmem [#allocation6], 56
    %v1428 = vld [vmem:[%s1427] sm:$0xf]
    %v1429 = vld [vmem:[%s1427 + $0x4] sm:$0xf]
    %s1430 = sadd.s32 %s67, 7
    %s1431 = ssub.s32 0, %s67
    %v1432 = vstv %s1430
    %vm1433 = vcmp.lt.s32.totalorder %v1432, %v65
    %v1434 = vunpack.c.l.bf16 %v1428
    %v1435 = vpack.c.bf16 %v1323, %v1323
    %1437 = vrot.lane.b32.xlu0 %v1435, 32
    %v1438 = vpop.permute.xlu0 %1437
    %v1440 = vsel %vm91, %v1438, 0
    %1442 = vmatprep.subr.bf16.mxu0 0
    %1443 = vmatpush1.bf16.msra.mxu0 0
    %1444 = vmatprep.subr.bf16.mxu0 0
    %1445 = vmatpush1.bf16.msra.mxu0 0
    %1446 = vmatprep.subr.bf16.mxu0 0
    %1447 = vmatpush1.bf16.msra.mxu0 0
    %1448 = vmatprep.subr.bf16.mxu0 0
    %1449 = vmatpush1.bf16.msra.mxu0 0
    %1450 = vmatprep.subr.bf16.mxu0 0
    %1451 = vmatpush1.bf16.msra.mxu0 0
    %1452 = vmatprep.subr.bf16.mxu0 0
    %1453 = vmatpush1.bf16.msra.mxu0 0
    %1454 = vmatprep.subr.bf16.mxu0 0
    %1455 = vmatpush1.bf16.msra.mxu0 %v88
    %1456 = vmatprep.subr.bf16.mxu0 0
    %1457 = vmatpush1.bf16.msra.mxu0 %v87
    %1458 = vmatprep.subr.bf16.mxu0 0
    %1459 = vmatpush2.bf16.msra.mxu0 0
    %1460 = vmatprep.subr.bf16.mxu0 0
    %1461 = vmatpush2.bf16.msra.mxu0 0
    %1462 = vmatprep.subr.bf16.mxu0 0
    %1463 = vmatpush2.bf16.msra.mxu0 0
    %1464 = vmatprep.subr.bf16.mxu0 0
    %1465 = vmatpush2.bf16.msra.mxu0 0
    %1466 = vmatprep.subr.bf16.mxu0 0
    %1467 = vmatpush2.bf16.msra.mxu0 0
    %1468 = vmatprep.subr.bf16.mxu0 0
    %1469 = vmatpush2.bf16.msra.mxu0 0
    %1470 = vmatprep.subr.bf16.mxu0 0
    %1471 = vmatpush2.bf16.msra.mxu0 0
    %1472 = vmatprep.subr.bf16.mxu0 0
    %1473 = vmatpush2.bf16.msra.mxu0 0
    %1474 = vmatprep.mubr.bf16.mxu0 0
    %1475 = vmatmul.mubr.bf16.gmra.mxu0 %v1440
    %v1476 = vpop.f32.mrf.mxu0
    %v1477 = vadd.f32 0.0, %v1476
    %v1478 = vpop.f32.mrf.mxu0
    %v1479 = vpop.f32.mrf.mxu0
    %v1480 = vpop.f32.mrf.mxu0
    %1481 = vdwg.mxu0
    %v1482 = vadd.f32 %v1434, %v1477
    %v1483 = vxor.u32 %v1482, 2147483648
    %v1484 = vmul.f32 %v1483, 1.442695
    %v1485 = vpow.pop %v1484
    %v1486 = vadd.f32 %v1485, 1.0
    %v1487 = vrcp.pop %v1486
    %v1488 = vmul.f32 1.0, %v1487
    %v1489 = vtanh.pop %v1482
    %v1490 = vmul.f32 %v1488, %v1324
    %1492 = vrot.lane.b32.xlu0 %v1489, 64
    %v1493 = vpop.permute.xlu0 %1492
    %v1495 = vmul.f32 %v1488, %v1493
    %1497 = vrot.lane.b32.xlu0 %v1495, 32
    %v1498 = vpop.permute.xlu0 %1497
    %v1500 = vadd.f32 %v1490, %v1498
    %v1501 = vtanh.pop %v1500
    %1503 = vrot.lane.b32.xlu0 %v1501, 64
    %v1504 = vpop.permute.xlu0 %1503
    %v1506 = vmul.f32 %v1488, %v1504
    %v1507 = vsel %vm1433, 1, 0
    %1508 = vset.pattern.permute.xlu0 0
    %1509 = vperm.xlu0 %1508, %v1507
    %v1510 = vpop.permute.xlu0 %1509
    %vm1511 = vcmp.eq.s32.totalorder %v1510, 1
    %v1512 = vsel %vm1511, %v1506, %v1323
    %v1513 = vsel %vm1511, %v1500, %v1324
    %v1514 = vsel %vm1511, %v1506, 0.0
    %v1515 = vpack.c.bf16 %v1514, %v1514
    %v1516 = vstv %s1431
    %vm1517 = vcmp.lt.s32.totalorder %v1516, %v66
    %v1518 = vunpack.c.l.bf16 %v1429
    %v1519 = vpack.c.bf16 %v1407, %v1407
    %1521 = vrot.lane.b32.xlu0 %v1519, 32
    %v1522 = vpop.permute.xlu0 %1521
    %v1524 = vsel %vm91, %v1522, 0
    %1526 = vmatprep.subr.bf16.mxu0 0
    %1527 = vmatpush1.bf16.msra.mxu0 0
    %1528 = vmatprep.subr.bf16.mxu0 0
    %1529 = vmatpush1.bf16.msra.mxu0 0
    %1530 = vmatprep.subr.bf16.mxu0 0
    %1531 = vmatpush1.bf16.msra.mxu0 0
    %1532 = vmatprep.subr.bf16.mxu0 0
    %1533 = vmatpush1.bf16.msra.mxu0 0
    %1534 = vmatprep.subr.bf16.mxu0 0
    %1535 = vmatpush1.bf16.msra.mxu0 0
    %1536 = vmatprep.subr.bf16.mxu0 0
    %1537 = vmatpush1.bf16.msra.mxu0 0
    %1538 = vmatprep.subr.bf16.mxu0 0
    %1539 = vmatpush1.bf16.msra.mxu0 %v190
    %1540 = vmatprep.subr.bf16.mxu0 0
    %1541 = vmatpush1.bf16.msra.mxu0 %v189
    %1542 = vmatprep.subr.bf16.mxu0 0
    %1543 = vmatpush2.bf16.msra.mxu0 0
    %1544 = vmatprep.subr.bf16.mxu0 0
    %1545 = vmatpush2.bf16.msra.mxu0 0
    %1546 = vmatprep.subr.bf16.mxu0 0
    %1547 = vmatpush2.bf16.msra.mxu0 0
    %1548 = vmatprep.subr.bf16.mxu0 0
    %1549 = vmatpush2.bf16.msra.mxu0 0
    %1550 = vmatprep.subr.bf16.mxu0 0
    %1551 = vmatpush2.bf16.msra.mxu0 0
    %1552 = vmatprep.subr.bf16.mxu0 0
    %1553 = vmatpush2.bf16.msra.mxu0 0
    %1554 = vmatprep.subr.bf16.mxu0 0
    %1555 = vmatpush2.bf16.msra.mxu0 0
    %1556 = vmatprep.subr.bf16.mxu0 0
    %1557 = vmatpush2.bf16.msra.mxu0 0
    %1558 = vmatprep.mubr.bf16.mxu0 0
    %1559 = vmatmul.mubr.bf16.gmra.mxu0 %v1524
    %v1560 = vpop.f32.mrf.mxu0
    %v1561 = vadd.f32 0.0, %v1560
    %v1562 = vpop.f32.mrf.mxu0
    %v1563 = vpop.f32.mrf.mxu0
    %v1564 = vpop.f32.mrf.mxu0
    %1565 = vdwg.mxu0
    %v1566 = vadd.f32 %v1518, %v1561
    %v1567 = vxor.u32 %v1566, 2147483648
    %v1568 = vmul.f32 %v1567, 1.442695
    %v1569 = vpow.pop %v1568
    %v1570 = vadd.f32 %v1569, 1.0
    %v1571 = vrcp.pop %v1570
    %v1572 = vmul.f32 1.0, %v1571
    %v1573 = vtanh.pop %v1566
    %v1574 = vmul.f32 %v1572, %v1408
    %1576 = vrot.lane.b32.xlu0 %v1573, 64
    %v1577 = vpop.permute.xlu0 %1576
    %v1579 = vmul.f32 %v1572, %v1577
    %1581 = vrot.lane.b32.xlu0 %v1579, 32
    %v1582 = vpop.permute.xlu0 %1581
    %v1584 = vadd.f32 %v1574, %v1582
    %v1585 = vtanh.pop %v1584
    %1587 = vrot.lane.b32.xlu0 %v1585, 64
    %v1588 = vpop.permute.xlu0 %1587
    %v1590 = vmul.f32 %v1572, %v1588
    %v1591 = vsel %vm1517, 1, 0
    %1592 = vset.pattern.permute.xlu0 0
    %1593 = vperm.xlu0 %1592, %v1591
    %v1594 = vpop.permute.xlu0 %1593
    %vm1595 = vcmp.eq.s32.totalorder %v1594, 1
    %v1596 = vsel %vm1595, %v1590, %v1407
    %v1597 = vsel %vm1595, %v1584, %v1408
    %v1598 = vsel %vm1595, %v1590, 0.0
    %v1599 = vpack.c.bf16 %v1598, %v1598
    %v1601 = vunpack.c.l.b16 %v1515
    %v1602 = vpack.c.b16 %v1601, %v1601
    %1603 = vrot.lane.b32.xlu0 %v1602, 32
    %v1604 = vpop.permute.xlu0 %1603
    %s1606 = scalar_lea.vmem [#allocation11], 28
    %1607 = vst.msk [vmem:[%s1606] sm:$0xf] %vm284, %v1604
    %v1609 = vunpack.c.l.b16 %v1599
    %v1610 = vpack.c.b16 %v1609, %v1609
    %1611 = vrot.lane.b32.xlu0 %v1610, 32
    %v1612 = vpop.permute.xlu0 %1611
    %s1614 = scalar_lea.vmem [#allocation12], 28
    %1615 = vst.msk [vmem:[%s1614] sm:$0xf] %vm284, %v1612
    %1617 = vrot.lane.b32.xlu0 %v1512, 32
    %v1618 = vpop.permute.xlu0 %1617
    %1620 = vst.msk [vmem:[#allocation2] sm:$0xff] %vm91, %v1618
    %1622 = vrot.lane.b32.xlu0 %v1513, 96
    %v1623 = vpop.permute.xlu0 %1622
    %1625 = vst.msk [vmem:[#allocation3] sm:$0xff] %vm91, %v1623
    %1627 = vrot.lane.b32.xlu0 %v1596, 32
    %v1628 = vpop.permute.xlu0 %1627
    %1630 = vst.msk [vmem:[#allocation4] sm:$0xff] %vm91, %v1628
    %1632 = vrot.lane.b32.xlu0 %v1597, 96
    %v1633 = vpop.permute.xlu0 %1632
    %1635 = vst.msk [vmem:[#allocation5] sm:$0xff] %vm91, %v1633
    // Predicated region
    $region26: #{tpu_custom_call.1} parent=1 // pred_check
      _
    $region27: #{tpu_custom_call.1} parent=1 // pred_check_branch
      %1637 = sbr.rel (0) target = $region29
    $region28: #{tpu_custom_call.1} parent=1 // pred_region
      %s1639 = ssub.s32 512, 512
      %1640 = vsyncadd [#allocation8], %s1639
      %s1641 = sshll.u32 [#allocation11], 4
      %s1642 = int_to_ptr.vmem [resolvable:$true] %s1641
      %1647 = dma.vmem_to_hbm [thread:$0]  %s1642, 512, %s3, [#allocation8], 64, 64, 4
    $region29: #{tpu_custom_call.1} parent=1 // pred_fallthru
      _
    // Predicated region
    $region30: #{tpu_custom_call.1} parent=1 // pred_check
      _
    $region31: #{tpu_custom_call.1} parent=1 // pred_check_branch
      %1649 = sbr.rel (0) target = $region33
    $region32: #{tpu_custom_call.1} parent=1 // pred_region
      %s1651 = ssub.s32 512, 512
      %1652 = vsyncadd [#allocation13], %s1651
      %s1653 = sshll.u32 [#allocation12], 4
      %s1654 = int_to_ptr.vmem [resolvable:$true] %s1653
      %1659 = dma.vmem_to_hbm [thread:$0]  %s1654, 512, %s4, [#allocation13], 64, 64, 4
    $region33: #{tpu_custom_call.1} parent=1 // pred_fallthru
      _
    // Predicated region
    $region34: #{tpu_custom_call.1} parent=1 // pred_check
      _
    $region35: #{tpu_custom_call.1} parent=1 // pred_check_branch
      %1661 = sbr.rel (0) target = $region37
    $region36: #{tpu_custom_call.1} parent=1 // pred_region
      %1662 = dma.done [#allocation8], 512
    $region37: #{tpu_custom_call.1} parent=1 // pred_fallthru
      _
    // Predicated region
    $region38: #{tpu_custom_call.1} parent=1 // pred_check
      _
    $region39: #{tpu_custom_call.1} parent=1 // pred_check_branch
      %1664 = sbr.rel (0) target = $region41
    $region40: #{tpu_custom_call.1} parent=1 // pred_region
      %1665 = dma.done [#allocation13], 512
    $region41: #{tpu_custom_call.1} parent=1 // pred_fallthru
      _
    %1666 = vsyncpa [#allocation7], 1
    %1667 = vsyncpa [#allocation10], 1
    %1668 = vsyncpa [#allocation8], 1
    %1669 = vsyncpa [#allocation13], 1

</llo_original>
